<compile_context>
chip_gen: v5e
topology: v5e:2x2
jax: 0.10.0
libtpu: 0.0.40
codegen_flags: <defaults>
</compile_context>

<pallas_src>
import jax
import jax.numpy as jnp
from jax.experimental import pallas as pl
from jax.experimental.pallas import tpu as pltpu

EPS = 1e-5                       # nn.GroupNorm default eps
_SQRT_HALF = 0.7071067811865476


def _gelu(v):
    # exact (erf-based) GELU == torch.nn.GELU default
    return 0.5 * v * (1.0 + jax.lax.erf(v * jnp.float32(_SQRT_HALF)))


def _round_up(x, m):
    return ((x + m - 1) // m) * m


def _pick_vmem_limit(required_bytes):
    """Derive a vmem_limit_bytes from actual buffer needs + per-chip capacity."""
    try:
        phys = int(pltpu.get_tpu_info().vmem_capacity_bytes)
    except Exception:
        phys = 64 * 1024 * 1024          # conservative: v7x per-TensorCore VMEM
    cap = (phys // 8) * 7                 # leave headroom for pipeline DMA buffers
    want = max(2 * int(required_bytes), 32 * 1024 * 1024)
    return int(max(min(want, cap), 16 * 1024 * 1024))


# ----------------------------- fused Up kernel ------------------------------

def _make_up_kernel(H, W, cin, mid1, mid2, lane_pad, cmax):
    """Builds the fused per-sample kernel (all sizes are Python ints)."""
    HW = H * W
    p_cin = _round_up(cin, 16)
    p_mid1 = _round_up(mid1, 16)
    p_mid2 = _round_up(mid2, 16)

    def conv_gn(h_bf16, c_in, c_pad, w_ref, g_ref, b_ref,
                pad_ref, patches_ref, left_ok, right_ok):
        # h_bf16: (c_in, HW) bf16.  3x3 conv (padding=1, bias-free) + GroupNorm.
        # In-kernel im2col: write h into the stripe-zeroed flat bf16 scratch,
        # read the nine (dy, dx)-shifted windows, mask column wrap-around, and
        # store each tap into the persistent bf16 patches scratch (per-tap rows
        # 16-aligned).  One MXU matmul with contraction depth 9*c_pad.
        pad_ref[0:c_in, lane_pad:lane_pad + HW] = h_bf16
        tap_idx = 0
        for dy in (-1, 0, 1):
            for dx in (-1, 0, 1):
                s = lane_pad + dy * W + dx
                tap = pad_ref[0:c_in, s:s + HW]
                if dx == -1:
                    tap = tap * left_ok
                elif dx == 1:
                    tap = tap * right_ok
                row0 = tap_idx * c_pad
                patches_ref[row0:row0 + c_in, :] = tap
                if c_pad != c_in:
                    # keep the zero-weight pad rows free of stale/garbage data
                    patches_ref[row0 + c_in:row0 + c_pad, :] = jnp.zeros(
                        (c_pad - c_in, HW), jnp.bfloat16)
                tap_idx += 1
        K = 9 * c_pad
        y = jnp.dot(w_ref[...], patches_ref[0:K, :],
                    preferred_element_type=jnp.float32)
        # GroupNorm(1, c_out): mean-subtracted variance over the (c_out, HW) slab
        cnt = y.shape[0] * y.shape[1]
        mean = jnp.sum(y) / cnt
        d = y - mean
        var = jnp.sum(d * d) / cnt
        yn = d * jax.lax.rsqrt(var + EPS)
        return yn * g_ref[...] + b_ref[...]             # (c_out, 1) lane-broadcast

    def kernel(x_ref, t_ref, cmask_ref,
               w1_ref, g1_ref, b1_ref,
               w2_ref, g2_ref, b2_ref,
               w3_ref, g3_ref, b3_ref,
               w4_ref, g4_ref, b4_ref,
               wet_ref, bet_ref,
               o_ref, pad_ref, patches_ref):
        # Only the two lane_pad stripes of the pad scratch ever need to be zero
        # (the middle HW columns are fully overwritten before any tap read).
        # No store ever writes the stripes, but scratch VMEM is uninitialized on
        # each core's first grid step, so re-zero just the stripes every step.
        pad_ref[:, 0:lane_pad] = jnp.zeros((cmax, lane_pad), jnp.bfloat16)
        pad_ref[:, lane_pad + HW:lane_pad + HW + lane_pad] = jnp.zeros(
            (cmax, lane_pad), jnp.bfloat16)

        left_ok = cmask_ref[0:1, :]        # bf16 1.0 where x-1 >= 0
        right_ok = cmask_ref[1:2, :]       # bf16 1.0 where x+1 <  W

        # DoubleConv(in, in, residual=True) -- conv1 fed straight from the
        # bf16 input block (no live f32 copy of x held across the block).
        h1 = _gelu(conv_gn(x_ref[0], cin, p_cin, w1_ref, g1_ref, b1_ref,
                           pad_ref, patches_ref, left_ok, right_ok))
        h2 = conv_gn(h1.astype(jnp.bfloat16), mid1, p_mid1,
                     w2_ref, g2_ref, b2_ref,
                     pad_ref, patches_ref, left_ok, right_ok)
        # residual: re-read the (still VMEM-resident) input block at the add site
        h2 = _gelu(x_ref[0].astype(jnp.float32) + h2)

        # DoubleConv(in, out, mid = in // 2)
        h3 = _gelu(conv_gn(h2.astype(jnp.bfloat16), cin, p_cin,
                           w3_ref, g3_ref, b3_ref,
                           pad_ref, patches_ref, left_ok, right_ok))
        y4 = conv_gn(h3.astype(jnp.bfloat16), mid2, p_mid2,
                     w4_ref, g4_ref, b4_ref,
                     pad_ref, patches_ref, left_ok, right_ok)

        # time embedding: Linear(SiLU(t)) broadcast-added per output channel
        trow = t_ref[0].astype(jnp.float32)                       # (1, emb_dim)
        silu_t = trow * jax.nn.sigmoid(trow)
        emb = jnp.sum(wet_ref[...] * silu_t, axis=1, keepdims=True) + bet_ref[...]
        o_ref[0] = (y4 + emb).astype(o_ref.dtype)                 # (cout, HW)

    return kernel


# ------------------------------- JAX glue ------------------------------------

def _interp_matrix(n_in, n_out):
    """Bilinear (align_corners=True) 1-D interpolation matrix (n_out, n_in)."""
    if n_in == 1:
        return jnp.ones((n_out, 1), jnp.float32)
    src = jnp.arange(n_out, dtype=jnp.float32) * ((n_in - 1) / (n_out - 1))
    i0 = jnp.clip(jnp.floor(src), 0, n_in - 2)
    frac = src - i0
    i0 = i0.astype(jnp.int32)
    return (jax.nn.one_hot(i0, n_in, dtype=jnp.float32) * (1.0 - frac)[:, None]
            + jax.nn.one_hot(i0 + 1, n_in, dtype=jnp.float32) * frac[:, None])


def _prepare_input(x, skip_x):
    """2x bilinear upsample via two matmuls, bottom/right pad, channel concat."""
    N, C, H, W = x.shape
    wy = _interp_matrix(H, 2 * H)                     # (Ho, H)
    wx = _interp_matrix(W, 2 * W)                     # (Wo, W)
    xu = jnp.einsum('oh,nchw,pw->ncop', wy, x, wx)
    dy = skip_x.shape[2] - xu.shape[2]
    dx = skip_x.shape[3] - xu.shape[3]
    if dy > 0 or dx > 0:
        xu = jnp.pad(xu, ((0, 0), (0, 0), (0, dy), (0, dx)))
    return jnp.concatenate([skip_x, xu], axis=1)      # (N, Cin, Ho, Wo)


def up_forward_pallas(x, skip_x, t, params, out_dtype=jnp.float32):
    """Up.forward: NCHW in / NCHW out via one fused Pallas kernel per sample."""
    xcat = _prepare_input(x, skip_x)                  # (N, Cin, Ho, Wo) f32
    N, Cin, Ho, Wo = xcat.shape
    HW = Ho * Wo
    lane_pad = _round_up(Wo + 1, 128)                 # keep the scratch store lane-aligned

    mid1 = params['w1'].shape[0]
    mid2 = params['w3'].shape[0]
    cout = params['w4'].shape[0]
    emb_dim = params['we'].shape[0]
    cmax = max(Cin, mid1, mid2)
    p_max = _round_up(cmax, 16)

    # lane-dense per-sample activation layout (C, H*W), bf16 on the HBM->VMEM path
    # TODO(synk): if a UNet level has HW not a multiple of 128, pad HW to 128 in
    # this flat layout (and mask the GroupNorm count) instead of eating masked
    # partial stores.
    xflat = xcat.reshape(N, Cin, HW).astype(jnp.bfloat16)
    trow = t.reshape(N, 1, emb_dim).astype(jnp.float32)

    # column-validity masks for the dx = -1 / +1 taps (compile-time constants,
    # bf16 to match the bf16 tap multiply)
    xi = jnp.arange(HW, dtype=jnp.int32) % Wo
    cmask = jnp.stack([(xi > 0), (xi < Wo - 1)]).astype(jnp.bfloat16)   # (2, HW)

    def pack_w(w):   # (Cout, Cin, 3, 3) -> (Cout, 9*round_up(Cin,16)), tap-major
        co, ci = w.shape[0], w.shape[1]
        cip = _round_up(ci, 16)
        wt = jnp.transpose(w, (0, 2, 3, 1))            # (co, ky, kx, ci)
        wt = jnp.pad(wt, ((0, 0), (0, 0), (0, 0), (0, cip - ci)))  # zero pad rows
        return wt.reshape(co, 9 * cip).astype(jnp.bfloat16)

    def colv(v):     # (C,) -> (C, 1) f32, lane-broadcastable inside the kernel
        return v.reshape(-1, 1).astype(jnp.float32)

    w1, w2, w3, w4 = (pack_w(params[k]) for k in ('w1', 'w2', 'w3', 'w4'))
    g1, b1 = colv(params['g1']), colv(params['b1'])
    g2, b2 = colv(params['g2']), colv(params['b2'])
    g3, b3 = colv(params['g3']), colv(params['b3'])
    g4, b4 = colv(params['g4']), colv(params['b4'])
    wet = params['we'].T.astype(jnp.float32)          # (Cout, emb_dim)
    bet = colv(params['be'])

    kernel = _make_up_kernel(Ho, Wo, Cin, mid1, mid2, lane_pad, cmax)

    def rep(a):      # replicated (grid-invariant) operand, full-array block
        nd = a.ndim
        return pl.BlockSpec(a.shape, lambda n: (0,) * nd)

    in_specs = [
        pl.BlockSpec((1, Cin, HW), lambda n: (n, 0, 0)),       # activations
        pl.BlockSpec((1, 1, emb_dim), lambda n: (n, 0, 0)),    # time embedding input
        rep(cmask),
        rep(w1), rep(g1), rep(b1),
        rep(w2), rep(g2), rep(b2),
        rep(w3), rep(g3), rep(b3),
        rep(w4), rep(g4), rep(b4),
        rep(wet), rep(bet),
    ]

    # VMEM budget: double-buffered I/O blocks + replicated params + scratches
    # + live f32 activation slabs; clamp against the queried chip capacity.
    packed = (w1, g1, b1, w2, g2, b2, w3, g3, b3, w4, g4, b4, wet, bet, cmask)
    param_bytes = sum(int(a.size) * jnp.dtype(a.dtype).itemsize for a in packed)
    out_itemsize = jnp.dtype(out_dtype).itemsize
    est_bytes = (
        2 * Cin * HW * 2                     # bf16 input block, double-buffered
        + 2 * emb_dim * 4                    # time-emb block
        + 2 * cout * HW * out_itemsize       # output block
        + 2 * param_bytes                    # replicated params
        + cmax * (HW + 2 * lane_pad) * 2     # bf16 im2col pad scratch
        + 9 * p_max * HW * 2                 # bf16 patches scratch
        + 8 * cmax * HW * 4                  # live f32 activation slabs (estimate)
    )
    vmem_limit = _pick_vmem_limit(est_bytes)

    # TODO(synk): for very large H*W levels (notably v7x: 64 MiB VMEM, 2 TCs) add
    # an HW tile axis as a second "parallel" grid dimension with a two-phase
    # GroupNorm; the single-step path below assumes the working set fits VMEM.
    # TODO(synk): optionally pad K (9*cin_pad) to a multiple of 256 and Cout to a
    # multiple of 8 for fully aligned MXU tiles; at Cout<=128 the kernel is
    # ld/st-bound so this is second-order.
    out = pl.pallas_call(
        kernel,
        out_shape=jax.ShapeDtypeStruct((N, cout, HW), out_dtype),
        grid_spec=pltpu.PrefetchScalarGridSpec(
            num_scalar_prefetch=0,
            grid=(N,),
            in_specs=in_specs,
            out_specs=pl.BlockSpec((1, cout, HW), lambda n: (n, 0, 0)),
            scratch_shapes=[
                pltpu.VMEM((cmax, HW + 2 * lane_pad), jnp.bfloat16),   # pad scratch
                pltpu.VMEM((9 * p_max, HW), jnp.bfloat16),             # patches
            ],
        ),
        compiler_params=pltpu.CompilerParams(
            dimension_semantics=("parallel",),   # only pays off on v7x (2 TCs)
            vmem_limit_bytes=vmem_limit,
        ),
    )(xflat, trow, cmask, w1, g1, b1, w2, g2, b2, w3, g3, b3, w4, g4, b4, wet, bet)

    return out.reshape(N, cout, Ho, Wo)


# ---------------------- pure JAX/XLA reference (checking) --------------------

def up_forward_reference(x, skip_x, t, params):
    """Reference forward, matched to the kernel's bf16 matmul precision."""
    xcat = _prepare_input(x, skip_x)
    xcat = xcat.astype(jnp.bfloat16).astype(jnp.float32)   # kernel input quantization

    def conv(h, w):
        return jax.lax.conv_general_dilated(
            h.astype(jnp.bfloat16), w.astype(jnp.bfloat16),
            window_strides=(1, 1), padding=((1, 1), (1, 1)),
            dimension_numbers=('NCHW', 'OIHW', 'NCHW'),
            preferred_element_type=jnp.float32)

    def gn(y, g, b):
        mean = jnp.mean(y, axis=(1, 2, 3), keepdims=True)
        var = jnp.mean(jnp.square(y - mean), axis=(1, 2, 3), keepdims=True)
        yn = (y - mean) * jax.lax.rsqrt(var + EPS)
        return yn * g[None, :, None, None] + b[None, :, None, None]

    h1 = _gelu(gn(conv(xcat, params['w1']), params['g1'], params['b1']))
    h2 = _gelu(xcat + gn(conv(h1, params['w2']), params['g2'], params['b2']))
    h3 = _gelu(gn(conv(h2, params['w3']), params['g3'], params['b3']))
    y4 = gn(conv(h3, params['w4']), params['g4'], params['b4'])

    silu_t = t * jax.nn.sigmoid(t)
    emb = silu_t @ params['we'] + params['be']
    return y4 + emb[:, :, None, None]


# ---------------------------------- main --------------------------------------

if __name__ == "__main__":
    key = jax.random.PRNGKey(0)
    ks = jax.random.split(key, 17)

    # x comes from the lower UNet level; skip has 2x spatial resolution.
    N, Cx, H, W = 2, 2, 8, 8
    Cskip = 2
    in_ch = Cx + Cskip          # channels after concat = 4
    out_ch = 4
    emb_dim = 32
    mid1 = in_ch                # residual DoubleConv: mid = out = in
    mid2 = in_ch // 2           # second DoubleConv: mid = in // 2

    x = jax.random.normal(ks[0], (N, Cx, H, W), jnp.float32)
    skip_x = jax.random.normal(ks[1], (N, Cskip, 2 * H, 2 * W), jnp.float32)
    t = jax.random.normal(ks[2], (N, emb_dim), jnp.float32)

    def conv_w(k, cout_, cin_):
        return 0.2 * jax.random.normal(k, (cout_, cin_, 3, 3), jnp.float32)

    params = {
        'w1': conv_w(ks[3], mid1, in_ch),
        'w2': conv_w(ks[4], in_ch, mid1),
        'w3': conv_w(ks[5], mid2, in_ch),
        'w4': conv_w(ks[6], out_ch, mid2),
        'g1': 1.0 + 0.1 * jax.random.normal(ks[7], (mid1,), jnp.float32),
        'b1': 0.1 * jax.random.normal(ks[8], (mid1,), jnp.float32),
        'g2': 1.0 + 0.1 * jax.random.normal(ks[9], (in_ch,), jnp.float32),
        'b2': 0.1 * jax.random.normal(ks[10], (in_ch,), jnp.float32),
        'g3': 1.0 + 0.1 * jax.random.normal(ks[11], (mid2,), jnp.float32),
        'b3': 0.1 * jax.random.normal(ks[12], (mid2,), jnp.float32),
        'g4': 1.0 + 0.1 * jax.random.normal(ks[13], (out_ch,), jnp.float32),
        'b4': 0.1 * jax.random.normal(ks[14], (out_ch,), jnp.float32),
        'we': 0.1 * jax.random.normal(ks[15], (emb_dim, out_ch), jnp.float32),
        'be': 0.1 * jax.random.normal(ks[16], (out_ch,), jnp.float32),
    }

    out = jax.block_until_ready(jax.jit(up_forward_pallas)(x, skip_x, t, params))
    ref = jax.block_until_ready(jax.jit(up_forward_reference)(x, skip_x, t, params))

    assert out.shape == (N, out_ch, 2 * H, 2 * W), out.shape
    assert bool(jnp.all(jnp.isfinite(out)))
    max_err = float(jnp.max(jnp.abs(out - ref)))
    # bf16 MXU inputs on both paths -> expect agreement at the ~1e-3 level.
    assert max_err < 5e-2, f"mismatch vs reference: max abs err = {max_err}"
    print("KERNEL_OK")
</pallas_src>

<mosaic_0001>
module attributes {stable_mosaic.version = 11 : i64} {
  func.func @kernel(%arg0: i32, %arg1: memref<1x4x256xbf16, #tpu.memory_space<vmem>>, %arg2: memref<1x1x32xf32, #tpu.memory_space<vmem>>, %arg3: memref<2x256xbf16, #tpu.memory_space<vmem>>, %arg4: memref<4x144xbf16, #tpu.memory_space<vmem>>, %arg5: memref<4x1xf32, #tpu.memory_space<vmem>>, %arg6: memref<4x1xf32, #tpu.memory_space<vmem>>, %arg7: memref<4x144xbf16, #tpu.memory_space<vmem>>, %arg8: memref<4x1xf32, #tpu.memory_space<vmem>>, %arg9: memref<4x1xf32, #tpu.memory_space<vmem>>, %arg10: memref<2x144xbf16, #tpu.memory_space<vmem>>, %arg11: memref<2x1xf32, #tpu.memory_space<vmem>>, %arg12: memref<2x1xf32, #tpu.memory_space<vmem>>, %arg13: memref<4x144xbf16, #tpu.memory_space<vmem>>, %arg14: memref<4x1xf32, #tpu.memory_space<vmem>>, %arg15: memref<4x1xf32, #tpu.memory_space<vmem>>, %arg16: memref<4x32xf32, #tpu.memory_space<vmem>>, %arg17: memref<4x1xf32, #tpu.memory_space<vmem>>, %arg18: memref<1x4x256xf32, #tpu.memory_space<vmem>>, %arg19: memref<4x512xbf16, #tpu.memory_space<vmem>>, %arg20: memref<144x256xbf16, #tpu.memory_space<vmem>>) attributes {dimension_semantics = [#tpu.dimension_semantics<parallel>], iteration_bounds = array<i64: 2>, scalar_prefetch = 0 : i64, scratch_operands = 2 : i64, tpu.core_type = #tpu.core_type<tc>, window_params = [{transform_indices = @transform_0, window_bounds = array<i64: 1, 4, 256>}, {transform_indices = @transform_1, window_bounds = array<i64: 1, 1, 32>}, {pipeline_mode = #tpu.pipeline_mode<synchronous>, transform_indices = @transform_2, window_bounds = array<i64: 2, 256>}, {pipeline_mode = #tpu.pipeline_mode<synchronous>, transform_indices = @transform_3, window_bounds = array<i64: 4, 144>}, {pipeline_mode = #tpu.pipeline_mode<synchronous>, transform_indices = @transform_4, window_bounds = array<i64: 4, 1>}, {pipeline_mode = #tpu.pipeline_mode<synchronous>, transform_indices = @transform_5, window_bounds = array<i64: 4, 1>}, {pipeline_mode = #tpu.pipeline_mode<synchronous>, transform_indices = @transform_6, window_bounds = array<i64: 4, 144>}, {pipeline_mode = #tpu.pipeline_mode<synchronous>, transform_indices = @transform_7, window_bounds = array<i64: 4, 1>}, {pipeline_mode = #tpu.pipeline_mode<synchronous>, transform_indices = @transform_8, window_bounds = array<i64: 4, 1>}, {pipeline_mode = #tpu.pipeline_mode<synchronous>, transform_indices = @transform_9, window_bounds = array<i64: 2, 144>}, {pipeline_mode = #tpu.pipeline_mode<synchronous>, transform_indices = @transform_10, window_bounds = array<i64: 2, 1>}, {pipeline_mode = #tpu.pipeline_mode<synchronous>, transform_indices = @transform_11, window_bounds = array<i64: 2, 1>}, {pipeline_mode = #tpu.pipeline_mode<synchronous>, transform_indices = @transform_12, window_bounds = array<i64: 4, 144>}, {pipeline_mode = #tpu.pipeline_mode<synchronous>, transform_indices = @transform_13, window_bounds = array<i64: 4, 1>}, {pipeline_mode = #tpu.pipeline_mode<synchronous>, transform_indices = @transform_14, window_bounds = array<i64: 4, 1>}, {pipeline_mode = #tpu.pipeline_mode<synchronous>, transform_indices = @transform_15, window_bounds = array<i64: 4, 32>}, {pipeline_mode = #tpu.pipeline_mode<synchronous>, transform_indices = @transform_16, window_bounds = array<i64: 4, 1>}, {transform_indices = @transform_17, window_bounds = array<i64: 1, 4, 256>}]} {
    %cst = arith.constant 0.000000e+00 : bf16
    %0 = vector.broadcast %cst : bf16 to vector<4x128xbf16>
    %c0 = arith.constant 0 : index
    %c0_0 = arith.constant 0 : index
    %1 = vector.load %arg19[%c0, %c0_0] : memref<4x512xbf16, #tpu.memory_space<vmem>>, vector<4x128xbf16>
    tpu.vector_store %arg19[%c0, %c0_0], %0 {strides = array<i32>} : memref<4x512xbf16, #tpu.memory_space<vmem>>, vector<4x128xbf16>,
    %cst_1 = arith.constant 0.000000e+00 : bf16
    %2 = vector.broadcast %cst_1 : bf16 to vector<4x128xbf16>
    %c0_2 = arith.constant 0 : index
    %c384 = arith.constant 384 : index
    %3 = vector.load %arg19[%c0_2, %c384] : memref<4x512xbf16, #tpu.memory_space<vmem>>, vector<4x128xbf16>
    tpu.vector_store %arg19[%c0_2, %c384], %2 {strides = array<i32>} : memref<4x512xbf16, #tpu.memory_space<vmem>>, vector<4x128xbf16>,
    %c0_3 = arith.constant 0 : index
    %c0_4 = arith.constant 0 : index
    %4 = vector.load %arg3[%c0_3, %c0_4] : memref<2x256xbf16, #tpu.memory_space<vmem>>, vector<1x256xbf16>
    %c1 = arith.constant 1 : index
    %c0_5 = arith.constant 0 : index
    %5 = vector.load %arg3[%c1, %c0_5] : memref<2x256xbf16, #tpu.memory_space<vmem>>, vector<1x256xbf16>
    %c0_6 = arith.constant 0 : index
    %c0_7 = arith.constant 0 : index
    %c0_8 = arith.constant 0 : index
    %6 = vector.load %arg1[%c0_6, %c0_7, %c0_8] : memref<1x4x256xbf16, #tpu.memory_space<vmem>>, vector<1x4x256xbf16>
    %7 = vector.shape_cast %6 : vector<1x4x256xbf16> to vector<4x256xbf16>
    %c0_9 = arith.constant 0 : index
    %c128 = arith.constant 128 : index
    %8 = vector.load %arg19[%c0_9, %c128] : memref<4x512xbf16, #tpu.memory_space<vmem>>, vector<4x256xbf16>
    tpu.vector_store %arg19[%c0_9, %c128], %7 {strides = array<i32>} : memref<4x512xbf16, #tpu.memory_space<vmem>>, vector<4x256xbf16>,
    %c0_10 = arith.constant 0 : index
    %c111 = arith.constant 111 : index
    %9 = vector.load %arg19[%c0_10, %c111] : memref<4x512xbf16, #tpu.memory_space<vmem>>, vector<4x256xbf16>
    %10 = vector.broadcast %4 : vector<1x256xbf16> to vector<4x256xbf16>
    %11 = arith.mulf %9, %10 : vector<4x256xbf16>
    %c0_11 = arith.constant 0 : index
    %c0_12 = arith.constant 0 : index
    %12 = vector.load %arg20[%c0_11, %c0_12] : memref<144x256xbf16, #tpu.memory_space<vmem>>, vector<4x256xbf16>
    tpu.vector_store %arg20[%c0_11, %c0_12], %11 {strides = array<i32>} : memref<144x256xbf16, #tpu.memory_space<vmem>>, vector<4x256xbf16>,
    %cst_13 = arith.constant 0.000000e+00 : bf16
    %13 = vector.broadcast %cst_13 : bf16 to vector<12x256xbf16>
    %c4 = arith.constant 4 : index
    %c0_14 = arith.constant 0 : index
    %14 = vector.load %arg20[%c4, %c0_14] : memref<144x256xbf16, #tpu.memory_space<vmem>>, vector<12x256xbf16>
    tpu.vector_store %arg20[%c4, %c0_14], %13 {strides = array<i32>} : memref<144x256xbf16, #tpu.memory_space<vmem>>, vector<12x256xbf16>,
    %c0_15 = arith.constant 0 : index
    %c112 = arith.constant 112 : index
    %15 = vector.load %arg19[%c0_15, %c112] : memref<4x512xbf16, #tpu.memory_space<vmem>>, vector<4x256xbf16>
    %c16 = arith.constant 16 : index
    %c0_16 = arith.constant 0 : index
    %16 = vector.load %arg20[%c16, %c0_16] : memref<144x256xbf16, #tpu.memory_space<vmem>>, vector<4x256xbf16>
    tpu.vector_store %arg20[%c16, %c0_16], %15 {strides = array<i32>} : memref<144x256xbf16, #tpu.memory_space<vmem>>, vector<4x256xbf16>,
    %cst_17 = arith.constant 0.000000e+00 : bf16
    %17 = vector.broadcast %cst_17 : bf16 to vector<12x256xbf16>
    %c20 = arith.constant 20 : index
    %c0_18 = arith.constant 0 : index
    %18 = vector.load %arg20[%c20, %c0_18] : memref<144x256xbf16, #tpu.memory_space<vmem>>, vector<12x256xbf16>
    tpu.vector_store %arg20[%c20, %c0_18], %17 {strides = array<i32>} : memref<144x256xbf16, #tpu.memory_space<vmem>>, vector<12x256xbf16>,
    %c0_19 = arith.constant 0 : index
    %c113 = arith.constant 113 : index
    %19 = vector.load %arg19[%c0_19, %c113] : memref<4x512xbf16, #tpu.memory_space<vmem>>, vector<4x256xbf16>
    %20 = vector.broadcast %5 : vector<1x256xbf16> to vector<4x256xbf16>
    %21 = arith.mulf %19, %20 : vector<4x256xbf16>
    %c32 = arith.constant 32 : index
    %c0_20 = arith.constant 0 : index
    %22 = vector.load %arg20[%c32, %c0_20] : memref<144x256xbf16, #tpu.memory_space<vmem>>, vector<4x256xbf16>
    tpu.vector_store %arg20[%c32, %c0_20], %21 {strides = array<i32>} : memref<144x256xbf16, #tpu.memory_space<vmem>>, vector<4x256xbf16>,
    %cst_21 = arith.constant 0.000000e+00 : bf16
    %23 = vector.broadcast %cst_21 : bf16 to vector<12x256xbf16>
    %c36 = arith.constant 36 : index
    %c0_22 = arith.constant 0 : index
    %24 = vector.load %arg20[%c36, %c0_22] : memref<144x256xbf16, #tpu.memory_space<vmem>>, vector<12x256xbf16>
    tpu.vector_store %arg20[%c36, %c0_22], %23 {strides = array<i32>} : memref<144x256xbf16, #tpu.memory_space<vmem>>, vector<12x256xbf16>,
    %c0_23 = arith.constant 0 : index
    %c127 = arith.constant 127 : index
    %25 = vector.load %arg19[%c0_23, %c127] : memref<4x512xbf16, #tpu.memory_space<vmem>>, vector<4x256xbf16>
    %26 = vector.broadcast %4 : vector<1x256xbf16> to vector<4x256xbf16>
    %27 = arith.mulf %25, %26 : vector<4x256xbf16>
    %c48 = arith.constant 48 : index
    %c0_24 = arith.constant 0 : index
    %28 = vector.load %arg20[%c48, %c0_24] : memref<144x256xbf16, #tpu.memory_space<vmem>>, vector<4x256xbf16>
    tpu.vector_store %arg20[%c48, %c0_24], %27 {strides = array<i32>} : memref<144x256xbf16, #tpu.memory_space<vmem>>, vector<4x256xbf16>,
    %cst_25 = arith.constant 0.000000e+00 : bf16
    %29 = vector.broadcast %cst_25 : bf16 to vector<12x256xbf16>
    %c52 = arith.constant 52 : index
    %c0_26 = arith.constant 0 : index
    %30 = vector.load %arg20[%c52, %c0_26] : memref<144x256xbf16, #tpu.memory_space<vmem>>, vector<12x256xbf16>
    tpu.vector_store %arg20[%c52, %c0_26], %29 {strides = array<i32>} : memref<144x256xbf16, #tpu.memory_space<vmem>>, vector<12x256xbf16>,
    %c0_27 = arith.constant 0 : index
    %c128_28 = arith.constant 128 : index
    %31 = vector.load %arg19[%c0_27, %c128_28] : memref<4x512xbf16, #tpu.memory_space<vmem>>, vector<4x256xbf16>
    %c64 = arith.constant 64 : index
    %c0_29 = arith.constant 0 : index
    %32 = vector.load %arg20[%c64, %c0_29] : memref<144x256xbf16, #tpu.memory_space<vmem>>, vector<4x256xbf16>
    tpu.vector_store %arg20[%c64, %c0_29], %31 {strides = array<i32>} : memref<144x256xbf16, #tpu.memory_space<vmem>>, vector<4x256xbf16>,
    %cst_30 = arith.constant 0.000000e+00 : bf16
    %33 = vector.broadcast %cst_30 : bf16 to vector<12x256xbf16>
    %c68 = arith.constant 68 : index
    %c0_31 = arith.constant 0 : index
    %34 = vector.load %arg20[%c68, %c0_31] : memref<144x256xbf16, #tpu.memory_space<vmem>>, vector<12x256xbf16>
    tpu.vector_store %arg20[%c68, %c0_31], %33 {strides = array<i32>} : memref<144x256xbf16, #tpu.memory_space<vmem>>, vector<12x256xbf16>,
    %c0_32 = arith.constant 0 : index
    %c129 = arith.constant 129 : index
    %35 = vector.load %arg19[%c0_32, %c129] : memref<4x512xbf16, #tpu.memory_space<vmem>>, vector<4x256xbf16>
    %36 = vector.broadcast %5 : vector<1x256xbf16> to vector<4x256xbf16>
    %37 = arith.mulf %35, %36 : vector<4x256xbf16>
    %c80 = arith.constant 80 : index
    %c0_33 = arith.constant 0 : index
    %38 = vector.load %arg20[%c80, %c0_33] : memref<144x256xbf16, #tpu.memory_space<vmem>>, vector<4x256xbf16>
    tpu.vector_store %arg20[%c80, %c0_33], %37 {strides = array<i32>} : memref<144x256xbf16, #tpu.memory_space<vmem>>, vector<4x256xbf16>,
    %cst_34 = arith.constant 0.000000e+00 : bf16
    %39 = vector.broadcast %cst_34 : bf16 to vector<12x256xbf16>
    %c84 = arith.constant 84 : index
    %c0_35 = arith.constant 0 : index
    %40 = vector.load %arg20[%c84, %c0_35] : memref<144x256xbf16, #tpu.memory_space<vmem>>, vector<12x256xbf16>
    tpu.vector_store %arg20[%c84, %c0_35], %39 {strides = array<i32>} : memref<144x256xbf16, #tpu.memory_space<vmem>>, vector<12x256xbf16>,
    %c0_36 = arith.constant 0 : index
    %c143 = arith.constant 143 : index
    %41 = vector.load %arg19[%c0_36, %c143] : memref<4x512xbf16, #tpu.memory_space<vmem>>, vector<4x256xbf16>
    %42 = vector.broadcast %4 : vector<1x256xbf16> to vector<4x256xbf16>
    %43 = arith.mulf %41, %42 : vector<4x256xbf16>
    %c96 = arith.constant 96 : index
    %c0_37 = arith.constant 0 : index
    %44 = vector.load %arg20[%c96, %c0_37] : memref<144x256xbf16, #tpu.memory_space<vmem>>, vector<4x256xbf16>
    tpu.vector_store %arg20[%c96, %c0_37], %43 {strides = array<i32>} : memref<144x256xbf16, #tpu.memory_space<vmem>>, vector<4x256xbf16>,
    %cst_38 = arith.constant 0.000000e+00 : bf16
    %45 = vector.broadcast %cst_38 : bf16 to vector<12x256xbf16>
    %c100 = arith.constant 100 : index
    %c0_39 = arith.constant 0 : index
    %46 = vector.load %arg20[%c100, %c0_39] : memref<144x256xbf16, #tpu.memory_space<vmem>>, vector<12x256xbf16>
    tpu.vector_store %arg20[%c100, %c0_39], %45 {strides = array<i32>} : memref<144x256xbf16, #tpu.memory_space<vmem>>, vector<12x256xbf16>,
    %c0_40 = arith.constant 0 : index
    %c144 = arith.constant 144 : index
    %47 = vector.load %arg19[%c0_40, %c144] : memref<4x512xbf16, #tpu.memory_space<vmem>>, vector<4x256xbf16>
    %c112_41 = arith.constant 112 : index
    %c0_42 = arith.constant 0 : index
    %48 = vector.load %arg20[%c112_41, %c0_42] : memref<144x256xbf16, #tpu.memory_space<vmem>>, vector<4x256xbf16>
    tpu.vector_store %arg20[%c112_41, %c0_42], %47 {strides = array<i32>} : memref<144x256xbf16, #tpu.memory_space<vmem>>, vector<4x256xbf16>,
    %cst_43 = arith.constant 0.000000e+00 : bf16
    %49 = vector.broadcast %cst_43 : bf16 to vector<12x256xbf16>
    %c116 = arith.constant 116 : index
    %c0_44 = arith.constant 0 : index
    %50 = vector.load %arg20[%c116, %c0_44] : memref<144x256xbf16, #tpu.memory_space<vmem>>, vector<12x256xbf16>
    tpu.vector_store %arg20[%c116, %c0_44], %49 {strides = array<i32>} : memref<144x256xbf16, #tpu.memory_space<vmem>>, vector<12x256xbf16>,
    %c0_45 = arith.constant 0 : index
    %c145 = arith.constant 145 : index
    %51 = vector.load %arg19[%c0_45, %c145] : memref<4x512xbf16, #tpu.memory_space<vmem>>, vector<4x256xbf16>
    %52 = vector.broadcast %5 : vector<1x256xbf16> to vector<4x256xbf16>
    %53 = arith.mulf %51, %52 : vector<4x256xbf16>
    %c128_46 = arith.constant 128 : index
    %c0_47 = arith.constant 0 : index
    %54 = vector.load %arg20[%c128_46, %c0_47] : memref<144x256xbf16, #tpu.memory_space<vmem>>, vector<4x256xbf16>
    tpu.vector_store %arg20[%c128_46, %c0_47], %53 {strides = array<i32>} : memref<144x256xbf16, #tpu.memory_space<vmem>>, vector<4x256xbf16>,
    %cst_48 = arith.constant 0.000000e+00 : bf16
    %55 = vector.broadcast %cst_48 : bf16 to vector<12x256xbf16>
    %c132 = arith.constant 132 : index
    %c0_49 = arith.constant 0 : index
    %56 = vector.load %arg20[%c132, %c0_49] : memref<144x256xbf16, #tpu.memory_space<vmem>>, vector<12x256xbf16>
    tpu.vector_store %arg20[%c132, %c0_49], %55 {strides = array<i32>} : memref<144x256xbf16, #tpu.memory_space<vmem>>, vector<12x256xbf16>,
    %c0_50 = arith.constant 0 : index
    %c0_51 = arith.constant 0 : index
    %57 = vector.load %arg4[%c0_50, %c0_51] : memref<4x144xbf16, #tpu.memory_space<vmem>>, vector<4x144xbf16>
    %c0_52 = arith.constant 0 : index
    %c0_53 = arith.constant 0 : index
    %58 = vector.load %arg20[%c0_52, %c0_53] : memref<144x256xbf16, #tpu.memory_space<vmem>>, vector<144x256xbf16>
    %cst_54 = arith.constant dense<0.000000e+00> : vector<4x256xf32>
    %59 = tpu.matmul %57, %58, %cst_54 {dimension_numbers = #tpu.dot_dimension_numbers<[1], [0], [0], [1], [0, 0, 1, 1], [], []>} : vector<4x144xbf16>, vector<144x256xbf16>, vector<4x256xf32> -> vector<4x256xf32>
    %60 = vector.shape_cast %59 : vector<4x256xf32> to vector<1x4x256xf32>
    %cst_55 = arith.constant dense<0.000000e+00> : vector<1xf32>
    %61 = vector.multi_reduction <add>, %60, %cst_55 [1, 2] : vector<1x4x256xf32> to vector<1xf32>
    %62 = vector.shape_cast %61 : vector<1xf32> to vector<1x1x1xf32>
    %63 = vector.extract %62[0, 0, 0] : f32 from vector<1x1x1xf32>
    %cst_56 = arith.constant 1.024000e+03 : f32
    %64 = arith.divf %63, %cst_56 : f32
    %65 = vector.broadcast %64 : f32 to vector<4x256xf32>
    %66 = arith.subf %59, %65 : vector<4x256xf32>
    %67 = arith.mulf %66, %66 : vector<4x256xf32>
    %68 = vector.shape_cast %67 : vector<4x256xf32> to vector<1x4x256xf32>
    %cst_57 = arith.constant dense<0.000000e+00> : vector<1xf32>
    %69 = vector.multi_reduction <add>, %68, %cst_57 [1, 2] : vector<1x4x256xf32> to vector<1xf32>
    %70 = vector.shape_cast %69 : vector<1xf32> to vector<1x1x1xf32>
    %71 = vector.extract %70[0, 0, 0] : f32 from vector<1x1x1xf32>
    %cst_58 = arith.constant 1.024000e+03 : f32
    %72 = arith.divf %71, %cst_58 : f32
    %cst_59 = arith.constant 9.99999974E-6 : f32
    %73 = arith.addf %72, %cst_59 : f32
    %74 = math.rsqrt %73 : f32
    %75 = vector.broadcast %74 : f32 to vector<4x256xf32>
    %76 = arith.mulf %66, %75 : vector<4x256xf32>
    %c0_60 = arith.constant 0 : index
    %c0_61 = arith.constant 0 : index
    %77 = vector.load %arg5[%c0_60, %c0_61] : memref<4x1xf32, #tpu.memory_space<vmem>>, vector<4x1xf32>
    %78 = vector.broadcast %77 : vector<4x1xf32> to vector<4x256xf32>
    %79 = arith.mulf %76, %78 : vector<4x256xf32>
    %c0_62 = arith.constant 0 : index
    %c0_63 = arith.constant 0 : index
    %80 = vector.load %arg6[%c0_62, %c0_63] : memref<4x1xf32, #tpu.memory_space<vmem>>, vector<4x1xf32>
    %81 = vector.broadcast %80 : vector<4x1xf32> to vector<4x256xf32>
    %82 = arith.addf %79, %81 : vector<4x256xf32>
    %cst_64 = arith.constant 5.000000e-01 : f32
    %83 = vector.broadcast %cst_64 : f32 to vector<4x256xf32>
    %84 = arith.mulf %83, %82 : vector<4x256xf32>
    %cst_65 = arith.constant 0.707106769 : f32
    %85 = vector.broadcast %cst_65 : f32 to vector<4x256xf32>
    %86 = arith.mulf %82, %85 : vector<4x256xf32>
    %87 = math.erf %86 : vector<4x256xf32>
    %cst_66 = arith.constant 1.000000e+00 : f32
    %88 = vector.broadcast %cst_66 : f32 to vector<4x256xf32>
    %89 = arith.addf %88, %87 : vector<4x256xf32>
    %90 = arith.mulf %84, %89 : vector<4x256xf32>
    %91 = arith.truncf %90 : vector<4x256xf32> to vector<4x256xbf16>
    %c0_67 = arith.constant 0 : index
    %c128_68 = arith.constant 128 : index
    %92 = vector.load %arg19[%c0_67, %c128_68] : memref<4x512xbf16, #tpu.memory_space<vmem>>, vector<4x256xbf16>
    tpu.vector_store %arg19[%c0_67, %c128_68], %91 {strides = array<i32>} : memref<4x512xbf16, #tpu.memory_space<vmem>>, vector<4x256xbf16>,
    %c0_69 = arith.constant 0 : index
    %c111_70 = arith.constant 111 : index
    %93 = vector.load %arg19[%c0_69, %c111_70] : memref<4x512xbf16, #tpu.memory_space<vmem>>, vector<4x256xbf16>
    %94 = vector.broadcast %4 : vector<1x256xbf16> to vector<4x256xbf16>
    %95 = arith.mulf %93, %94 : vector<4x256xbf16>
    %c0_71 = arith.constant 0 : index
    %c0_72 = arith.constant 0 : index
    %96 = vector.load %arg20[%c0_71, %c0_72] : memref<144x256xbf16, #tpu.memory_space<vmem>>, vector<4x256xbf16>
    tpu.vector_store %arg20[%c0_71, %c0_72], %95 {strides = array<i32>} : memref<144x256xbf16, #tpu.memory_space<vmem>>, vector<4x256xbf16>,
    %cst_73 = arith.constant 0.000000e+00 : bf16
    %97 = vector.broadcast %cst_73 : bf16 to vector<12x256xbf16>
    %c4_74 = arith.constant 4 : index
    %c0_75 = arith.constant 0 : index
    %98 = vector.load %arg20[%c4_74, %c0_75] : memref<144x256xbf16, #tpu.memory_space<vmem>>, vector<12x256xbf16>
    tpu.vector_store %arg20[%c4_74, %c0_75], %97 {strides = array<i32>} : memref<144x256xbf16, #tpu.memory_space<vmem>>, vector<12x256xbf16>,
    %c0_76 = arith.constant 0 : index
    %c112_77 = arith.constant 112 : index
    %99 = vector.load %arg19[%c0_76, %c112_77] : memref<4x512xbf16, #tpu.memory_space<vmem>>, vector<4x256xbf16>
    %c16_78 = arith.constant 16 : index
    %c0_79 = arith.constant 0 : index
    %100 = vector.load %arg20[%c16_78, %c0_79] : memref<144x256xbf16, #tpu.memory_space<vmem>>, vector<4x256xbf16>
    tpu.vector_store %arg20[%c16_78, %c0_79], %99 {strides = array<i32>} : memref<144x256xbf16, #tpu.memory_space<vmem>>, vector<4x256xbf16>,
    %cst_80 = arith.constant 0.000000e+00 : bf16
    %101 = vector.broadcast %cst_80 : bf16 to vector<12x256xbf16>
    %c20_81 = arith.constant 20 : index
    %c0_82 = arith.constant 0 : index
    %102 = vector.load %arg20[%c20_81, %c0_82] : memref<144x256xbf16, #tpu.memory_space<vmem>>, vector<12x256xbf16>
    tpu.vector_store %arg20[%c20_81, %c0_82], %101 {strides = array<i32>} : memref<144x256xbf16, #tpu.memory_space<vmem>>, vector<12x256xbf16>,
    %c0_83 = arith.constant 0 : index
    %c113_84 = arith.constant 113 : index
    %103 = vector.load %arg19[%c0_83, %c113_84] : memref<4x512xbf16, #tpu.memory_space<vmem>>, vector<4x256xbf16>
    %104 = vector.broadcast %5 : vector<1x256xbf16> to vector<4x256xbf16>
    %105 = arith.mulf %103, %104 : vector<4x256xbf16>
    %c32_85 = arith.constant 32 : index
    %c0_86 = arith.constant 0 : index
    %106 = vector.load %arg20[%c32_85, %c0_86] : memref<144x256xbf16, #tpu.memory_space<vmem>>, vector<4x256xbf16>
    tpu.vector_store %arg20[%c32_85, %c0_86], %105 {strides = array<i32>} : memref<144x256xbf16, #tpu.memory_space<vmem>>, vector<4x256xbf16>,
    %cst_87 = arith.constant 0.000000e+00 : bf16
    %107 = vector.broadcast %cst_87 : bf16 to vector<12x256xbf16>
    %c36_88 = arith.constant 36 : index
    %c0_89 = arith.constant 0 : index
    %108 = vector.load %arg20[%c36_88, %c0_89] : memref<144x256xbf16, #tpu.memory_space<vmem>>, vector<12x256xbf16>
    tpu.vector_store %arg20[%c36_88, %c0_89], %107 {strides = array<i32>} : memref<144x256xbf16, #tpu.memory_space<vmem>>, vector<12x256xbf16>,
    %c0_90 = arith.constant 0 : index
    %c127_91 = arith.constant 127 : index
    %109 = vector.load %arg19[%c0_90, %c127_91] : memref<4x512xbf16, #tpu.memory_space<vmem>>, vector<4x256xbf16>
    %110 = vector.broadcast %4 : vector<1x256xbf16> to vector<4x256xbf16>
    %111 = arith.mulf %109, %110 : vector<4x256xbf16>
    %c48_92 = arith.constant 48 : index
    %c0_93 = arith.constant 0 : index
    %112 = vector.load %arg20[%c48_92, %c0_93] : memref<144x256xbf16, #tpu.memory_space<vmem>>, vector<4x256xbf16>
    tpu.vector_store %arg20[%c48_92, %c0_93], %111 {strides = array<i32>} : memref<144x256xbf16, #tpu.memory_space<vmem>>, vector<4x256xbf16>,
    %cst_94 = arith.constant 0.000000e+00 : bf16
    %113 = vector.broadcast %cst_94 : bf16 to vector<12x256xbf16>
    %c52_95 = arith.constant 52 : index
    %c0_96 = arith.constant 0 : index
    %114 = vector.load %arg20[%c52_95, %c0_96] : memref<144x256xbf16, #tpu.memory_space<vmem>>, vector<12x256xbf16>
    tpu.vector_store %arg20[%c52_95, %c0_96], %113 {strides = array<i32>} : memref<144x256xbf16, #tpu.memory_space<vmem>>, vector<12x256xbf16>,
    %c0_97 = arith.constant 0 : index
    %c128_98 = arith.constant 128 : index
    %115 = vector.load %arg19[%c0_97, %c128_98] : memref<4x512xbf16, #tpu.memory_space<vmem>>, vector<4x256xbf16>
    %c64_99 = arith.constant 64 : index
    %c0_100 = arith.constant 0 : index
    %116 = vector.load %arg20[%c64_99, %c0_100] : memref<144x256xbf16, #tpu.memory_space<vmem>>, vector<4x256xbf16>
    tpu.vector_store %arg20[%c64_99, %c0_100], %115 {strides = array<i32>} : memref<144x256xbf16, #tpu.memory_space<vmem>>, vector<4x256xbf16>,
    %cst_101 = arith.constant 0.000000e+00 : bf16
    %117 = vector.broadcast %cst_101 : bf16 to vector<12x256xbf16>
    %c68_102 = arith.constant 68 : index
    %c0_103 = arith.constant 0 : index
    %118 = vector.load %arg20[%c68_102, %c0_103] : memref<144x256xbf16, #tpu.memory_space<vmem>>, vector<12x256xbf16>
    tpu.vector_store %arg20[%c68_102, %c0_103], %117 {strides = array<i32>} : memref<144x256xbf16, #tpu.memory_space<vmem>>, vector<12x256xbf16>,
    %c0_104 = arith.constant 0 : index
    %c129_105 = arith.constant 129 : index
    %119 = vector.load %arg19[%c0_104, %c129_105] : memref<4x512xbf16, #tpu.memory_space<vmem>>, vector<4x256xbf16>
    %120 = vector.broadcast %5 : vector<1x256xbf16> to vector<4x256xbf16>
    %121 = arith.mulf %119, %120 : vector<4x256xbf16>
    %c80_106 = arith.constant 80 : index
    %c0_107 = arith.constant 0 : index
    %122 = vector.load %arg20[%c80_106, %c0_107] : memref<144x256xbf16, #tpu.memory_space<vmem>>, vector<4x256xbf16>
    tpu.vector_store %arg20[%c80_106, %c0_107], %121 {strides = array<i32>} : memref<144x256xbf16, #tpu.memory_space<vmem>>, vector<4x256xbf16>,
    %cst_108 = arith.constant 0.000000e+00 : bf16
    %123 = vector.broadcast %cst_108 : bf16 to vector<12x256xbf16>
    %c84_109 = arith.constant 84 : index
    %c0_110 = arith.constant 0 : index
    %124 = vector.load %arg20[%c84_109, %c0_110] : memref<144x256xbf16, #tpu.memory_space<vmem>>, vector<12x256xbf16>
    tpu.vector_store %arg20[%c84_109, %c0_110], %123 {strides = array<i32>} : memref<144x256xbf16, #tpu.memory_space<vmem>>, vector<12x256xbf16>,
    %c0_111 = arith.constant 0 : index
    %c143_112 = arith.constant 143 : index
    %125 = vector.load %arg19[%c0_111, %c143_112] : memref<4x512xbf16, #tpu.memory_space<vmem>>, vector<4x256xbf16>
    %126 = vector.broadcast %4 : vector<1x256xbf16> to vector<4x256xbf16>
    %127 = arith.mulf %125, %126 : vector<4x256xbf16>
    %c96_113 = arith.constant 96 : index
    %c0_114 = arith.constant 0 : index
    %128 = vector.load %arg20[%c96_113, %c0_114] : memref<144x256xbf16, #tpu.memory_space<vmem>>, vector<4x256xbf16>
    tpu.vector_store %arg20[%c96_113, %c0_114], %127 {strides = array<i32>} : memref<144x256xbf16, #tpu.memory_space<vmem>>, vector<4x256xbf16>,
    %cst_115 = arith.constant 0.000000e+00 : bf16
    %129 = vector.broadcast %cst_115 : bf16 to vector<12x256xbf16>
    %c100_116 = arith.constant 100 : index
    %c0_117 = arith.constant 0 : index
    %130 = vector.load %arg20[%c100_116, %c0_117] : memref<144x256xbf16, #tpu.memory_space<vmem>>, vector<12x256xbf16>
    tpu.vector_store %arg20[%c100_116, %c0_117], %129 {strides = array<i32>} : memref<144x256xbf16, #tpu.memory_space<vmem>>, vector<12x256xbf16>,
    %c0_118 = arith.constant 0 : index
    %c144_119 = arith.constant 144 : index
    %131 = vector.load %arg19[%c0_118, %c144_119] : memref<4x512xbf16, #tpu.memory_space<vmem>>, vector<4x256xbf16>
    %c112_120 = arith.constant 112 : index
    %c0_121 = arith.constant 0 : index
    %132 = vector.load %arg20[%c112_120, %c0_121] : memref<144x256xbf16, #tpu.memory_space<vmem>>, vector<4x256xbf16>
    tpu.vector_store %arg20[%c112_120, %c0_121], %131 {strides = array<i32>} : memref<144x256xbf16, #tpu.memory_space<vmem>>, vector<4x256xbf16>,
    %cst_122 = arith.constant 0.000000e+00 : bf16
    %133 = vector.broadcast %cst_122 : bf16 to vector<12x256xbf16>
    %c116_123 = arith.constant 116 : index
    %c0_124 = arith.constant 0 : index
    %134 = vector.load %arg20[%c116_123, %c0_124] : memref<144x256xbf16, #tpu.memory_space<vmem>>, vector<12x256xbf16>
    tpu.vector_store %arg20[%c116_123, %c0_124], %133 {strides = array<i32>} : memref<144x256xbf16, #tpu.memory_space<vmem>>, vector<12x256xbf16>,
    %c0_125 = arith.constant 0 : index
    %c145_126 = arith.constant 145 : index
    %135 = vector.load %arg19[%c0_125, %c145_126] : memref<4x512xbf16, #tpu.memory_space<vmem>>, vector<4x256xbf16>
    %136 = vector.broadcast %5 : vector<1x256xbf16> to vector<4x256xbf16>
    %137 = arith.mulf %135, %136 : vector<4x256xbf16>
    %c128_127 = arith.constant 128 : index
    %c0_128 = arith.constant 0 : index
    %138 = vector.load %arg20[%c128_127, %c0_128] : memref<144x256xbf16, #tpu.memory_space<vmem>>, vector<4x256xbf16>
    tpu.vector_store %arg20[%c128_127, %c0_128], %137 {strides = array<i32>} : memref<144x256xbf16, #tpu.memory_space<vmem>>, vector<4x256xbf16>,
    %cst_129 = arith.constant 0.000000e+00 : bf16
    %139 = vector.broadcast %cst_129 : bf16 to vector<12x256xbf16>
    %c132_130 = arith.constant 132 : index
    %c0_131 = arith.constant 0 : index
    %140 = vector.load %arg20[%c132_130, %c0_131] : memref<144x256xbf16, #tpu.memory_space<vmem>>, vector<12x256xbf16>
    tpu.vector_store %arg20[%c132_130, %c0_131], %139 {strides = array<i32>} : memref<144x256xbf16, #tpu.memory_space<vmem>>, vector<12x256xbf16>,
    %c0_132 = arith.constant 0 : index
    %c0_133 = arith.constant 0 : index
    %141 = vector.load %arg7[%c0_132, %c0_133] : memref<4x144xbf16, #tpu.memory_space<vmem>>, vector<4x144xbf16>
    %c0_134 = arith.constant 0 : index
    %c0_135 = arith.constant 0 : index
    %142 = vector.load %arg20[%c0_134, %c0_135] : memref<144x256xbf16, #tpu.memory_space<vmem>>, vector<144x256xbf16>
    %cst_136 = arith.constant dense<0.000000e+00> : vector<4x256xf32>
    %143 = tpu.matmul %141, %142, %cst_136 {dimension_numbers = #tpu.dot_dimension_numbers<[1], [0], [0], [1], [0, 0, 1, 1], [], []>} : vector<4x144xbf16>, vector<144x256xbf16>, vector<4x256xf32> -> vector<4x256xf32>
    %144 = vector.shape_cast %143 : vector<4x256xf32> to vector<1x4x256xf32>
    %cst_137 = arith.constant dense<0.000000e+00> : vector<1xf32>
    %145 = vector.multi_reduction <add>, %144, %cst_137 [1, 2] : vector<1x4x256xf32> to vector<1xf32>
    %146 = vector.shape_cast %145 : vector<1xf32> to vector<1x1x1xf32>
    %147 = vector.extract %146[0, 0, 0] : f32 from vector<1x1x1xf32>
    %cst_138 = arith.constant 1.024000e+03 : f32
    %148 = arith.divf %147, %cst_138 : f32
    %149 = vector.broadcast %148 : f32 to vector<4x256xf32>
    %150 = arith.subf %143, %149 : vector<4x256xf32>
    %151 = arith.mulf %150, %150 : vector<4x256xf32>
    %152 = vector.shape_cast %151 : vector<4x256xf32> to vector<1x4x256xf32>
    %cst_139 = arith.constant dense<0.000000e+00> : vector<1xf32>
    %153 = vector.multi_reduction <add>, %152, %cst_139 [1, 2] : vector<1x4x256xf32> to vector<1xf32>
    %154 = vector.shape_cast %153 : vector<1xf32> to vector<1x1x1xf32>
    %155 = vector.extract %154[0, 0, 0] : f32 from vector<1x1x1xf32>
    %cst_140 = arith.constant 1.024000e+03 : f32
    %156 = arith.divf %155, %cst_140 : f32
    %cst_141 = arith.constant 9.99999974E-6 : f32
    %157 = arith.addf %156, %cst_141 : f32
    %158 = math.rsqrt %157 : f32
    %159 = vector.broadcast %158 : f32 to vector<4x256xf32>
    %160 = arith.mulf %150, %159 : vector<4x256xf32>
    %c0_142 = arith.constant 0 : index
    %c0_143 = arith.constant 0 : index
    %161 = vector.load %arg8[%c0_142, %c0_143] : memref<4x1xf32, #tpu.memory_space<vmem>>, vector<4x1xf32>
    %162 = vector.broadcast %161 : vector<4x1xf32> to vector<4x256xf32>
    %163 = arith.mulf %160, %162 : vector<4x256xf32>
    %c0_144 = arith.constant 0 : index
    %c0_145 = arith.constant 0 : index
    %164 = vector.load %arg9[%c0_144, %c0_145] : memref<4x1xf32, #tpu.memory_space<vmem>>, vector<4x1xf32>
    %165 = vector.broadcast %164 : vector<4x1xf32> to vector<4x256xf32>
    %166 = arith.addf %163, %165 : vector<4x256xf32>
    %c0_146 = arith.constant 0 : index
    %c0_147 = arith.constant 0 : index
    %c0_148 = arith.constant 0 : index
    %167 = vector.load %arg1[%c0_146, %c0_147, %c0_148] : memref<1x4x256xbf16, #tpu.memory_space<vmem>>, vector<1x4x256xbf16>
    %168 = vector.shape_cast %167 : vector<1x4x256xbf16> to vector<4x256xbf16>
    %169 = arith.extf %168 : vector<4x256xbf16> to vector<4x256xf32>
    %170 = arith.addf %169, %166 : vector<4x256xf32>
    %cst_149 = arith.constant 5.000000e-01 : f32
    %171 = vector.broadcast %cst_149 : f32 to vector<4x256xf32>
    %172 = arith.mulf %171, %170 : vector<4x256xf32>
    %cst_150 = arith.constant 0.707106769 : f32
    %173 = vector.broadcast %cst_150 : f32 to vector<4x256xf32>
    %174 = arith.mulf %170, %173 : vector<4x256xf32>
    %175 = math.erf %174 : vector<4x256xf32>
    %cst_151 = arith.constant 1.000000e+00 : f32
    %176 = vector.broadcast %cst_151 : f32 to vector<4x256xf32>
    %177 = arith.addf %176, %175 : vector<4x256xf32>
    %178 = arith.mulf %172, %177 : vector<4x256xf32>
    %179 = arith.truncf %178 : vector<4x256xf32> to vector<4x256xbf16>
    %c0_152 = arith.constant 0 : index
    %c128_153 = arith.constant 128 : index
    %180 = vector.load %arg19[%c0_152, %c128_153] : memref<4x512xbf16, #tpu.memory_space<vmem>>, vector<4x256xbf16>
    tpu.vector_store %arg19[%c0_152, %c128_153], %179 {strides = array<i32>} : memref<4x512xbf16, #tpu.memory_space<vmem>>, vector<4x256xbf16>,
    %c0_154 = arith.constant 0 : index
    %c111_155 = arith.constant 111 : index
    %181 = vector.load %arg19[%c0_154, %c111_155] : memref<4x512xbf16, #tpu.memory_space<vmem>>, vector<4x256xbf16>
    %182 = vector.broadcast %4 : vector<1x256xbf16> to vector<4x256xbf16>
    %183 = arith.mulf %181, %182 : vector<4x256xbf16>
    %c0_156 = arith.constant 0 : index
    %c0_157 = arith.constant 0 : index
    %184 = vector.load %arg20[%c0_156, %c0_157] : memref<144x256xbf16, #tpu.memory_space<vmem>>, vector<4x256xbf16>
    tpu.vector_store %arg20[%c0_156, %c0_157], %183 {strides = array<i32>} : memref<144x256xbf16, #tpu.memory_space<vmem>>, vector<4x256xbf16>,
    %cst_158 = arith.constant 0.000000e+00 : bf16
    %185 = vector.broadcast %cst_158 : bf16 to vector<12x256xbf16>
    %c4_159 = arith.constant 4 : index
    %c0_160 = arith.constant 0 : index
    %186 = vector.load %arg20[%c4_159, %c0_160] : memref<144x256xbf16, #tpu.memory_space<vmem>>, vector<12x256xbf16>
    tpu.vector_store %arg20[%c4_159, %c0_160], %185 {strides = array<i32>} : memref<144x256xbf16, #tpu.memory_space<vmem>>, vector<12x256xbf16>,
    %c0_161 = arith.constant 0 : index
    %c112_162 = arith.constant 112 : index
    %187 = vector.load %arg19[%c0_161, %c112_162] : memref<4x512xbf16, #tpu.memory_space<vmem>>, vector<4x256xbf16>
    %c16_163 = arith.constant 16 : index
    %c0_164 = arith.constant 0 : index
    %188 = vector.load %arg20[%c16_163, %c0_164] : memref<144x256xbf16, #tpu.memory_space<vmem>>, vector<4x256xbf16>
    tpu.vector_store %arg20[%c16_163, %c0_164], %187 {strides = array<i32>} : memref<144x256xbf16, #tpu.memory_space<vmem>>, vector<4x256xbf16>,
    %cst_165 = arith.constant 0.000000e+00 : bf16
    %189 = vector.broadcast %cst_165 : bf16 to vector<12x256xbf16>
    %c20_166 = arith.constant 20 : index
    %c0_167 = arith.constant 0 : index
    %190 = vector.load %arg20[%c20_166, %c0_167] : memref<144x256xbf16, #tpu.memory_space<vmem>>, vector<12x256xbf16>
    tpu.vector_store %arg20[%c20_166, %c0_167], %189 {strides = array<i32>} : memref<144x256xbf16, #tpu.memory_space<vmem>>, vector<12x256xbf16>,
    %c0_168 = arith.constant 0 : index
    %c113_169 = arith.constant 113 : index
    %191 = vector.load %arg19[%c0_168, %c113_169] : memref<4x512xbf16, #tpu.memory_space<vmem>>, vector<4x256xbf16>
    %192 = vector.broadcast %5 : vector<1x256xbf16> to vector<4x256xbf16>
    %193 = arith.mulf %191, %192 : vector<4x256xbf16>
    %c32_170 = arith.constant 32 : index
    %c0_171 = arith.constant 0 : index
    %194 = vector.load %arg20[%c32_170, %c0_171] : memref<144x256xbf16, #tpu.memory_space<vmem>>, vector<4x256xbf16>
    tpu.vector_store %arg20[%c32_170, %c0_171], %193 {strides = array<i32>} : memref<144x256xbf16, #tpu.memory_space<vmem>>, vector<4x256xbf16>,
    %cst_172 = arith.constant 0.000000e+00 : bf16
    %195 = vector.broadcast %cst_172 : bf16 to vector<12x256xbf16>
    %c36_173 = arith.constant 36 : index
    %c0_174 = arith.constant 0 : index
    %196 = vector.load %arg20[%c36_173, %c0_174] : memref<144x256xbf16, #tpu.memory_space<vmem>>, vector<12x256xbf16>
    tpu.vector_store %arg20[%c36_173, %c0_174], %195 {strides = array<i32>} : memref<144x256xbf16, #tpu.memory_space<vmem>>, vector<12x256xbf16>,
    %c0_175 = arith.constant 0 : index
    %c127_176 = arith.constant 127 : index
    %197 = vector.load %arg19[%c0_175, %c127_176] : memref<4x512xbf16, #tpu.memory_space<vmem>>, vector<4x256xbf16>
    %198 = vector.broadcast %4 : vector<1x256xbf16> to vector<4x256xbf16>
    %199 = arith.mulf %197, %198 : vector<4x256xbf16>
    %c48_177 = arith.constant 48 : index
    %c0_178 = arith.constant 0 : index
    %200 = vector.load %arg20[%c48_177, %c0_178] : memref<144x256xbf16, #tpu.memory_space<vmem>>, vector<4x256xbf16>
    tpu.vector_store %arg20[%c48_177, %c0_178], %199 {strides = array<i32>} : memref<144x256xbf16, #tpu.memory_space<vmem>>, vector<4x256xbf16>,
    %cst_179 = arith.constant 0.000000e+00 : bf16
    %201 = vector.broadcast %cst_179 : bf16 to vector<12x256xbf16>
    %c52_180 = arith.constant 52 : index
    %c0_181 = arith.constant 0 : index
    %202 = vector.load %arg20[%c52_180, %c0_181] : memref<144x256xbf16, #tpu.memory_space<vmem>>, vector<12x256xbf16>
    tpu.vector_store %arg20[%c52_180, %c0_181], %201 {strides = array<i32>} : memref<144x256xbf16, #tpu.memory_space<vmem>>, vector<12x256xbf16>,
    %c0_182 = arith.constant 0 : index
    %c128_183 = arith.constant 128 : index
    %203 = vector.load %arg19[%c0_182, %c128_183] : memref<4x512xbf16, #tpu.memory_space<vmem>>, vector<4x256xbf16>
    %c64_184 = arith.constant 64 : index
    %c0_185 = arith.constant 0 : index
    %204 = vector.load %arg20[%c64_184, %c0_185] : memref<144x256xbf16, #tpu.memory_space<vmem>>, vector<4x256xbf16>
    tpu.vector_store %arg20[%c64_184, %c0_185], %203 {strides = array<i32>} : memref<144x256xbf16, #tpu.memory_space<vmem>>, vector<4x256xbf16>,
    %cst_186 = arith.constant 0.000000e+00 : bf16
    %205 = vector.broadcast %cst_186 : bf16 to vector<12x256xbf16>
    %c68_187 = arith.constant 68 : index
    %c0_188 = arith.constant 0 : index
    %206 = vector.load %arg20[%c68_187, %c0_188] : memref<144x256xbf16, #tpu.memory_space<vmem>>, vector<12x256xbf16>
    tpu.vector_store %arg20[%c68_187, %c0_188], %205 {strides = array<i32>} : memref<144x256xbf16, #tpu.memory_space<vmem>>, vector<12x256xbf16>,
    %c0_189 = arith.constant 0 : index
    %c129_190 = arith.constant 129 : index
    %207 = vector.load %arg19[%c0_189, %c129_190] : memref<4x512xbf16, #tpu.memory_space<vmem>>, vector<4x256xbf16>
    %208 = vector.broadcast %5 : vector<1x256xbf16> to vector<4x256xbf16>
    %209 = arith.mulf %207, %208 : vector<4x256xbf16>
    %c80_191 = arith.constant 80 : index
    %c0_192 = arith.constant 0 : index
    %210 = vector.load %arg20[%c80_191, %c0_192] : memref<144x256xbf16, #tpu.memory_space<vmem>>, vector<4x256xbf16>
    tpu.vector_store %arg20[%c80_191, %c0_192], %209 {strides = array<i32>} : memref<144x256xbf16, #tpu.memory_space<vmem>>, vector<4x256xbf16>,
    %cst_193 = arith.constant 0.000000e+00 : bf16
    %211 = vector.broadcast %cst_193 : bf16 to vector<12x256xbf16>
    %c84_194 = arith.constant 84 : index
    %c0_195 = arith.constant 0 : index
    %212 = vector.load %arg20[%c84_194, %c0_195] : memref<144x256xbf16, #tpu.memory_space<vmem>>, vector<12x256xbf16>
    tpu.vector_store %arg20[%c84_194, %c0_195], %211 {strides = array<i32>} : memref<144x256xbf16, #tpu.memory_space<vmem>>, vector<12x256xbf16>,
    %c0_196 = arith.constant 0 : index
    %c143_197 = arith.constant 143 : index
    %213 = vector.load %arg19[%c0_196, %c143_197] : memref<4x512xbf16, #tpu.memory_space<vmem>>, vector<4x256xbf16>
    %214 = vector.broadcast %4 : vector<1x256xbf16> to vector<4x256xbf16>
    %215 = arith.mulf %213, %214 : vector<4x256xbf16>
    %c96_198 = arith.constant 96 : index
    %c0_199 = arith.constant 0 : index
    %216 = vector.load %arg20[%c96_198, %c0_199] : memref<144x256xbf16, #tpu.memory_space<vmem>>, vector<4x256xbf16>
    tpu.vector_store %arg20[%c96_198, %c0_199], %215 {strides = array<i32>} : memref<144x256xbf16, #tpu.memory_space<vmem>>, vector<4x256xbf16>,
    %cst_200 = arith.constant 0.000000e+00 : bf16
    %217 = vector.broadcast %cst_200 : bf16 to vector<12x256xbf16>
    %c100_201 = arith.constant 100 : index
    %c0_202 = arith.constant 0 : index
    %218 = vector.load %arg20[%c100_201, %c0_202] : memref<144x256xbf16, #tpu.memory_space<vmem>>, vector<12x256xbf16>
    tpu.vector_store %arg20[%c100_201, %c0_202], %217 {strides = array<i32>} : memref<144x256xbf16, #tpu.memory_space<vmem>>, vector<12x256xbf16>,
    %c0_203 = arith.constant 0 : index
    %c144_204 = arith.constant 144 : index
    %219 = vector.load %arg19[%c0_203, %c144_204] : memref<4x512xbf16, #tpu.memory_space<vmem>>, vector<4x256xbf16>
    %c112_205 = arith.constant 112 : index
    %c0_206 = arith.constant 0 : index
    %220 = vector.load %arg20[%c112_205, %c0_206] : memref<144x256xbf16, #tpu.memory_space<vmem>>, vector<4x256xbf16>
    tpu.vector_store %arg20[%c112_205, %c0_206], %219 {strides = array<i32>} : memref<144x256xbf16, #tpu.memory_space<vmem>>, vector<4x256xbf16>,
    %cst_207 = arith.constant 0.000000e+00 : bf16
    %221 = vector.broadcast %cst_207 : bf16 to vector<12x256xbf16>
    %c116_208 = arith.constant 116 : index
    %c0_209 = arith.constant 0 : index
    %222 = vector.load %arg20[%c116_208, %c0_209] : memref<144x256xbf16, #tpu.memory_space<vmem>>, vector<12x256xbf16>
    tpu.vector_store %arg20[%c116_208, %c0_209], %221 {strides = array<i32>} : memref<144x256xbf16, #tpu.memory_space<vmem>>, vector<12x256xbf16>,
    %c0_210 = arith.constant 0 : index
    %c145_211 = arith.constant 145 : index
    %223 = vector.load %arg19[%c0_210, %c145_211] : memref<4x512xbf16, #tpu.memory_space<vmem>>, vector<4x256xbf16>
    %224 = vector.broadcast %5 : vector<1x256xbf16> to vector<4x256xbf16>
    %225 = arith.mulf %223, %224 : vector<4x256xbf16>
    %c128_212 = arith.constant 128 : index
    %c0_213 = arith.constant 0 : index
    %226 = vector.load %arg20[%c128_212, %c0_213] : memref<144x256xbf16, #tpu.memory_space<vmem>>, vector<4x256xbf16>
    tpu.vector_store %arg20[%c128_212, %c0_213], %225 {strides = array<i32>} : memref<144x256xbf16, #tpu.memory_space<vmem>>, vector<4x256xbf16>,
    %cst_214 = arith.constant 0.000000e+00 : bf16
    %227 = vector.broadcast %cst_214 : bf16 to vector<12x256xbf16>
    %c132_215 = arith.constant 132 : index
    %c0_216 = arith.constant 0 : index
    %228 = vector.load %arg20[%c132_215, %c0_216] : memref<144x256xbf16, #tpu.memory_space<vmem>>, vector<12x256xbf16>
    tpu.vector_store %arg20[%c132_215, %c0_216], %227 {strides = array<i32>} : memref<144x256xbf16, #tpu.memory_space<vmem>>, vector<12x256xbf16>,
    %c0_217 = arith.constant 0 : index
    %c0_218 = arith.constant 0 : index
    %229 = vector.load %arg10[%c0_217, %c0_218] : memref<2x144xbf16, #tpu.memory_space<vmem>>, vector<2x144xbf16>
    %c0_219 = arith.constant 0 : index
    %c0_220 = arith.constant 0 : index
    %230 = vector.load %arg20[%c0_219, %c0_220] : memref<144x256xbf16, #tpu.memory_space<vmem>>, vector<144x256xbf16>
    %cst_221 = arith.constant dense<0.000000e+00> : vector<2x256xf32>
    %231 = tpu.matmul %229, %230, %cst_221 {dimension_numbers = #tpu.dot_dimension_numbers<[1], [0], [0], [1], [0, 0, 1, 1], [], []>} : vector<2x144xbf16>, vector<144x256xbf16>, vector<2x256xf32> -> vector<2x256xf32>
    %232 = vector.shape_cast %231 : vector<2x256xf32> to vector<1x2x256xf32>
    %cst_222 = arith.constant dense<0.000000e+00> : vector<1xf32>
    %233 = vector.multi_reduction <add>, %232, %cst_222 [1, 2] : vector<1x2x256xf32> to vector<1xf32>
    %234 = vector.shape_cast %233 : vector<1xf32> to vector<1x1x1xf32>
    %235 = vector.extract %234[0, 0, 0] : f32 from vector<1x1x1xf32>
    %cst_223 = arith.constant 5.120000e+02 : f32
    %236 = arith.divf %235, %cst_223 : f32
    %237 = vector.broadcast %236 : f32 to vector<2x256xf32>
    %238 = arith.subf %231, %237 : vector<2x256xf32>
    %239 = arith.mulf %238, %238 : vector<2x256xf32>
    %240 = vector.shape_cast %239 : vector<2x256xf32> to vector<1x2x256xf32>
    %cst_224 = arith.constant dense<0.000000e+00> : vector<1xf32>
    %241 = vector.multi_reduction <add>, %240, %cst_224 [1, 2] : vector<1x2x256xf32> to vector<1xf32>
    %242 = vector.shape_cast %241 : vector<1xf32> to vector<1x1x1xf32>
    %243 = vector.extract %242[0, 0, 0] : f32 from vector<1x1x1xf32>
    %cst_225 = arith.constant 5.120000e+02 : f32
    %244 = arith.divf %243, %cst_225 : f32
    %cst_226 = arith.constant 9.99999974E-6 : f32
    %245 = arith.addf %244, %cst_226 : f32
    %246 = math.rsqrt %245 : f32
    %247 = vector.broadcast %246 : f32 to vector<2x256xf32>
    %248 = arith.mulf %238, %247 : vector<2x256xf32>
    %c0_227 = arith.constant 0 : index
    %c0_228 = arith.constant 0 : index
    %249 = vector.load %arg11[%c0_227, %c0_228] : memref<2x1xf32, #tpu.memory_space<vmem>>, vector<2x1xf32>
    %250 = vector.broadcast %249 : vector<2x1xf32> to vector<2x256xf32>
    %251 = arith.mulf %248, %250 : vector<2x256xf32>
    %c0_229 = arith.constant 0 : index
    %c0_230 = arith.constant 0 : index
    %252 = vector.load %arg12[%c0_229, %c0_230] : memref<2x1xf32, #tpu.memory_space<vmem>>, vector<2x1xf32>
    %253 = vector.broadcast %252 : vector<2x1xf32> to vector<2x256xf32>
    %254 = arith.addf %251, %253 : vector<2x256xf32>
    %cst_231 = arith.constant 5.000000e-01 : f32
    %255 = vector.broadcast %cst_231 : f32 to vector<2x256xf32>
    %256 = arith.mulf %255, %254 : vector<2x256xf32>
    %cst_232 = arith.constant 0.707106769 : f32
    %257 = vector.broadcast %cst_232 : f32 to vector<2x256xf32>
    %258 = arith.mulf %254, %257 : vector<2x256xf32>
    %259 = math.erf %258 : vector<2x256xf32>
    %cst_233 = arith.constant 1.000000e+00 : f32
    %260 = vector.broadcast %cst_233 : f32 to vector<2x256xf32>
    %261 = arith.addf %260, %259 : vector<2x256xf32>
    %262 = arith.mulf %256, %261 : vector<2x256xf32>
    %263 = arith.truncf %262 : vector<2x256xf32> to vector<2x256xbf16>
    %c0_234 = arith.constant 0 : index
    %c128_235 = arith.constant 128 : index
    %264 = vector.load %arg19[%c0_234, %c128_235] : memref<4x512xbf16, #tpu.memory_space<vmem>>, vector<2x256xbf16>
    tpu.vector_store %arg19[%c0_234, %c128_235], %263 {strides = array<i32>} : memref<4x512xbf16, #tpu.memory_space<vmem>>, vector<2x256xbf16>,
    %c0_236 = arith.constant 0 : index
    %c111_237 = arith.constant 111 : index
    %265 = vector.load %arg19[%c0_236, %c111_237] : memref<4x512xbf16, #tpu.memory_space<vmem>>, vector<2x256xbf16>
    %266 = vector.broadcast %4 : vector<1x256xbf16> to vector<2x256xbf16>
    %267 = arith.mulf %265, %266 : vector<2x256xbf16>
    %c0_238 = arith.constant 0 : index
    %c0_239 = arith.constant 0 : index
    %268 = vector.load %arg20[%c0_238, %c0_239] : memref<144x256xbf16, #tpu.memory_space<vmem>>, vector<2x256xbf16>
    tpu.vector_store %arg20[%c0_238, %c0_239], %267 {strides = array<i32>} : memref<144x256xbf16, #tpu.memory_space<vmem>>, vector<2x256xbf16>,
    %cst_240 = arith.constant 0.000000e+00 : bf16
    %269 = vector.broadcast %cst_240 : bf16 to vector<14x256xbf16>
    %c2 = arith.constant 2 : index
    %c0_241 = arith.constant 0 : index
    %270 = vector.load %arg20[%c2, %c0_241] : memref<144x256xbf16, #tpu.memory_space<vmem>>, vector<14x256xbf16>
    tpu.vector_store %arg20[%c2, %c0_241], %269 {strides = array<i32>} : memref<144x256xbf16, #tpu.memory_space<vmem>>, vector<14x256xbf16>,
    %c0_242 = arith.constant 0 : index
    %c112_243 = arith.constant 112 : index
    %271 = vector.load %arg19[%c0_242, %c112_243] : memref<4x512xbf16, #tpu.memory_space<vmem>>, vector<2x256xbf16>
    %c16_244 = arith.constant 16 : index
    %c0_245 = arith.constant 0 : index
    %272 = vector.load %arg20[%c16_244, %c0_245] : memref<144x256xbf16, #tpu.memory_space<vmem>>, vector<2x256xbf16>
    tpu.vector_store %arg20[%c16_244, %c0_245], %271 {strides = array<i32>} : memref<144x256xbf16, #tpu.memory_space<vmem>>, vector<2x256xbf16>,
    %cst_246 = arith.constant 0.000000e+00 : bf16
    %273 = vector.broadcast %cst_246 : bf16 to vector<14x256xbf16>
    %c18 = arith.constant 18 : index
    %c0_247 = arith.constant 0 : index
    %274 = vector.load %arg20[%c18, %c0_247] : memref<144x256xbf16, #tpu.memory_space<vmem>>, vector<14x256xbf16>
    tpu.vector_store %arg20[%c18, %c0_247], %273 {strides = array<i32>} : memref<144x256xbf16, #tpu.memory_space<vmem>>, vector<14x256xbf16>,
    %c0_248 = arith.constant 0 : index
    %c113_249 = arith.constant 113 : index
    %275 = vector.load %arg19[%c0_248, %c113_249] : memref<4x512xbf16, #tpu.memory_space<vmem>>, vector<2x256xbf16>
    %276 = vector.broadcast %5 : vector<1x256xbf16> to vector<2x256xbf16>
    %277 = arith.mulf %275, %276 : vector<2x256xbf16>
    %c32_250 = arith.constant 32 : index
    %c0_251 = arith.constant 0 : index
    %278 = vector.load %arg20[%c32_250, %c0_251] : memref<144x256xbf16, #tpu.memory_space<vmem>>, vector<2x256xbf16>
    tpu.vector_store %arg20[%c32_250, %c0_251], %277 {strides = array<i32>} : memref<144x256xbf16, #tpu.memory_space<vmem>>, vector<2x256xbf16>,
    %cst_252 = arith.constant 0.000000e+00 : bf16
    %279 = vector.broadcast %cst_252 : bf16 to vector<14x256xbf16>
    %c34 = arith.constant 34 : index
    %c0_253 = arith.constant 0 : index
    %280 = vector.load %arg20[%c34, %c0_253] : memref<144x256xbf16, #tpu.memory_space<vmem>>, vector<14x256xbf16>
    tpu.vector_store %arg20[%c34, %c0_253], %279 {strides = array<i32>} : memref<144x256xbf16, #tpu.memory_space<vmem>>, vector<14x256xbf16>,
    %c0_254 = arith.constant 0 : index
    %c127_255 = arith.constant 127 : index
    %281 = vector.load %arg19[%c0_254, %c127_255] : memref<4x512xbf16, #tpu.memory_space<vmem>>, vector<2x256xbf16>
    %282 = vector.broadcast %4 : vector<1x256xbf16> to vector<2x256xbf16>
    %283 = arith.mulf %281, %282 : vector<2x256xbf16>
    %c48_256 = arith.constant 48 : index
    %c0_257 = arith.constant 0 : index
    %284 = vector.load %arg20[%c48_256, %c0_257] : memref<144x256xbf16, #tpu.memory_space<vmem>>, vector<2x256xbf16>
    tpu.vector_store %arg20[%c48_256, %c0_257], %283 {strides = array<i32>} : memref<144x256xbf16, #tpu.memory_space<vmem>>, vector<2x256xbf16>,
    %cst_258 = arith.constant 0.000000e+00 : bf16
    %285 = vector.broadcast %cst_258 : bf16 to vector<14x256xbf16>
    %c50 = arith.constant 50 : index
    %c0_259 = arith.constant 0 : index
    %286 = vector.load %arg20[%c50, %c0_259] : memref<144x256xbf16, #tpu.memory_space<vmem>>, vector<14x256xbf16>
    tpu.vector_store %arg20[%c50, %c0_259], %285 {strides = array<i32>} : memref<144x256xbf16, #tpu.memory_space<vmem>>, vector<14x256xbf16>,
    %c0_260 = arith.constant 0 : index
    %c128_261 = arith.constant 128 : index
    %287 = vector.load %arg19[%c0_260, %c128_261] : memref<4x512xbf16, #tpu.memory_space<vmem>>, vector<2x256xbf16>
    %c64_262 = arith.constant 64 : index
    %c0_263 = arith.constant 0 : index
    %288 = vector.load %arg20[%c64_262, %c0_263] : memref<144x256xbf16, #tpu.memory_space<vmem>>, vector<2x256xbf16>
    tpu.vector_store %arg20[%c64_262, %c0_263], %287 {strides = array<i32>} : memref<144x256xbf16, #tpu.memory_space<vmem>>, vector<2x256xbf16>,
    %cst_264 = arith.constant 0.000000e+00 : bf16
    %289 = vector.broadcast %cst_264 : bf16 to vector<14x256xbf16>
    %c66 = arith.constant 66 : index
    %c0_265 = arith.constant 0 : index
    %290 = vector.load %arg20[%c66, %c0_265] : memref<144x256xbf16, #tpu.memory_space<vmem>>, vector<14x256xbf16>
    tpu.vector_store %arg20[%c66, %c0_265], %289 {strides = array<i32>} : memref<144x256xbf16, #tpu.memory_space<vmem>>, vector<14x256xbf16>,
    %c0_266 = arith.constant 0 : index
    %c129_267 = arith.constant 129 : index
    %291 = vector.load %arg19[%c0_266, %c129_267] : memref<4x512xbf16, #tpu.memory_space<vmem>>, vector<2x256xbf16>
    %292 = vector.broadcast %5 : vector<1x256xbf16> to vector<2x256xbf16>
    %293 = arith.mulf %291, %292 : vector<2x256xbf16>
    %c80_268 = arith.constant 80 : index
    %c0_269 = arith.constant 0 : index
    %294 = vector.load %arg20[%c80_268, %c0_269] : memref<144x256xbf16, #tpu.memory_space<vmem>>, vector<2x256xbf16>
    tpu.vector_store %arg20[%c80_268, %c0_269], %293 {strides = array<i32>} : memref<144x256xbf16, #tpu.memory_space<vmem>>, vector<2x256xbf16>,
    %cst_270 = arith.constant 0.000000e+00 : bf16
    %295 = vector.broadcast %cst_270 : bf16 to vector<14x256xbf16>
    %c82 = arith.constant 82 : index
    %c0_271 = arith.constant 0 : index
    %296 = vector.load %arg20[%c82, %c0_271] : memref<144x256xbf16, #tpu.memory_space<vmem>>, vector<14x256xbf16>
    tpu.vector_store %arg20[%c82, %c0_271], %295 {strides = array<i32>} : memref<144x256xbf16, #tpu.memory_space<vmem>>, vector<14x256xbf16>,
    %c0_272 = arith.constant 0 : index
    %c143_273 = arith.constant 143 : index
    %297 = vector.load %arg19[%c0_272, %c143_273] : memref<4x512xbf16, #tpu.memory_space<vmem>>, vector<2x256xbf16>
    %298 = vector.broadcast %4 : vector<1x256xbf16> to vector<2x256xbf16>
    %299 = arith.mulf %297, %298 : vector<2x256xbf16>
    %c96_274 = arith.constant 96 : index
    %c0_275 = arith.constant 0 : index
    %300 = vector.load %arg20[%c96_274, %c0_275] : memref<144x256xbf16, #tpu.memory_space<vmem>>, vector<2x256xbf16>
    tpu.vector_store %arg20[%c96_274, %c0_275], %299 {strides = array<i32>} : memref<144x256xbf16, #tpu.memory_space<vmem>>, vector<2x256xbf16>,
    %cst_276 = arith.constant 0.000000e+00 : bf16
    %301 = vector.broadcast %cst_276 : bf16 to vector<14x256xbf16>
    %c98 = arith.constant 98 : index
    %c0_277 = arith.constant 0 : index
    %302 = vector.load %arg20[%c98, %c0_277] : memref<144x256xbf16, #tpu.memory_space<vmem>>, vector<14x256xbf16>
    tpu.vector_store %arg20[%c98, %c0_277], %301 {strides = array<i32>} : memref<144x256xbf16, #tpu.memory_space<vmem>>, vector<14x256xbf16>,
    %c0_278 = arith.constant 0 : index
    %c144_279 = arith.constant 144 : index
    %303 = vector.load %arg19[%c0_278, %c144_279] : memref<4x512xbf16, #tpu.memory_space<vmem>>, vector<2x256xbf16>
    %c112_280 = arith.constant 112 : index
    %c0_281 = arith.constant 0 : index
    %304 = vector.load %arg20[%c112_280, %c0_281] : memref<144x256xbf16, #tpu.memory_space<vmem>>, vector<2x256xbf16>
    tpu.vector_store %arg20[%c112_280, %c0_281], %303 {strides = array<i32>} : memref<144x256xbf16, #tpu.memory_space<vmem>>, vector<2x256xbf16>,
    %cst_282 = arith.constant 0.000000e+00 : bf16
    %305 = vector.broadcast %cst_282 : bf16 to vector<14x256xbf16>
    %c114 = arith.constant 114 : index
    %c0_283 = arith.constant 0 : index
    %306 = vector.load %arg20[%c114, %c0_283] : memref<144x256xbf16, #tpu.memory_space<vmem>>, vector<14x256xbf16>
    tpu.vector_store %arg20[%c114, %c0_283], %305 {strides = array<i32>} : memref<144x256xbf16, #tpu.memory_space<vmem>>, vector<14x256xbf16>,
    %c0_284 = arith.constant 0 : index
    %c145_285 = arith.constant 145 : index
    %307 = vector.load %arg19[%c0_284, %c145_285] : memref<4x512xbf16, #tpu.memory_space<vmem>>, vector<2x256xbf16>
    %308 = vector.broadcast %5 : vector<1x256xbf16> to vector<2x256xbf16>
    %309 = arith.mulf %307, %308 : vector<2x256xbf16>
    %c128_286 = arith.constant 128 : index
    %c0_287 = arith.constant 0 : index
    %310 = vector.load %arg20[%c128_286, %c0_287] : memref<144x256xbf16, #tpu.memory_space<vmem>>, vector<2x256xbf16>
    tpu.vector_store %arg20[%c128_286, %c0_287], %309 {strides = array<i32>} : memref<144x256xbf16, #tpu.memory_space<vmem>>, vector<2x256xbf16>,
    %cst_288 = arith.constant 0.000000e+00 : bf16
    %311 = vector.broadcast %cst_288 : bf16 to vector<14x256xbf16>
    %c130 = arith.constant 130 : index
    %c0_289 = arith.constant 0 : index
    %312 = vector.load %arg20[%c130, %c0_289] : memref<144x256xbf16, #tpu.memory_space<vmem>>, vector<14x256xbf16>
    tpu.vector_store %arg20[%c130, %c0_289], %311 {strides = array<i32>} : memref<144x256xbf16, #tpu.memory_space<vmem>>, vector<14x256xbf16>,
    %c0_290 = arith.constant 0 : index
    %c0_291 = arith.constant 0 : index
    %313 = vector.load %arg13[%c0_290, %c0_291] : memref<4x144xbf16, #tpu.memory_space<vmem>>, vector<4x144xbf16>
    %c0_292 = arith.constant 0 : index
    %c0_293 = arith.constant 0 : index
    %314 = vector.load %arg20[%c0_292, %c0_293] : memref<144x256xbf16, #tpu.memory_space<vmem>>, vector<144x256xbf16>
    %cst_294 = arith.constant dense<0.000000e+00> : vector<4x256xf32>
    %315 = tpu.matmul %313, %314, %cst_294 {dimension_numbers = #tpu.dot_dimension_numbers<[1], [0], [0], [1], [0, 0, 1, 1], [], []>} : vector<4x144xbf16>, vector<144x256xbf16>, vector<4x256xf32> -> vector<4x256xf32>
    %316 = vector.shape_cast %315 : vector<4x256xf32> to vector<1x4x256xf32>
    %cst_295 = arith.constant dense<0.000000e+00> : vector<1xf32>
    %317 = vector.multi_reduction <add>, %316, %cst_295 [1, 2] : vector<1x4x256xf32> to vector<1xf32>
    %318 = vector.shape_cast %317 : vector<1xf32> to vector<1x1x1xf32>
    %319 = vector.extract %318[0, 0, 0] : f32 from vector<1x1x1xf32>
    %cst_296 = arith.constant 1.024000e+03 : f32
    %320 = arith.divf %319, %cst_296 : f32
    %321 = vector.broadcast %320 : f32 to vector<4x256xf32>
    %322 = arith.subf %315, %321 : vector<4x256xf32>
    %323 = arith.mulf %322, %322 : vector<4x256xf32>
    %324 = vector.shape_cast %323 : vector<4x256xf32> to vector<1x4x256xf32>
    %cst_297 = arith.constant dense<0.000000e+00> : vector<1xf32>
    %325 = vector.multi_reduction <add>, %324, %cst_297 [1, 2] : vector<1x4x256xf32> to vector<1xf32>
    %326 = vector.shape_cast %325 : vector<1xf32> to vector<1x1x1xf32>
    %327 = vector.extract %326[0, 0, 0] : f32 from vector<1x1x1xf32>
    %cst_298 = arith.constant 1.024000e+03 : f32
    %328 = arith.divf %327, %cst_298 : f32
    %cst_299 = arith.constant 9.99999974E-6 : f32
    %329 = arith.addf %328, %cst_299 : f32
    %330 = math.rsqrt %329 : f32
    %331 = vector.broadcast %330 : f32 to vector<4x256xf32>
    %332 = arith.mulf %322, %331 : vector<4x256xf32>
    %c0_300 = arith.constant 0 : index
    %c0_301 = arith.constant 0 : index
    %333 = vector.load %arg14[%c0_300, %c0_301] : memref<4x1xf32, #tpu.memory_space<vmem>>, vector<4x1xf32>
    %334 = vector.broadcast %333 : vector<4x1xf32> to vector<4x256xf32>
    %335 = arith.mulf %332, %334 : vector<4x256xf32>
    %c0_302 = arith.constant 0 : index
    %c0_303 = arith.constant 0 : index
    %336 = vector.load %arg15[%c0_302, %c0_303] : memref<4x1xf32, #tpu.memory_space<vmem>>, vector<4x1xf32>
    %337 = vector.broadcast %336 : vector<4x1xf32> to vector<4x256xf32>
    %338 = arith.addf %335, %337 : vector<4x256xf32>
    %c0_304 = arith.constant 0 : index
    %c0_305 = arith.constant 0 : index
    %c0_306 = arith.constant 0 : index
    %339 = vector.load %arg2[%c0_304, %c0_305, %c0_306] : memref<1x1x32xf32, #tpu.memory_space<vmem>>, vector<1x1x32xf32>
    %340 = vector.shape_cast %339 : vector<1x1x32xf32> to vector<1x32xf32>
    %341 = arith.negf %340 : vector<1x32xf32>
    %342 = math.exp %341 : vector<1x32xf32>
    %cst_307 = arith.constant 1.000000e+00 : f32
    %343 = vector.broadcast %cst_307 : f32 to vector<1x32xf32>
    %344 = arith.addf %343, %342 : vector<1x32xf32>
    %345 = arith.divf %343, %344 : vector<1x32xf32>
    %346 = arith.mulf %340, %345 : vector<1x32xf32>
    %c0_308 = arith.constant 0 : index
    %c0_309 = arith.constant 0 : index
    %347 = vector.load %arg16[%c0_308, %c0_309] : memref<4x32xf32, #tpu.memory_space<vmem>>, vector<4x32xf32>
    %348 = vector.broadcast %346 : vector<1x32xf32> to vector<4x32xf32>
    %349 = arith.mulf %347, %348 : vector<4x32xf32>
    %cst_310 = arith.constant dense<0.000000e+00> : vector<4xf32>
    %350 = vector.multi_reduction <add>, %349, %cst_310 [1] : vector<4x32xf32> to vector<4xf32>
    %351 = vector.shape_cast %350 : vector<4xf32> to vector<4x1xf32>
    %c0_311 = arith.constant 0 : index
    %c0_312 = arith.constant 0 : index
    %352 = vector.load %arg17[%c0_311, %c0_312] : memref<4x1xf32, #tpu.memory_space<vmem>>, vector<4x1xf32>
    %353 = arith.addf %351, %352 : vector<4x1xf32>
    %354 = vector.broadcast %353 : vector<4x1xf32> to vector<4x256xf32>
    %355 = arith.addf %338, %354 : vector<4x256xf32>
    %c0_313 = arith.constant 0 : index
    %c0_314 = arith.constant 0 : index
    %c0_315 = arith.constant 0 : index
    %356 = vector.load %arg18[%c0_313, %c0_314, %c0_315] : memref<1x4x256xf32, #tpu.memory_space<vmem>>, vector<1x4x256xf32>
    %357 = vector.shape_cast %356 : vector<1x4x256xf32> to vector<4x256xf32>
    %358 = vector.shape_cast %355 : vector<4x256xf32> to vector<1x4x256xf32>
    tpu.vector_store %arg18[%c0_313, %c0_314, %c0_315], %358 {strides = array<i32>} : memref<1x4x256xf32, #tpu.memory_space<vmem>>, vector<1x4x256xf32>,
    return
  }
  func.func @transform_0(%arg0: i32) -> (i32, i32, i32) {
    %c0_i32 = arith.constant 0 : i32
    %c0_i32_0 = arith.constant 0 : i32
    %c0_i32_1 = arith.constant 0 : i32
    return %arg0, %c0_i32, %c0_i32_0 : i32, i32, i32
  }
  func.func @transform_1(%arg0: i32) -> (i32, i32, i32) {
    %c0_i32 = arith.constant 0 : i32
    %c0_i32_0 = arith.constant 0 : i32
    %c0_i32_1 = arith.constant 0 : i32
    return %arg0, %c0_i32, %c0_i32_0 : i32, i32, i32
  }
  func.func @transform_2(%arg0: i32) -> (i32, i32) {
    %c0_i32 = arith.constant 0 : i32
    %c0_i32_0 = arith.constant 0 : i32
    %c0_i32_1 = arith.constant 0 : i32
    return %c0_i32, %c0_i32_0 : i32, i32
  }
  func.func @transform_3(%arg0: i32) -> (i32, i32) {
    %c0_i32 = arith.constant 0 : i32
    %c0_i32_0 = arith.constant 0 : i32
    %c0_i32_1 = arith.constant 0 : i32
    return %c0_i32, %c0_i32_0 : i32, i32
  }
  func.func @transform_4(%arg0: i32) -> (i32, i32) {
    %c0_i32 = arith.constant 0 : i32
    %c0_i32_0 = arith.constant 0 : i32
    %c0_i32_1 = arith.constant 0 : i32
    return %c0_i32, %c0_i32_0 : i32, i32
  }
  func.func @transform_5(%arg0: i32) -> (i32, i32) {
    %c0_i32 = arith.constant 0 : i32
    %c0_i32_0 = arith.constant 0 : i32
    %c0_i32_1 = arith.constant 0 : i32
    return %c0_i32, %c0_i32_0 : i32, i32
  }
  func.func @transform_6(%arg0: i32) -> (i32, i32) {
    %c0_i32 = arith.constant 0 : i32
    %c0_i32_0 = arith.constant 0 : i32
    %c0_i32_1 = arith.constant 0 : i32
    return %c0_i32, %c0_i32_0 : i32, i32
  }
  func.func @transform_7(%arg0: i32) -> (i32, i32) {
    %c0_i32 = arith.constant 0 : i32
    %c0_i32_0 = arith.constant 0 : i32
    %c0_i32_1 = arith.constant 0 : i32
    return %c0_i32, %c0_i32_0 : i32, i32
  }
  func.func @transform_8(%arg0: i32) -> (i32, i32) {
    %c0_i32 = arith.constant 0 : i32
    %c0_i32_0 = arith.constant 0 : i32
    %c0_i32_1 = arith.constant 0 : i32
    return %c0_i32, %c0_i32_0 : i32, i32
  }
  func.func @transform_9(%arg0: i32) -> (i32, i32) {
    %c0_i32 = arith.constant 0 : i32
    %c0_i32_0 = arith.constant 0 : i32
    %c0_i32_1 = arith.constant 0 : i32
    return %c0_i32, %c0_i32_0 : i32, i32
  }
  func.func @transform_10(%arg0: i32) -> (i32, i32) {
    %c0_i32 = arith.constant 0 : i32
    %c0_i32_0 = arith.constant 0 : i32
    %c0_i32_1 = arith.constant 0 : i32
    return %c0_i32, %c0_i32_0 : i32, i32
  }
  func.func @transform_11(%arg0: i32) -> (i32, i32) {
    %c0_i32 = arith.constant 0 : i32
    %c0_i32_0 = arith.constant 0 : i32
    %c0_i32_1 = arith.constant 0 : i32
    return %c0_i32, %c0_i32_0 : i32, i32
  }
  func.func @transform_12(%arg0: i32) -> (i32, i32) {
    %c0_i32 = arith.constant 0 : i32
    %c0_i32_0 = arith.constant 0 : i32
    %c0_i32_1 = arith.constant 0 : i32
    return %c0_i32, %c0_i32_0 : i32, i32
  }
  func.func @transform_13(%arg0: i32) -> (i32, i32) {
    %c0_i32 = arith.constant 0 : i32
    %c0_i32_0 = arith.constant 0 : i32
    %c0_i32_1 = arith.constant 0 : i32
    return %c0_i32, %c0_i32_0 : i32, i32
  }
  func.func @transform_14(%arg0: i32) -> (i32, i32) {
    %c0_i32 = arith.constant 0 : i32
    %c0_i32_0 = arith.constant 0 : i32
    %c0_i32_1 = arith.constant 0 : i32
    return %c0_i32, %c0_i32_0 : i32, i32
  }
  func.func @transform_15(%arg0: i32) -> (i32, i32) {
    %c0_i32 = arith.constant 0 : i32
    %c0_i32_0 = arith.constant 0 : i32
    %c0_i32_1 = arith.constant 0 : i32
    return %c0_i32, %c0_i32_0 : i32, i32
  }
  func.func @transform_16(%arg0: i32) -> (i32, i32) {
    %c0_i32 = arith.constant 0 : i32
    %c0_i32_0 = arith.constant 0 : i32
    %c0_i32_1 = arith.constant 0 : i32
    return %c0_i32, %c0_i32_0 : i32, i32
  }
  func.func @transform_17(%arg0: i32) -> (i32, i32, i32) {
    %c0_i32 = arith.constant 0 : i32
    %c0_i32_0 = arith.constant 0 : i32
    %c0_i32_1 = arith.constant 0 : i32
    return %arg0, %c0_i32, %c0_i32_0 : i32, i32, i32
  }
}

</mosaic_0001>

<llo_original>
// kernel: up_forward_pallas.1
$region0: #{up_forward_pallas.1}
  #allocation0 [shape = 'u32[]', space=smem, size = 0x4, offset = 0x4, fixed_abs, tag = 'smem constant byte address 0x4 - core index']
  #allocation1 [shape = 'u32[72,128]{1,0:T(1,128)}', space=vmem, size = 0x9000, scoped, tag = 'internal scratch']
  #allocation2 [shape = 'bf16[4,512]{1,0:T(4,128)(2,1)}', space=vmem, size = 0x1000, scoped, tag = 'scratch operand']
  #allocation3 [shape = 'bf16[144,256]{1,0:T(8,128)(2,1)}', space=vmem, size = 0x12000, scoped, tag = 'scratch operand']
  %s0 = inlined_call_operand.vmem [shape: bf16[2,4,256], index: 0, kind: input, shape index: {}]
  %s1 = inlined_call_operand.vmem [shape: f32[2,1,32], index: 1, kind: input, shape index: {}]
  %s2 = inlined_call_operand.vmem [shape: bf16[2,256], index: 2, kind: input, shape index: {}]
  %s3 = inlined_call_operand.vmem [shape: bf16[4,144], index: 3, kind: input, shape index: {}]
  %s4 = inlined_call_operand.vmem [shape: f32[4,1], index: 4, kind: input, shape index: {}]
  %s5 = inlined_call_operand.vmem [shape: f32[4,1], index: 5, kind: input, shape index: {}]
  %s6 = inlined_call_operand.vmem [shape: bf16[4,144], index: 6, kind: input, shape index: {}]
  %s7 = inlined_call_operand.vmem [shape: f32[4,1], index: 7, kind: input, shape index: {}]
  %s8 = inlined_call_operand.vmem [shape: f32[4,1], index: 8, kind: input, shape index: {}]
  %s9 = inlined_call_operand.vmem [shape: bf16[2,144], index: 9, kind: input, shape index: {}]
  %s10 = inlined_call_operand.vmem [shape: f32[2,1], index: 10, kind: input, shape index: {}]
  %s11 = inlined_call_operand.vmem [shape: f32[2,1], index: 11, kind: input, shape index: {}]
  %s12 = inlined_call_operand.vmem [shape: bf16[4,144], index: 12, kind: input, shape index: {}]
  %s13 = inlined_call_operand.vmem [shape: f32[4,1], index: 13, kind: input, shape index: {}]
  %s14 = inlined_call_operand.vmem [shape: f32[4,1], index: 14, kind: input, shape index: {}]
  %s15 = inlined_call_operand.vmem [shape: f32[4,32], index: 15, kind: input, shape index: {}]
  %s16 = inlined_call_operand.vmem [shape: f32[4,1], index: 16, kind: input, shape index: {}]
  %s17 = inlined_call_operand.vmem [shape: f32[2,4,256], index: 17, kind: output, shape index: {}]
  %s18 = sld [smem:[#allocation0]]
  $region101: #{up_forward_pallas.1} parent=0
    _
  %s20 = ssub.s32 1, %s18
  %s21 = scalar_select 0, %s20, %s18
  loop: start=0, step=1, limit=4
  $region2: #{up_forward_pallas.1} parent=0 // loop_pre_header
    _
  $region3: #{up_forward_pallas.1} parent=0 // loop_header
    %s23 = sphi 0, %s27
    %p24 = scmp.ge.s32.totalorder %s23, 4
    %s33 = sphi 0, %s35
    %s36 = sphi 0, %s33
    %s37 = sphi 0, %s36
    %s53 = sphi 0, %s37
    %s59 = sphi 0, %s61
    %s62 = sphi 0, %s59
    %s63 = sphi 0, %s62
    %s79 = sphi 0, %s63
    %s83 = sphi 0, %s83
    %s85 = sphi 0, %s83
    %s86 = sphi 0, %s85
    %s100 = sphi 0, %s86
    %s104 = sphi 0, %s104
    %s106 = sphi 0, %s104
    %s107 = sphi 0, %s106
    %s121 = sphi 0, %s107
    %s125 = sphi 0, %s125
    %s127 = sphi 0, %s125
    %s128 = sphi 0, %s127
    %s142 = sphi 0, %s128
    %s146 = sphi 0, %s146
    %s148 = sphi 0, %s146
    %s149 = sphi 0, %s148
    %s163 = sphi 0, %s149
    %s167 = sphi 0, %s167
    %s169 = sphi 0, %s167
    %s170 = sphi 0, %s169
    %s184 = sphi 0, %s170
    %s188 = sphi 0, %s188
    %s190 = sphi 0, %s188
    %s191 = sphi 0, %s190
    %s205 = sphi 0, %s191
    %s209 = sphi 0, %s209
    %s211 = sphi 0, %s209
    %s212 = sphi 0, %s211
    %s226 = sphi 0, %s212
    %s230 = sphi 0, %s230
    %s232 = sphi 0, %s230
    %s233 = sphi 0, %s232
    %s247 = sphi 0, %s233
    %s251 = sphi 0, %s251
    %s253 = sphi 0, %s251
    %s254 = sphi 0, %s253
    %s268 = sphi 0, %s254
    %s272 = sphi 0, %s272
    %s274 = sphi 0, %s272
    %s275 = sphi 0, %s274
    %s289 = sphi 0, %s275
    %s293 = sphi 0, %s293
    %s295 = sphi 0, %s293
    %s296 = sphi 0, %s295
    %s310 = sphi 0, %s296
    %s314 = sphi 0, %s314
    %s316 = sphi 0, %s314
    %s317 = sphi 0, %s316
    %s331 = sphi 0, %s317
    %s335 = sphi 0, %s335
    %s337 = sphi 0, %s335
    %s338 = sphi 0, %s337
    %s352 = sphi 0, %s338
    %s356 = sphi 0, %s356
    %s358 = sphi 0, %s356
    %s359 = sphi 0, %s358
    %s373 = sphi 0, %s359
    %s377 = sphi 0, %s377
    %s379 = sphi 0, %s377
    %s380 = sphi 0, %s379
    %s394 = sphi 0, %s380
    %s400 = sphi 0, %s402
    %s403 = sphi 0, %s400
    %s404 = sphi 0, %s403
    %s420 = sphi 0, %s404
  $region4: #{up_forward_pallas.1} parent=0 // loop_header_branch
    %26 = sbr.rel (%p24) target = $region8
  $region5: #{up_forward_pallas.1} parent=0 // loop_body
    %s28 = ssub.s32 %s23, 1
    %s29 = ssub.s32 %s23, 2
    %s30 = sadd.s32 %s23, 1
    %s31 = ssub.s32 %s23, %s30
    %p32 = scmp.eq.s32.totalorder %s31, 0
    %s34 = sadd.s32 %s33, 1
    %s35 = scalar_select %p32, %s33, %s34
    %p38 = pneg %p32
    %p39 = scmp.eq.s32.totalorder %s23, 1
    %p40 = por %p38, %p39
    %p41 = scmp.ne.s32.totalorder %s33, %s36
    %p42 = scmp.eq.s32.totalorder %s23, 0
    %p43 = por %p41, %p42
    %p44 = scmp.ne.s32.totalorder %s33, %s36
    %p45 = scmp.eq.s32.totalorder %s28, 1
    %p46 = por %p44, %p45
    %p47 = scmp.ne.s32.totalorder %s36, %s37
    %p48 = scmp.eq.s32.totalorder %s28, 0
    %p49 = por %p47, %p48
    %p50 = scmp.ne.s32.totalorder %s36, %s37
    %p51 = scmp.eq.s32.totalorder %s29, 1
    %p52 = por %p50, %p51
    %p54 = scmp.ne.s32.totalorder %s37, %s53
    %p55 = scmp.eq.s32.totalorder %s29, 0
    %p56 = por %p54, %p55
    %s57 = ssub.s32 %s23, %s30
    %p58 = scmp.eq.s32.totalorder %s57, 0
    %s60 = sadd.s32 %s59, 1
    %s61 = scalar_select %p58, %s59, %s60
    %p64 = pneg %p58
    %p65 = scmp.eq.s32.totalorder %s23, 1
    %p66 = por %p64, %p65
    %p67 = scmp.ne.s32.totalorder %s59, %s62
    %p68 = scmp.eq.s32.totalorder %s23, 0
    %p69 = por %p67, %p68
    %p70 = scmp.ne.s32.totalorder %s59, %s62
    %p71 = scmp.eq.s32.totalorder %s28, 1
    %p72 = por %p70, %p71
    %p73 = scmp.ne.s32.totalorder %s62, %s63
    %p74 = scmp.eq.s32.totalorder %s28, 0
    %p75 = por %p73, %p74
    %p76 = scmp.ne.s32.totalorder %s62, %s63
    %p77 = scmp.eq.s32.totalorder %s29, 1
    %p78 = por %p76, %p77
    %p80 = scmp.ne.s32.totalorder %s63, %s79
    %p81 = scmp.eq.s32.totalorder %s29, 0
    %p82 = por %p80, %p81
    %s84 = sadd.s32 %s83, 1
    %p87 = scmp.eq.s32.totalorder %s23, 1
    %p88 = scmp.ne.s32.totalorder %s83, %s85
    %p89 = scmp.eq.s32.totalorder %s23, 0
    %p90 = por %p88, %p89
    %p91 = scmp.ne.s32.totalorder %s83, %s85
    %p92 = scmp.eq.s32.totalorder %s28, 1
    %p93 = por %p91, %p92
    %p94 = scmp.ne.s32.totalorder %s85, %s86
    %p95 = scmp.eq.s32.totalorder %s28, 0
    %p96 = por %p94, %p95
    %p97 = scmp.ne.s32.totalorder %s85, %s86
    %p98 = scmp.eq.s32.totalorder %s29, 1
    %p99 = por %p97, %p98
    %p101 = scmp.ne.s32.totalorder %s86, %s100
    %p102 = scmp.eq.s32.totalorder %s29, 0
    %p103 = por %p101, %p102
    %s105 = sadd.s32 %s104, 1
    %p108 = scmp.eq.s32.totalorder %s23, 1
    %p109 = scmp.ne.s32.totalorder %s104, %s106
    %p110 = scmp.eq.s32.totalorder %s23, 0
    %p111 = por %p109, %p110
    %p112 = scmp.ne.s32.totalorder %s104, %s106
    %p113 = scmp.eq.s32.totalorder %s28, 1
    %p114 = por %p112, %p113
    %p115 = scmp.ne.s32.totalorder %s106, %s107
    %p116 = scmp.eq.s32.totalorder %s28, 0
    %p117 = por %p115, %p116
    %p118 = scmp.ne.s32.totalorder %s106, %s107
    %p119 = scmp.eq.s32.totalorder %s29, 1
    %p120 = por %p118, %p119
    %p122 = scmp.ne.s32.totalorder %s107, %s121
    %p123 = scmp.eq.s32.totalorder %s29, 0
    %p124 = por %p122, %p123
    %s126 = sadd.s32 %s125, 1
    %p129 = scmp.eq.s32.totalorder %s23, 1
    %p130 = scmp.ne.s32.totalorder %s125, %s127
    %p131 = scmp.eq.s32.totalorder %s23, 0
    %p132 = por %p130, %p131
    %p133 = scmp.ne.s32.totalorder %s125, %s127
    %p134 = scmp.eq.s32.totalorder %s28, 1
    %p135 = por %p133, %p134
    %p136 = scmp.ne.s32.totalorder %s127, %s128
    %p137 = scmp.eq.s32.totalorder %s28, 0
    %p138 = por %p136, %p137
    %p139 = scmp.ne.s32.totalorder %s127, %s128
    %p140 = scmp.eq.s32.totalorder %s29, 1
    %p141 = por %p139, %p140
    %p143 = scmp.ne.s32.totalorder %s128, %s142
    %p144 = scmp.eq.s32.totalorder %s29, 0
    %p145 = por %p143, %p144
    %s147 = sadd.s32 %s146, 1
    %p150 = scmp.eq.s32.totalorder %s23, 1
    %p151 = scmp.ne.s32.totalorder %s146, %s148
    %p152 = scmp.eq.s32.totalorder %s23, 0
    %p153 = por %p151, %p152
    %p154 = scmp.ne.s32.totalorder %s146, %s148
    %p155 = scmp.eq.s32.totalorder %s28, 1
    %p156 = por %p154, %p155
    %p157 = scmp.ne.s32.totalorder %s148, %s149
    %p158 = scmp.eq.s32.totalorder %s28, 0
    %p159 = por %p157, %p158
    %p160 = scmp.ne.s32.totalorder %s148, %s149
    %p161 = scmp.eq.s32.totalorder %s29, 1
    %p162 = por %p160, %p161
    %p164 = scmp.ne.s32.totalorder %s149, %s163
    %p165 = scmp.eq.s32.totalorder %s29, 0
    %p166 = por %p164, %p165
    %s168 = sadd.s32 %s167, 1
    %p171 = scmp.eq.s32.totalorder %s23, 1
    %p172 = scmp.ne.s32.totalorder %s167, %s169
    %p173 = scmp.eq.s32.totalorder %s23, 0
    %p174 = por %p172, %p173
    %p175 = scmp.ne.s32.totalorder %s167, %s169
    %p176 = scmp.eq.s32.totalorder %s28, 1
    %p177 = por %p175, %p176
    %p178 = scmp.ne.s32.totalorder %s169, %s170
    %p179 = scmp.eq.s32.totalorder %s28, 0
    %p180 = por %p178, %p179
    %p181 = scmp.ne.s32.totalorder %s169, %s170
    %p182 = scmp.eq.s32.totalorder %s29, 1
    %p183 = por %p181, %p182
    %p185 = scmp.ne.s32.totalorder %s170, %s184
    %p186 = scmp.eq.s32.totalorder %s29, 0
    %p187 = por %p185, %p186
    %s189 = sadd.s32 %s188, 1
    %p192 = scmp.eq.s32.totalorder %s23, 1
    %p193 = scmp.ne.s32.totalorder %s188, %s190
    %p194 = scmp.eq.s32.totalorder %s23, 0
    %p195 = por %p193, %p194
    %p196 = scmp.ne.s32.totalorder %s188, %s190
    %p197 = scmp.eq.s32.totalorder %s28, 1
    %p198 = por %p196, %p197
    %p199 = scmp.ne.s32.totalorder %s190, %s191
    %p200 = scmp.eq.s32.totalorder %s28, 0
    %p201 = por %p199, %p200
    %p202 = scmp.ne.s32.totalorder %s190, %s191
    %p203 = scmp.eq.s32.totalorder %s29, 1
    %p204 = por %p202, %p203
    %p206 = scmp.ne.s32.totalorder %s191, %s205
    %p207 = scmp.eq.s32.totalorder %s29, 0
    %p208 = por %p206, %p207
    %s210 = sadd.s32 %s209, 1
    %p213 = scmp.eq.s32.totalorder %s23, 1
    %p214 = scmp.ne.s32.totalorder %s209, %s211
    %p215 = scmp.eq.s32.totalorder %s23, 0
    %p216 = por %p214, %p215
    %p217 = scmp.ne.s32.totalorder %s209, %s211
    %p218 = scmp.eq.s32.totalorder %s28, 1
    %p219 = por %p217, %p218
    %p220 = scmp.ne.s32.totalorder %s211, %s212
    %p221 = scmp.eq.s32.totalorder %s28, 0
    %p222 = por %p220, %p221
    %p223 = scmp.ne.s32.totalorder %s211, %s212
    %p224 = scmp.eq.s32.totalorder %s29, 1
    %p225 = por %p223, %p224
    %p227 = scmp.ne.s32.totalorder %s212, %s226
    %p228 = scmp.eq.s32.totalorder %s29, 0
    %p229 = por %p227, %p228
    %s231 = sadd.s32 %s230, 1
    %p234 = scmp.eq.s32.totalorder %s23, 1
    %p235 = scmp.ne.s32.totalorder %s230, %s232
    %p236 = scmp.eq.s32.totalorder %s23, 0
    %p237 = por %p235, %p236
    %p238 = scmp.ne.s32.totalorder %s230, %s232
    %p239 = scmp.eq.s32.totalorder %s28, 1
    %p240 = por %p238, %p239
    %p241 = scmp.ne.s32.totalorder %s232, %s233
    %p242 = scmp.eq.s32.totalorder %s28, 0
    %p243 = por %p241, %p242
    %p244 = scmp.ne.s32.totalorder %s232, %s233
    %p245 = scmp.eq.s32.totalorder %s29, 1
    %p246 = por %p244, %p245
    %p248 = scmp.ne.s32.totalorder %s233, %s247
    %p249 = scmp.eq.s32.totalorder %s29, 0
    %p250 = por %p248, %p249
    %s252 = sadd.s32 %s251, 1
    %p255 = scmp.eq.s32.totalorder %s23, 1
    %p256 = scmp.ne.s32.totalorder %s251, %s253
    %p257 = scmp.eq.s32.totalorder %s23, 0
    %p258 = por %p256, %p257
    %p259 = scmp.ne.s32.totalorder %s251, %s253
    %p260 = scmp.eq.s32.totalorder %s28, 1
    %p261 = por %p259, %p260
    %p262 = scmp.ne.s32.totalorder %s253, %s254
    %p263 = scmp.eq.s32.totalorder %s28, 0
    %p264 = por %p262, %p263
    %p265 = scmp.ne.s32.totalorder %s253, %s254
    %p266 = scmp.eq.s32.totalorder %s29, 1
    %p267 = por %p265, %p266
    %p269 = scmp.ne.s32.totalorder %s254, %s268
    %p270 = scmp.eq.s32.totalorder %s29, 0
    %p271 = por %p269, %p270
    %s273 = sadd.s32 %s272, 1
    %p276 = scmp.eq.s32.totalorder %s23, 1
    %p277 = scmp.ne.s32.totalorder %s272, %s274
    %p278 = scmp.eq.s32.totalorder %s23, 0
    %p279 = por %p277, %p278
    %p280 = scmp.ne.s32.totalorder %s272, %s274
    %p281 = scmp.eq.s32.totalorder %s28, 1
    %p282 = por %p280, %p281
    %p283 = scmp.ne.s32.totalorder %s274, %s275
    %p284 = scmp.eq.s32.totalorder %s28, 0
    %p285 = por %p283, %p284
    %p286 = scmp.ne.s32.totalorder %s274, %s275
    %p287 = scmp.eq.s32.totalorder %s29, 1
    %p288 = por %p286, %p287
    %p290 = scmp.ne.s32.totalorder %s275, %s289
    %p291 = scmp.eq.s32.totalorder %s29, 0
    %p292 = por %p290, %p291
    %s294 = sadd.s32 %s293, 1
    %p297 = scmp.eq.s32.totalorder %s23, 1
    %p298 = scmp.ne.s32.totalorder %s293, %s295
    %p299 = scmp.eq.s32.totalorder %s23, 0
    %p300 = por %p298, %p299
    %p301 = scmp.ne.s32.totalorder %s293, %s295
    %p302 = scmp.eq.s32.totalorder %s28, 1
    %p303 = por %p301, %p302
    %p304 = scmp.ne.s32.totalorder %s295, %s296
    %p305 = scmp.eq.s32.totalorder %s28, 0
    %p306 = por %p304, %p305
    %p307 = scmp.ne.s32.totalorder %s295, %s296
    %p308 = scmp.eq.s32.totalorder %s29, 1
    %p309 = por %p307, %p308
    %p311 = scmp.ne.s32.totalorder %s296, %s310
    %p312 = scmp.eq.s32.totalorder %s29, 0
    %p313 = por %p311, %p312
    %s315 = sadd.s32 %s314, 1
    %p318 = scmp.eq.s32.totalorder %s23, 1
    %p319 = scmp.ne.s32.totalorder %s314, %s316
    %p320 = scmp.eq.s32.totalorder %s23, 0
    %p321 = por %p319, %p320
    %p322 = scmp.ne.s32.totalorder %s314, %s316
    %p323 = scmp.eq.s32.totalorder %s28, 1
    %p324 = por %p322, %p323
    %p325 = scmp.ne.s32.totalorder %s316, %s317
    %p326 = scmp.eq.s32.totalorder %s28, 0
    %p327 = por %p325, %p326
    %p328 = scmp.ne.s32.totalorder %s316, %s317
    %p329 = scmp.eq.s32.totalorder %s29, 1
    %p330 = por %p328, %p329
    %p332 = scmp.ne.s32.totalorder %s317, %s331
    %p333 = scmp.eq.s32.totalorder %s29, 0
    %p334 = por %p332, %p333
    %s336 = sadd.s32 %s335, 1
    %p339 = scmp.eq.s32.totalorder %s23, 1
    %p340 = scmp.ne.s32.totalorder %s335, %s337
    %p341 = scmp.eq.s32.totalorder %s23, 0
    %p342 = por %p340, %p341
    %p343 = scmp.ne.s32.totalorder %s335, %s337
    %p344 = scmp.eq.s32.totalorder %s28, 1
    %p345 = por %p343, %p344
    %p346 = scmp.ne.s32.totalorder %s337, %s338
    %p347 = scmp.eq.s32.totalorder %s28, 0
    %p348 = por %p346, %p347
    %p349 = scmp.ne.s32.totalorder %s337, %s338
    %p350 = scmp.eq.s32.totalorder %s29, 1
    %p351 = por %p349, %p350
    %p353 = scmp.ne.s32.totalorder %s338, %s352
    %p354 = scmp.eq.s32.totalorder %s29, 0
    %p355 = por %p353, %p354
    %s357 = sadd.s32 %s356, 1
    %p360 = scmp.eq.s32.totalorder %s23, 1
    %p361 = scmp.ne.s32.totalorder %s356, %s358
    %p362 = scmp.eq.s32.totalorder %s23, 0
    %p363 = por %p361, %p362
    %p364 = scmp.ne.s32.totalorder %s356, %s358
    %p365 = scmp.eq.s32.totalorder %s28, 1
    %p366 = por %p364, %p365
    %p367 = scmp.ne.s32.totalorder %s358, %s359
    %p368 = scmp.eq.s32.totalorder %s28, 0
    %p369 = por %p367, %p368
    %p370 = scmp.ne.s32.totalorder %s358, %s359
    %p371 = scmp.eq.s32.totalorder %s29, 1
    %p372 = por %p370, %p371
    %p374 = scmp.ne.s32.totalorder %s359, %s373
    %p375 = scmp.eq.s32.totalorder %s29, 0
    %p376 = por %p374, %p375
    %s378 = sadd.s32 %s377, 1
    %p381 = scmp.eq.s32.totalorder %s23, 1
    %p382 = scmp.ne.s32.totalorder %s377, %s379
    %p383 = scmp.eq.s32.totalorder %s23, 0
    %p384 = por %p382, %p383
    %p385 = scmp.ne.s32.totalorder %s377, %s379
    %p386 = scmp.eq.s32.totalorder %s28, 1
    %p387 = por %p385, %p386
    %p388 = scmp.ne.s32.totalorder %s379, %s380
    %p389 = scmp.eq.s32.totalorder %s28, 0
    %p390 = por %p388, %p389
    %p391 = scmp.ne.s32.totalorder %s379, %s380
    %p392 = scmp.eq.s32.totalorder %s29, 1
    %p393 = por %p391, %p392
    %p395 = scmp.ne.s32.totalorder %s380, %s394
    %p396 = scmp.eq.s32.totalorder %s29, 0
    %p397 = por %p395, %p396
    %s398 = ssub.s32 %s23, %s30
    %p399 = scmp.eq.s32.totalorder %s398, 0
    %s401 = sadd.s32 %s400, 1
    %s402 = scalar_select %p399, %s400, %s401
    %p405 = pneg %p399
    %p406 = scmp.eq.s32.totalorder %s23, 1
    %p407 = por %p405, %p406
    %p408 = scmp.ne.s32.totalorder %s400, %s403
    %p409 = scmp.eq.s32.totalorder %s23, 0
    %p410 = por %p408, %p409
    %p411 = scmp.ne.s32.totalorder %s400, %s403
    %p412 = scmp.eq.s32.totalorder %s28, 1
    %p413 = por %p411, %p412
    %p414 = scmp.ne.s32.totalorder %s403, %s404
    %p415 = scmp.eq.s32.totalorder %s28, 0
    %p416 = por %p414, %p415
    %p417 = scmp.ne.s32.totalorder %s403, %s404
    %p418 = scmp.eq.s32.totalorder %s29, 1
    %p419 = por %p417, %p418
    %p421 = scmp.ne.s32.totalorder %s404, %s420
    %p422 = scmp.eq.s32.totalorder %s29, 0
    %p423 = por %p421, %p422
    %p424 = scmp.le.s32.totalorder 1, %s23
    %p425 = scmp.lt.s32.totalorder %s23, 3
    %p426 = pnand %p424, %p425
    %p427 = pneg %p426
    // Predicated region
    $region9: #{up_forward_pallas.1} parent=5 // pred_check
      _
    $region10: #{up_forward_pallas.1} parent=5 // pred_check_branch
      %429 = sbr.rel (%p426) target = $region12
    $region11: #{up_forward_pallas.1} parent=5 // pred_region
      %s430 = ssub.s32 %s23, 1
      // Predicated region
      $region13: #{up_forward_pallas.1} parent=11 // pred_check
        %p431 = pneg %p96
      $region14: #{up_forward_pallas.1} parent=11 // pred_check_branch
        %433 = sbr.rel (%p431) target = $region16
      $region15: #{up_forward_pallas.1} parent=11 // pred_region
        _
      $region16: #{up_forward_pallas.1} parent=11 // pred_fallthru
        _
      // Predicated region
      $region17: #{up_forward_pallas.1} parent=11 // pred_check
        %p434 = pneg %p117
      $region18: #{up_forward_pallas.1} parent=11 // pred_check_branch
        %436 = sbr.rel (%p434) target = $region20
      $region19: #{up_forward_pallas.1} parent=11 // pred_region
        _
      $region20: #{up_forward_pallas.1} parent=11 // pred_fallthru
        _
      // Predicated region
      $region21: #{up_forward_pallas.1} parent=11 // pred_check
        %p437 = pneg %p138
      $region22: #{up_forward_pallas.1} parent=11 // pred_check_branch
        %439 = sbr.rel (%p437) target = $region24
      $region23: #{up_forward_pallas.1} parent=11 // pred_region
        _
      $region24: #{up_forward_pallas.1} parent=11 // pred_fallthru
        _
      // Predicated region
      $region25: #{up_forward_pallas.1} parent=11 // pred_check
        %p440 = pneg %p159
      $region26: #{up_forward_pallas.1} parent=11 // pred_check_branch
        %442 = sbr.rel (%p440) target = $region28
      $region27: #{up_forward_pallas.1} parent=11 // pred_region
        _
      $region28: #{up_forward_pallas.1} parent=11 // pred_fallthru
        _
      // Predicated region
      $region29: #{up_forward_pallas.1} parent=11 // pred_check
        %p443 = pneg %p180
      $region30: #{up_forward_pallas.1} parent=11 // pred_check_branch
        %445 = sbr.rel (%p443) target = $region32
      $region31: #{up_forward_pallas.1} parent=11 // pred_region
        _
      $region32: #{up_forward_pallas.1} parent=11 // pred_fallthru
        _
      // Predicated region
      $region33: #{up_forward_pallas.1} parent=11 // pred_check
        %p446 = pneg %p201
      $region34: #{up_forward_pallas.1} parent=11 // pred_check_branch
        %448 = sbr.rel (%p446) target = $region36
      $region35: #{up_forward_pallas.1} parent=11 // pred_region
        _
      $region36: #{up_forward_pallas.1} parent=11 // pred_fallthru
        _
      // Predicated region
      $region37: #{up_forward_pallas.1} parent=11 // pred_check
        %p449 = pneg %p222
      $region38: #{up_forward_pallas.1} parent=11 // pred_check_branch
        %451 = sbr.rel (%p449) target = $region40
      $region39: #{up_forward_pallas.1} parent=11 // pred_region
        _
      $region40: #{up_forward_pallas.1} parent=11 // pred_fallthru
        _
      // Predicated region
      $region41: #{up_forward_pallas.1} parent=11 // pred_check
        %p452 = pneg %p243
      $region42: #{up_forward_pallas.1} parent=11 // pred_check_branch
        %454 = sbr.rel (%p452) target = $region44
      $region43: #{up_forward_pallas.1} parent=11 // pred_region
        _
      $region44: #{up_forward_pallas.1} parent=11 // pred_fallthru
        _
      // Predicated region
      $region45: #{up_forward_pallas.1} parent=11 // pred_check
        %p455 = pneg %p264
      $region46: #{up_forward_pallas.1} parent=11 // pred_check_branch
        %457 = sbr.rel (%p455) target = $region48
      $region47: #{up_forward_pallas.1} parent=11 // pred_region
        _
      $region48: #{up_forward_pallas.1} parent=11 // pred_fallthru
        _
      // Predicated region
      $region49: #{up_forward_pallas.1} parent=11 // pred_check
        %p458 = pneg %p285
      $region50: #{up_forward_pallas.1} parent=11 // pred_check_branch
        %460 = sbr.rel (%p458) target = $region52
      $region51: #{up_forward_pallas.1} parent=11 // pred_region
        _
      $region52: #{up_forward_pallas.1} parent=11 // pred_fallthru
        _
      // Predicated region
      $region53: #{up_forward_pallas.1} parent=11 // pred_check
        %p461 = pneg %p306
      $region54: #{up_forward_pallas.1} parent=11 // pred_check_branch
        %463 = sbr.rel (%p461) target = $region56
      $region55: #{up_forward_pallas.1} parent=11 // pred_region
        _
      $region56: #{up_forward_pallas.1} parent=11 // pred_fallthru
        _
      // Predicated region
      $region57: #{up_forward_pallas.1} parent=11 // pred_check
        %p464 = pneg %p327
      $region58: #{up_forward_pallas.1} parent=11 // pred_check_branch
        %466 = sbr.rel (%p464) target = $region60
      $region59: #{up_forward_pallas.1} parent=11 // pred_region
        _
      $region60: #{up_forward_pallas.1} parent=11 // pred_fallthru
        _
      // Predicated region
      $region61: #{up_forward_pallas.1} parent=11 // pred_check
        %p467 = pneg %p348
      $region62: #{up_forward_pallas.1} parent=11 // pred_check_branch
        %469 = sbr.rel (%p467) target = $region64
      $region63: #{up_forward_pallas.1} parent=11 // pred_region
        _
      $region64: #{up_forward_pallas.1} parent=11 // pred_fallthru
        _
      // Predicated region
      $region65: #{up_forward_pallas.1} parent=11 // pred_check
        %p470 = pneg %p369
      $region66: #{up_forward_pallas.1} parent=11 // pred_check_branch
        %472 = sbr.rel (%p470) target = $region68
      $region67: #{up_forward_pallas.1} parent=11 // pred_region
        _
      $region68: #{up_forward_pallas.1} parent=11 // pred_fallthru
        _
      // Predicated region
      $region69: #{up_forward_pallas.1} parent=11 // pred_check
        %p473 = pneg %p390
      $region70: #{up_forward_pallas.1} parent=11 // pred_check_branch
        %475 = sbr.rel (%p473) target = $region72
      $region71: #{up_forward_pallas.1} parent=11 // pred_region
        _
      $region72: #{up_forward_pallas.1} parent=11 // pred_fallthru
        _
    $region12: #{up_forward_pallas.1} parent=5 // pred_fallthru
      _
    %p476 = scmp.lt.s32.totalorder %s23, 2
    // Predicated region
    $region73: #{up_forward_pallas.1} parent=5 // pred_check
      %p477 = pneg %p476
    $region74: #{up_forward_pallas.1} parent=5 // pred_check_branch
      %479 = sbr.rel (%p477) target = $region76
    $region75: #{up_forward_pallas.1} parent=5 // pred_region
      // Predicated region
      $region77: #{up_forward_pallas.1} parent=75 // pred_check
        %p480 = pneg %p43
      $region78: #{up_forward_pallas.1} parent=75 // pred_check_branch
        %482 = sbr.rel (%p480) target = $region80
      $region79: #{up_forward_pallas.1} parent=75 // pred_region
        %p483 = scmp.lt.s32.totalorder %s23, 1
        %s484 = scalar_select %p483, %s23, 1
        %s485 = smul.addr %s484, 2
        %s486 = smul.addr %s485, 2
        %s487 = scalar_lea.vmem %s0, %s486
      $region80: #{up_forward_pallas.1} parent=75 // pred_fallthru
        _
      // Predicated region
      $region81: #{up_forward_pallas.1} parent=75 // pred_check
        %p488 = pneg %p69
      $region82: #{up_forward_pallas.1} parent=75 // pred_check_branch
        %490 = sbr.rel (%p488) target = $region84
      $region83: #{up_forward_pallas.1} parent=75 // pred_region
        %p491 = scmp.lt.s32.totalorder %s23, 1
        %s492 = scalar_select %p491, %s23, 1
        %s493 = scalar_lea.vmem %s1, %s492
      $region84: #{up_forward_pallas.1} parent=75 // pred_fallthru
        _
    $region76: #{up_forward_pallas.1} parent=5 // pred_fallthru
      _
    %p494 = scmp.le.s32.totalorder 1, %s23
    %p495 = scmp.lt.s32.totalorder %s23, 3
    %p496 = pnand %p494, %p495
    %p497 = pneg %p496
    // Predicated region
    $region85: #{up_forward_pallas.1} parent=5 // pred_check
      _
    $region86: #{up_forward_pallas.1} parent=5 // pred_check_branch
      %499 = sbr.rel (%p496) target = $region88
    $region87: #{up_forward_pallas.1} parent=5 // pred_region
      %s500 = ssub.s32 %s23, 1
      %p501 = scmp.lt.s32.totalorder %s28, 1
      %s502 = scalar_select %p501, %s28, 1
      %s503 = smul.addr %s502, 2
      %s504 = smul.addr %s503, 2
      %s505 = scalar_lea.vmem %s0, %s504
      %p506 = pneg %p49
      %p507 = pneg %p46
      %p508 = scmp.lt.s32.totalorder %s28, 1
      %s509 = scalar_select %p508, %s28, 1
      %s510 = scalar_lea.vmem %s1, %s509
      %p511 = pneg %p75
      %p512 = pneg %p72
      %p513 = pneg %p96
      %p514 = pneg %p93
      %p515 = pneg %p117
      %p516 = pneg %p114
      %p517 = pneg %p138
      %p518 = pneg %p135
      %p519 = pneg %p159
      %p520 = pneg %p156
      %p521 = pneg %p180
      %p522 = pneg %p177
      %p523 = pneg %p201
      %p524 = pneg %p198
      %p525 = pneg %p222
      %p526 = pneg %p219
      %p527 = pneg %p243
      %p528 = pneg %p240
      %p529 = pneg %p264
      %p530 = pneg %p261
      %p531 = pneg %p285
      %p532 = pneg %p282
      %p533 = pneg %p306
      %p534 = pneg %p303
      %p535 = pneg %p327
      %p536 = pneg %p324
      %p537 = pneg %p348
      %p538 = pneg %p345
      %p539 = pneg %p369
      %p540 = pneg %p366
      %p541 = pneg %p390
      %p542 = pneg %p387
      %p543 = pneg %p416
      %p544 = pneg %p413
      %p545 = scmp.lt.s32.totalorder %s28, 1
      %s546 = scalar_select %p545, %s28, 1
      %s547 = smul.addr %s546, 2
      %s548 = smul.addr %s547, 4
      %s549 = scalar_lea.vmem %s17, %s548
      %p550 = scmp.lt.s32.totalorder %s28, 1
      %s551 = scalar_select %p550, %s28, 1
      %s552 = smul.addr %s551, 2
      %s553 = smul.addr %s552, 2
      %s554 = scalar_lea.vmem %s0, %s553
      %p555 = scmp.lt.s32.totalorder %s28, 1
      %s556 = scalar_select %p555, %s28, 1
      %s557 = scalar_lea.vmem %s1, %s556
      %p558 = scmp.lt.s32.totalorder %s28, 1
      %s559 = scalar_select %p558, %s28, 1
      %s560 = smul.addr %s559, 2
      %s561 = smul.addr %s560, 4
      %s562 = scalar_lea.vmem %s17, %s561
      %564 = vst [vmem:[#allocation2] sm:$0x3] 0
      %565 = vst [vmem:[#allocation2 + $0x6] sm:$0x3] 0
      %v566 = vld [vmem:[%s2] sm:$0x3]
      %v567 = vld [vmem:[%s554] sm:$0xf]
      %568 = vst [vmem:[#allocation2 + $0x2] sm:$0xf] %v567
      %v569 = vld [vmem:[#allocation2] sm:$0x3f]
      %571 = vst [vmem:[#allocation1] ss:$9 sm:$0xff] %v566
      %v572 = vld [vmem:[#allocation1] sm:$0xff]
      %v573 = vld [vmem:[#allocation1 + $0x9] sm:$0xff]
      %v574 = vpack.i.b16 %v572, %v572
      %v576 = vperm.slane %v574, 0
      %v577 = vpack.i.b16 %v573, %v573
      %v579 = vperm.slane %v577, 0
      %v580 = vunpack.c.l.bf16 %v569
      %v581 = vunpack.c.h.bf16 %v569
      %v582 = vunpack.c.l.bf16 %v576
      %v583 = vunpack.c.l.bf16 %v579
      %v586 = vrot.slane %v583, 4
      %vm587 = vcmask 1043456
      %v588 = vsel %vm587, %v582, %v586
      %589 = vrot.lane.b32.xlu0 %v588, 111
      %v590 = vpop.permute.xlu0 %589
      %v591 = vrot.slane %v590, 4
      %vm592 = vcmask 908288
      %v593 = vsel %vm592, %v591, %v590
      %v596 = vmul.f32 %v580, %v593
      %v597 = vmul.f32 %v581, %v591
      %600 = vst [vmem:[#allocation1] ss:$2 sm:$0xff] %v596
      %s601 = scalar_lea.vmem [#allocation1], 16
      %602 = vst [vmem:[%s601] ss:$2 sm:$0xff] %v597
      %v603 = vld.sshfl [vmem:[#allocation1] sm:$0xff pattern:$0x75316420]
      %v604 = vld.sshfl [vmem:[#allocation1 + $0x8] sm:$0xff pattern:$0x75316420]
      %v605 = vld.sshfl [vmem:[#allocation1 + $0x10] sm:$0xff pattern:$0x75316420]
      %v609 = vpack.c.bf16 %v604, %v603
      %v610 = vpack.c.bf16 %v605, %v605
      %613 = vrot.lane.b32.xlu0 %v609, 17
      %v614 = vpop.permute.xlu0 %613
      %615 = vrot.lane.b32.xlu0 %v610, 17
      %v616 = vpop.permute.xlu0 %615
      %v617 = vrot.slane %v614, 4
      %v618 = vrot.slane %v616, 4
      %vm619 = vcmask 1043456
      %v620 = vsel %vm619, %v617, %v618
      %vm621 = vcmask 138240
      %v622 = vsel %vm621, %v614, %v620
      %624 = vst [vmem:[#allocation3] sm:$0x33] %v622
      %625 = vst [vmem:[#allocation3] sm:$0xcc] 0
      %626 = vst [vmem:[#allocation3 + $0x8] sm:$0xff] 0
      %v627 = vld [vmem:[#allocation2] sm:$0x3f]
      %629 = vst [vmem:[#allocation1] ss:$2 sm:$0xff] %v627
      %v630 = vld.sshfl [vmem:[#allocation1] sm:$0xff pattern:$0x75643120]
      %v632 = vld.sshfl [vmem:[#allocation1 + $0x8] sm:$0xff pattern:$0x75643120]
      %634 = vrot.lane.b32.xlu0 %v630, 16
      %v635 = vpop.permute.xlu0 %634
      %636 = vrot.lane.b32.xlu0 %v632, 16
      %v637 = vpop.permute.xlu0 %636
      %v638 = vrot.slane %v635, 4
      %v639 = vrot.slane %v637, 4
      %v640 = vsel %vm619, %v638, %v639
      %vm641 = vcmask 130048
      %v642 = vsel %vm641, %v635, %v640
      %644 = vst [vmem:[#allocation3 + $0x10] sm:$0x33] %v642
      %645 = vst [vmem:[#allocation3 + $0x10] sm:$0xcc] 0
      %646 = vst [vmem:[#allocation3 + $0x18] sm:$0xff] 0
      %v647 = vld [vmem:[#allocation2] sm:$0x3f]
      %648 = vst [vmem:[#allocation1] ss:$9 sm:$0xff] %v566
      %v649 = vld [vmem:[#allocation1] sm:$0xff]
      %v650 = vld [vmem:[#allocation1 + $0x9] sm:$0xff]
      %v651 = vshrl.u32 %v649, 16
      %v652 = vpack.i.b16 %v651, %v651
      %v654 = vperm.slane %v652, 0
      %v655 = vshrl.u32 %v650, 16
      %v656 = vpack.i.b16 %v655, %v655
      %v658 = vperm.slane %v656, 0
      %v659 = vunpack.c.l.bf16 %v647
      %v660 = vunpack.c.h.bf16 %v647
      %v661 = vunpack.c.l.bf16 %v654
      %v662 = vunpack.c.l.bf16 %v658
      %v665 = vrot.slane %v662, 4
      %v666 = vsel %vm587, %v661, %v665
      %667 = vrot.lane.b32.xlu0 %v666, 113
      %v668 = vpop.permute.xlu0 %667
      %v669 = vrot.slane %v668, 4
      %vm670 = vcmask 924672
      %v671 = vsel %vm670, %v669, %v668
      %v674 = vmul.f32 %v659, %v671
      %v675 = vmul.f32 %v660, %v669
      %678 = vst [vmem:[#allocation1] ss:$2 sm:$0xff] %v674
      %s679 = scalar_lea.vmem [#allocation1], 16
      %680 = vst [vmem:[%s679] ss:$2 sm:$0xff] %v675
      %v681 = vld.sshfl [vmem:[#allocation1] sm:$0xff pattern:$0x75316420]
      %v682 = vld.sshfl [vmem:[#allocation1 + $0x8] sm:$0xff pattern:$0x75316420]
      %v683 = vld.sshfl [vmem:[#allocation1 + $0x10] sm:$0xff pattern:$0x75316420]
      %v687 = vpack.c.bf16 %v682, %v681
      %v688 = vpack.c.bf16 %v683, %v683
      %691 = vrot.lane.b32.xlu0 %v687, 15
      %v692 = vpop.permute.xlu0 %691
      %693 = vrot.lane.b32.xlu0 %v688, 15
      %v694 = vpop.permute.xlu0 %693
      %v695 = vrot.slane %v692, 4
      %v696 = vrot.slane %v694, 4
      %v697 = vsel %vm619, %v695, %v696
      %vm698 = vcmask 121856
      %v699 = vsel %vm698, %v692, %v697
      %701 = vst [vmem:[#allocation3 + $0x20] sm:$0x33] %v699
      %702 = vst [vmem:[#allocation3 + $0x20] sm:$0xcc] 0
      %703 = vst [vmem:[#allocation3 + $0x28] sm:$0xff] 0
      %v704 = vld [vmem:[#allocation2] sm:$0x3f]
      %v705 = vunpack.c.l.bf16 %v704
      %v706 = vunpack.c.h.bf16 %v704
      %707 = vrot.lane.b32.xlu0 %v588, 127
      %v708 = vpop.permute.xlu0 %707
      %v709 = vrot.slane %v708, 4
      %vm710 = vcmask 1039360
      %v711 = vsel %vm710, %v709, %v708
      %v714 = vmul.f32 %v705, %v711
      %v715 = vmul.f32 %v706, %v709
      %718 = vst [vmem:[#allocation1] ss:$2 sm:$0xff] %v714
      %s719 = scalar_lea.vmem [#allocation1], 16
      %720 = vst [vmem:[%s719] ss:$2 sm:$0xff] %v715
      %v721 = vld.sshfl [vmem:[#allocation1] sm:$0xff pattern:$0x75316420]
      %v722 = vld.sshfl [vmem:[#allocation1 + $0x8] sm:$0xff pattern:$0x75316420]
      %v723 = vld.sshfl [vmem:[#allocation1 + $0x10] sm:$0xff pattern:$0x75316420]
      %v727 = vpack.c.bf16 %v722, %v721
      %v728 = vpack.c.bf16 %v723, %v723
      %731 = vrot.lane.b32.xlu0 %v727, 1
      %v732 = vpop.permute.xlu0 %731
      %733 = vrot.lane.b32.xlu0 %v728, 1
      %v734 = vpop.permute.xlu0 %733
      %v735 = vrot.slane %v732, 4
      %v736 = vrot.slane %v734, 4
      %v737 = vsel %vm619, %v735, %v736
      %vm738 = vcmask 7168
      %v739 = vsel %vm738, %v732, %v737
      %741 = vst [vmem:[#allocation3 + $0x30] sm:$0x33] %v739
      %742 = vst [vmem:[#allocation3 + $0x30] sm:$0xcc] 0
      %743 = vst [vmem:[#allocation3 + $0x38] sm:$0xff] 0
      %v744 = vld [vmem:[#allocation2 + $0x2] sm:$0xf]
      %746 = vst [vmem:[#allocation1] ss:$2 sm:$0xff] %v744
      %v747 = vld.sshfl [vmem:[#allocation1] sm:$0xff pattern:$0x75643120]
      %749 = vst [vmem:[#allocation3 + $0x40] sm:$0x33] %v747
      %750 = vst [vmem:[#allocation3 + $0x40] sm:$0xcc] 0
      %751 = vst [vmem:[#allocation3 + $0x48] sm:$0xff] 0
      %v752 = vld [vmem:[#allocation2 + $0x2] sm:$0x3f]
      %v753 = vunpack.c.l.bf16 %v752
      %v754 = vunpack.c.h.bf16 %v752
      %755 = vrot.lane.b32.xlu0 %v666, 1
      %v756 = vpop.permute.xlu0 %755
      %v757 = vrot.slane %v756, 4
      %vm758 = vcmask 7168
      %v759 = vsel %vm758, %v757, %v756
      %v762 = vmul.f32 %v753, %v759
      %v763 = vmul.f32 %v754, %v757
      %766 = vst [vmem:[#allocation1] ss:$2 sm:$0xff] %v762
      %s767 = scalar_lea.vmem [#allocation1], 16
      %768 = vst [vmem:[%s767] ss:$2 sm:$0xff] %v763
      %v769 = vld.sshfl [vmem:[#allocation1] sm:$0xff pattern:$0x75316420]
      %v770 = vld.sshfl [vmem:[#allocation1 + $0x8] sm:$0xff pattern:$0x75316420]
      %v771 = vld.sshfl [vmem:[#allocation1 + $0x10] sm:$0xff pattern:$0x75316420]
      %v775 = vpack.c.bf16 %v770, %v769
      %v776 = vpack.c.bf16 %v771, %v771
      %779 = vrot.lane.b32.xlu0 %v775, 127
      %v780 = vpop.permute.xlu0 %779
      %781 = vrot.lane.b32.xlu0 %v776, 127
      %v782 = vpop.permute.xlu0 %781
      %v783 = vrot.slane %v780, 4
      %v784 = vrot.slane %v782, 4
      %v785 = vsel %vm619, %v783, %v784
      %vm786 = vcmask 1039360
      %v787 = vsel %vm786, %v780, %v785
      %789 = vst [vmem:[#allocation3 + $0x50] sm:$0x33] %v787
      %790 = vst [vmem:[#allocation3 + $0x50] sm:$0xcc] 0
      %791 = vst [vmem:[#allocation3 + $0x58] sm:$0xff] 0
      %v792 = vld [vmem:[#allocation2 + $0x2] sm:$0x3f]
      %v793 = vunpack.c.l.bf16 %v792
      %v794 = vunpack.c.h.bf16 %v792
      %795 = vrot.lane.b32.xlu0 %v588, 15
      %v796 = vpop.permute.xlu0 %795
      %v797 = vrot.slane %v796, 4
      %vm798 = vcmask 121856
      %v799 = vsel %vm798, %v797, %v796
      %v802 = vmul.f32 %v793, %v799
      %v803 = vmul.f32 %v794, %v797
      %806 = vst [vmem:[#allocation1] ss:$2 sm:$0xff] %v802
      %s807 = scalar_lea.vmem [#allocation1], 16
      %808 = vst [vmem:[%s807] ss:$2 sm:$0xff] %v803
      %v809 = vld.sshfl [vmem:[#allocation1] sm:$0xff pattern:$0x75316420]
      %v810 = vld.sshfl [vmem:[#allocation1 + $0x8] sm:$0xff pattern:$0x75316420]
      %v811 = vld.sshfl [vmem:[#allocation1 + $0x10] sm:$0xff pattern:$0x75316420]
      %v815 = vpack.c.bf16 %v810, %v809
      %v816 = vpack.c.bf16 %v811, %v811
      %819 = vrot.lane.b32.xlu0 %v815, 113
      %v820 = vpop.permute.xlu0 %819
      %821 = vrot.lane.b32.xlu0 %v816, 113
      %v822 = vpop.permute.xlu0 %821
      %v823 = vrot.slane %v820, 4
      %v824 = vrot.slane %v822, 4
      %v825 = vsel %vm619, %v823, %v824
      %vm826 = vcmask 924672
      %v827 = vsel %vm826, %v820, %v825
      %829 = vst [vmem:[#allocation3 + $0x60] sm:$0x33] %v827
      %830 = vst [vmem:[#allocation3 + $0x60] sm:$0xcc] 0
      %831 = vst [vmem:[#allocation3 + $0x68] sm:$0xff] 0
      %v832 = vld [vmem:[#allocation2 + $0x2] sm:$0x3f]
      %834 = vst [vmem:[#allocation1] ss:$2 sm:$0xff] %v832
      %v835 = vld.sshfl [vmem:[#allocation1] sm:$0xff pattern:$0x75643120]
      %v837 = vld.sshfl [vmem:[#allocation1 + $0x8] sm:$0xff pattern:$0x75643120]
      %839 = vrot.lane.b32.xlu0 %v835, 112
      %v840 = vpop.permute.xlu0 %839
      %841 = vrot.lane.b32.xlu0 %v837, 112
      %v842 = vpop.permute.xlu0 %841
      %v843 = vrot.slane %v840, 4
      %v844 = vrot.slane %v842, 4
      %v845 = vsel %vm619, %v843, %v844
      %vm846 = vcmask 916480
      %v847 = vsel %vm846, %v840, %v845
      %849 = vst [vmem:[#allocation3 + $0x70] sm:$0x33] %v847
      %850 = vst [vmem:[#allocation3 + $0x70] sm:$0xcc] 0
      %851 = vst [vmem:[#allocation3 + $0x78] sm:$0xff] 0
      %v852 = vld [vmem:[#allocation2 + $0x2] sm:$0x3f]
      %v853 = vunpack.c.l.bf16 %v852
      %v854 = vunpack.c.h.bf16 %v852
      %855 = vrot.lane.b32.xlu0 %v666, 17
      %v856 = vpop.permute.xlu0 %855
      %v857 = vrot.slane %v856, 4
      %vm858 = vcmask 138240
      %v859 = vsel %vm858, %v857, %v856
      %v862 = vmul.f32 %v853, %v859
      %v863 = vmul.f32 %v854, %v857
      %866 = vst [vmem:[#allocation1] ss:$2 sm:$0xff] %v862
      %s867 = scalar_lea.vmem [#allocation1], 16
      %868 = vst [vmem:[%s867] ss:$2 sm:$0xff] %v863
      %v869 = vld.sshfl [vmem:[#allocation1] sm:$0xff pattern:$0x75316420]
      %v870 = vld.sshfl [vmem:[#allocation1 + $0x8] sm:$0xff pattern:$0x75316420]
      %v871 = vld.sshfl [vmem:[#allocation1 + $0x10] sm:$0xff pattern:$0x75316420]
      %v875 = vpack.c.bf16 %v870, %v869
      %v876 = vpack.c.bf16 %v871, %v871
      %879 = vrot.lane.b32.xlu0 %v875, 111
      %v880 = vpop.permute.xlu0 %879
      %881 = vrot.lane.b32.xlu0 %v876, 111
      %v882 = vpop.permute.xlu0 %881
      %v883 = vrot.slane %v880, 4
      %v884 = vrot.slane %v882, 4
      %v885 = vsel %vm619, %v883, %v884
      %vm886 = vcmask 908288
      %v887 = vsel %vm886, %v880, %v885
      %889 = vst [vmem:[#allocation3 + $0x80] sm:$0x33] %v887
      %890 = vst [vmem:[#allocation3 + $0x80] sm:$0xcc] 0
      %891 = vst [vmem:[#allocation3 + $0x88] sm:$0xff] 0
      %v892 = vld [vmem:[%s3] sm:$0xf]
      %v893 = vld [vmem:[#allocation3] sm:$0xff]
      %v894 = vld [vmem:[#allocation3 + $0x8] sm:$0xff]
      %v895 = vld [vmem:[#allocation3 + $0x10] sm:$0xff]
      %v896 = vld [vmem:[#allocation3 + $0x18] sm:$0xff]
      %v897 = vld [vmem:[#allocation3 + $0x20] sm:$0xff]
      %v898 = vld [vmem:[#allocation3 + $0x28] sm:$0xff]
      %v899 = vld [vmem:[#allocation3 + $0x30] sm:$0xff]
      %v900 = vld [vmem:[#allocation3 + $0x38] sm:$0xff]
      %v901 = vld [vmem:[#allocation3 + $0x40] sm:$0xff]
      %v902 = vld [vmem:[#allocation3 + $0x48] sm:$0xff]
      %v903 = vld [vmem:[#allocation3 + $0x50] sm:$0xff]
      %v904 = vld [vmem:[#allocation3 + $0x58] sm:$0xff]
      %v905 = vld [vmem:[#allocation3 + $0x60] sm:$0xff]
      %v906 = vld [vmem:[#allocation3 + $0x68] sm:$0xff]
      %v907 = vld [vmem:[#allocation3 + $0x70] sm:$0xff]
      %v908 = vld [vmem:[#allocation3 + $0x78] sm:$0xff]
      %v909 = vld [vmem:[#allocation3 + $0x80] sm:$0xff]
      %v910 = vld [vmem:[#allocation3 + $0x88] sm:$0xff]
      %912 = vst [vmem:[#allocation1] ss:$4 sm:$0xff] %v892
      %v913 = vld.sshfl [vmem:[#allocation1] sm:$0xff pattern:$0x73625140]
      %v914 = vld.sshfl [vmem:[#allocation1 + $0x8] sm:$0xff pattern:$0x73625140]
      %v934 = vunpack.c.l.b16 %v893
      %v935 = vunpack.c.h.b16 %v893
      %v936 = vunpack.c.l.b16 %v894
      %v937 = vunpack.c.h.b16 %v894
      %v938 = vunpack.c.l.b16 %v895
      %v939 = vunpack.c.h.b16 %v895
      %v940 = vunpack.c.l.b16 %v896
      %v941 = vunpack.c.h.b16 %v896
      %v942 = vunpack.c.l.b16 %v897
      %v943 = vunpack.c.h.b16 %v897
      %v944 = vunpack.c.l.b16 %v898
      %v945 = vunpack.c.h.b16 %v898
      %v946 = vunpack.c.l.b16 %v899
      %v947 = vunpack.c.h.b16 %v899
      %v948 = vunpack.c.l.b16 %v900
      %v949 = vunpack.c.h.b16 %v900
      %v950 = vunpack.c.l.b16 %v901
      %v951 = vunpack.c.h.b16 %v901
      %v952 = vunpack.c.l.b16 %v902
      %v953 = vunpack.c.h.b16 %v902
      %v954 = vunpack.c.l.b16 %v903
      %v955 = vunpack.c.h.b16 %v903
      %v956 = vunpack.c.l.b16 %v904
      %v957 = vunpack.c.h.b16 %v904
      %v958 = vunpack.c.l.b16 %v905
      %v959 = vunpack.c.h.b16 %v905
      %v960 = vunpack.c.l.b16 %v906
      %v961 = vunpack.c.h.b16 %v906
      %v962 = vunpack.c.l.b16 %v907
      %v963 = vunpack.c.h.b16 %v907
      %v964 = vunpack.c.l.b16 %v908
      %v965 = vunpack.c.h.b16 %v908
      %v966 = vunpack.c.l.b16 %v909
      %v967 = vunpack.c.h.b16 %v909
      %v968 = vunpack.c.l.b16 %v910
      %v969 = vunpack.c.h.b16 %v910
      %v970 = vpack.c.b16 %v936, %v934
      %v971 = vpack.c.b16 %v937, %v935
      %v972 = vpack.c.b16 %v940, %v938
      %v973 = vpack.c.b16 %v941, %v939
      %v974 = vpack.c.b16 %v944, %v942
      %v975 = vpack.c.b16 %v945, %v943
      %v976 = vpack.c.b16 %v948, %v946
      %v977 = vpack.c.b16 %v949, %v947
      %v978 = vpack.c.b16 %v952, %v950
      %v979 = vpack.c.b16 %v953, %v951
      %v980 = vpack.c.b16 %v956, %v954
      %v981 = vpack.c.b16 %v957, %v955
      %v982 = vpack.c.b16 %v960, %v958
      %v983 = vpack.c.b16 %v961, %v959
      %v984 = vpack.c.b16 %v964, %v962
      %v985 = vpack.c.b16 %v965, %v963
      %v986 = vpack.c.b16 %v968, %v966
      %v987 = vpack.c.b16 %v969, %v967
      %vm1006 = vcmask 130048
      %v1007 = vsel %vm1006, %v914, 0
      %1009 = vmatpush.bf16.msra.mxu0 %v984
      %1010 = vmatpush.bf16.msra.mxu0 %v982
      %1011 = vmatpush.bf16.msra.mxu0 %v980
      %1012 = vmatpush.bf16.msra.mxu0 %v978
      %1013 = vmatpush.bf16.msra.mxu0 %v976
      %1014 = vmatpush.bf16.msra.mxu0 %v974
      %1015 = vmatpush.bf16.msra.mxu0 %v972
      %1016 = vmatpush.bf16.msra.mxu0 %v970
      %1017 = vmatmul.bf16.gmra.mxu0 %v913
      %v1018 = vpop.f32.mrf.mxu0
      %v1019 = vadd.f32 0.0, %v1018
      %v1020 = vpop.f32.mrf.mxu0
      %1021 = vdwg.mxu0
      %1022 = vmatpush.bf16.msra.mxu0 0
      %1023 = vmatpush.bf16.msra.mxu0 0
      %1024 = vmatpush.bf16.msra.mxu0 0
      %1025 = vmatpush.bf16.msra.mxu0 0
      %1026 = vmatpush.bf16.msra.mxu0 0
      %1027 = vmatpush.bf16.msra.mxu0 0
      %1028 = vmatpush.bf16.msra.mxu0 0
      %1029 = vmatpush.bf16.msra.mxu0 %v986
      %1030 = vmatmul.bf16.gmra.mxu0 %v1007
      %v1031 = vpop.f32.mrf.mxu0
      %v1032 = vadd.f32 %v1019, %v1031
      %v1033 = vpop.f32.mrf.mxu0
      %1034 = vdwg.mxu0
      %1035 = vmatpush.bf16.msra.mxu0 %v985
      %1036 = vmatpush.bf16.msra.mxu0 %v983
      %1037 = vmatpush.bf16.msra.mxu0 %v981
      %1038 = vmatpush.bf16.msra.mxu0 %v979
      %1039 = vmatpush.bf16.msra.mxu0 %v977
      %1040 = vmatpush.bf16.msra.mxu0 %v975
      %1041 = vmatpush.bf16.msra.mxu0 %v973
      %1042 = vmatpush.bf16.msra.mxu0 %v971
      %1043 = vmatmul.bf16.gmra.mxu0 %v913
      %v1044 = vpop.f32.mrf.mxu0
      %v1045 = vadd.f32 0.0, %v1044
      %v1046 = vpop.f32.mrf.mxu0
      %1047 = vdwg.mxu0
      %1048 = vmatpush.bf16.msra.mxu0 0
      %1049 = vmatpush.bf16.msra.mxu0 0
      %1050 = vmatpush.bf16.msra.mxu0 0
      %1051 = vmatpush.bf16.msra.mxu0 0
      %1052 = vmatpush.bf16.msra.mxu0 0
      %1053 = vmatpush.bf16.msra.mxu0 0
      %1054 = vmatpush.bf16.msra.mxu0 0
      %1055 = vmatpush.bf16.msra.mxu0 %v987
      %1056 = vmatmul.bf16.gmra.mxu0 %v1007
      %v1057 = vpop.f32.mrf.mxu0
      %v1058 = vadd.f32 %v1045, %v1057
      %v1059 = vpop.f32.mrf.mxu0
      %1060 = vdwg.mxu0
      %v1061 = vsel %vm587, %v1032, 0.0
      %v1062 = vsel %vm587, %v1058, 0.0
      %v1063 = vadd.f32 %v1061, %v1062
      %1064 = vadd.xlane.f32.xlu0 %v1063
      %v1065 = vpop.xlane.xlu0 %1064
      %v1066 = vrot.slane %v1065, 4
      %v1067 = vadd.f32 %v1065, %v1066
      %v1068 = vrot.slane %v1067, 2
      %v1069 = vadd.f32 %v1067, %v1068
      %v1070 = vrot.slane %v1069, 1
      %v1071 = vadd.f32 %v1069, %v1070
      %s1072 = vtos %v1071
      %v1073 = vrcp.pop 1024.0
      %v1074 = vmul.f32 1024.0, %v1073
      %v1075 = vsub.f32 1.0, %v1074
      %v1076 = vmul.f32 %v1073, %v1075
      %v1077 = vadd.f32 %v1073, %v1076
      %vm1078 = vweird.f32 %v1073
      %v1079 = vsel %vm1078, %v1073, %v1077
      %s1080 = vtos %v1079
      %s1081 = smul.f32 %s1072, %s1080
      %v1082 = vstv %s1081
      %v1083 = vsub.f32 %v1032, %v1082
      %v1084 = vsub.f32 %v1058, %v1082
      %v1085 = vmul.f32 %v1083, %v1083
      %v1086 = vmul.f32 %v1084, %v1084
      %v1087 = vsel %vm587, %v1085, 0.0
      %v1088 = vsel %vm587, %v1086, 0.0
      %v1089 = vadd.f32 %v1087, %v1088
      %1090 = vadd.xlane.f32.xlu0 %v1089
      %v1091 = vpop.xlane.xlu0 %1090
      %v1092 = vrot.slane %v1091, 4
      %v1093 = vadd.f32 %v1091, %v1092
      %v1094 = vrot.slane %v1093, 2
      %v1095 = vadd.f32 %v1093, %v1094
      %v1096 = vrot.slane %v1095, 1
      %v1097 = vadd.f32 %v1095, %v1096
      %s1098 = vtos %v1097
      %v1099 = vrcp.pop 1024.0
      %v1100 = vmul.f32 1024.0, %v1099
      %v1101 = vsub.f32 1.0, %v1100
      %v1102 = vmul.f32 %v1099, %v1101
      %v1103 = vadd.f32 %v1099, %v1102
      %vm1104 = vweird.f32 %v1099
      %v1105 = vsel %vm1104, %v1099, %v1103
      %s1106 = vtos %v1105
      %s1107 = smul.f32 %s1098, %s1106
      %s1108 = sadd.f32 %s1107, 1e-05
      %v1109 = vstv %s1108
      %v1110 = vrsqrt.pop %v1109
      %v1111 = vmul.f32 %v1110, %v1109
      %v1112 = vmul.f32 %v1111, %v1110
      %v1113 = vmul.f32 0.5, %v1112
      %v1114 = vsub.f32 1.5, %v1113
      %v1115 = vmul.f32 %v1110, %v1114
      %vm1116 = vweird.f32 %v1109
      %vm1117 = vweird.f32 %v1110
      %vm1118 = vmor %vm1116, %vm1117
      %v1119 = vsel %vm1118, %v1110, %v1115
      %s1120 = vtos %v1119
      %v1121 = vstv %s1120
      %v1122 = vmul.f32 %v1083, %v1121
      %v1123 = vmul.f32 %v1084, %v1121
      %v1124 = vld [vmem:[%s4] sm:$0xf]
      %1126 = vset.pattern.permute.xlu0 0
      %1127 = vperm.xlu0 %1126, %v1124
      %v1128 = vpop.permute.xlu0 %1127
      %v1130 = vmul.f32 %v1122, %v1128
      %v1131 = vmul.f32 %v1123, %v1128
      %v1132 = vld [vmem:[%s5] sm:$0xf]
      %1134 = vset.pattern.permute.xlu0 0
      %1135 = vperm.xlu0 %1134, %v1132
      %v1136 = vpop.permute.xlu0 %1135
      %v1138 = vadd.f32 %v1130, %v1136
      %v1139 = vadd.f32 %v1131, %v1136
      %v1140 = vmul.f32 %v1138, 0.5
      %v1141 = vmul.f32 %v1139, 0.5
      %v1142 = vmul.f32 %v1138, 0.70710677
      %v1143 = vmul.f32 %v1139, 0.70710677
      %v1144 = vmul.f32 %v1142, %v1142
      %v1145 = vmin.f32 16.0, %v1144
      %v1146 = vmul.f32 %v1145, 2.1237322e-06
      %v1147 = vadd.f32 %v1146, 0.00028619796
      %v1148 = vmul.f32 %v1145, %v1147
      %v1149 = vadd.f32 %v1148, 0.0036580483
      %v1150 = vmul.f32 %v1145, %v1149
      %v1151 = vadd.f32 %v1150, 0.05243302
      %v1152 = vmul.f32 %v1145, %v1151
      %v1153 = vadd.f32 %v1152, 0.18741608
      %v1154 = vmul.f32 %v1145, %v1153
      %v1155 = vadd.f32 %v1154, 1.1283791
      %v1156 = vmul.f32 %v1142, %v1155
      %v1157 = vmul.f32 %v1145, 3.8918573e-05
      %v1158 = vadd.f32 %v1157, 0.001143296
      %v1159 = vmul.f32 %v1145, %v1158
      %v1160 = vadd.f32 %v1159, 0.014752088
      %v1161 = vmul.f32 %v1145, %v1160
      %v1162 = vadd.f32 %v1161, 0.112945676
      %v1163 = vmul.f32 %v1145, %v1162
      %v1164 = vadd.f32 %v1163, 0.4994258
      %v1165 = vmul.f32 %v1145, %v1164
      %v1166 = vadd.f32 %v1165, 1.0
      %v1167 = vrcp.pop %v1166
      %v1168 = vmul.f32 %v1166, %v1167
      %v1169 = vsub.f32 1.0, %v1168
      %v1170 = vmul.f32 %v1167, %v1169
      %v1171 = vadd.f32 %v1167, %v1170
      %vm1172 = vweird.f32 %v1166
      %vm1173 = vweird.f32 %v1167
      %vm1174 = vmor %vm1172, %vm1173
      %v1175 = vsel %vm1174, %v1167, %v1171
      %v1176 = vand.u32 2147483647, %v1166
      %vm1177 = vcmp.eq.f32.partialorder %v1176, 8.507059e+37
      %v1178 = vand.u32 %v1166, 2147483648
      %v1179 = vor.u32 1.1754944e-38, %v1178
      %v1180 = vsel %vm1177, %v1179, %v1175
      %v1181 = vmul.f32 %v1156, %v1180
      %v1182 = vmin.f32 %v1181, 1.0
      %v1183 = vmax.f32 %v1182, -1.0
      %v1184 = vmul.f32 %v1143, %v1143
      %v1185 = vmin.f32 16.0, %v1184
      %v1186 = vmul.f32 %v1185, 2.1237322e-06
      %v1187 = vadd.f32 %v1186, 0.00028619796
      %v1188 = vmul.f32 %v1185, %v1187
      %v1189 = vadd.f32 %v1188, 0.0036580483
      %v1190 = vmul.f32 %v1185, %v1189
      %v1191 = vadd.f32 %v1190, 0.05243302
      %v1192 = vmul.f32 %v1185, %v1191
      %v1193 = vadd.f32 %v1192, 0.18741608
      %v1194 = vmul.f32 %v1185, %v1193
      %v1195 = vadd.f32 %v1194, 1.1283791
      %v1196 = vmul.f32 %v1143, %v1195
      %v1197 = vmul.f32 %v1185, 3.8918573e-05
      %v1198 = vadd.f32 %v1197, 0.001143296
      %v1199 = vmul.f32 %v1185, %v1198
      %v1200 = vadd.f32 %v1199, 0.014752088
      %v1201 = vmul.f32 %v1185, %v1200
      %v1202 = vadd.f32 %v1201, 0.112945676
      %v1203 = vmul.f32 %v1185, %v1202
      %v1204 = vadd.f32 %v1203, 0.4994258
      %v1205 = vmul.f32 %v1185, %v1204
      %v1206 = vadd.f32 %v1205, 1.0
      %v1207 = vrcp.pop %v1206
      %v1208 = vmul.f32 %v1206, %v1207
      %v1209 = vsub.f32 1.0, %v1208
      %v1210 = vmul.f32 %v1207, %v1209
      %v1211 = vadd.f32 %v1207, %v1210
      %vm1212 = vweird.f32 %v1206
      %vm1213 = vweird.f32 %v1207
      %vm1214 = vmor %vm1212, %vm1213
      %v1215 = vsel %vm1214, %v1207, %v1211
      %v1216 = vand.u32 2147483647, %v1206
      %vm1217 = vcmp.eq.f32.partialorder %v1216, 8.507059e+37
      %v1218 = vand.u32 %v1206, 2147483648
      %v1219 = vor.u32 1.1754944e-38, %v1218
      %v1220 = vsel %vm1217, %v1219, %v1215
      %v1221 = vmul.f32 %v1196, %v1220
      %v1222 = vmin.f32 %v1221, 1.0
      %v1223 = vmax.f32 %v1222, -1.0
      %v1224 = vadd.f32 %v1183, 1.0
      %v1225 = vadd.f32 %v1223, 1.0
      %v1226 = vmul.f32 %v1140, %v1224
      %v1227 = vmul.f32 %v1141, %v1225
      %v1228 = vpack.c.bf16 %v1227, %v1226
      %v1230 = vrot.slane %v1228, 2
      %vm1231 = vcmask 1041408
      %v1234 = vsel %vm1231, %v1228, %v1230
      %1236 = vst [vmem:[#allocation2 + $0x2] sm:$0xf] %v1234
      %v1237 = vld [vmem:[#allocation2] sm:$0x3f]
      %v1238 = vunpack.c.l.bf16 %v1237
      %v1239 = vunpack.c.h.bf16 %v1237
      %v1240 = vmul.f32 %v1238, %v593
      %v1241 = vmul.f32 %v1239, %v591
      %1244 = vst [vmem:[#allocation1] ss:$2 sm:$0xff] %v1240
      %s1245 = scalar_lea.vmem [#allocation1], 16
      %1246 = vst [vmem:[%s1245] ss:$2 sm:$0xff] %v1241
      %v1247 = vld.sshfl [vmem:[#allocation1] sm:$0xff pattern:$0x75316420]
      %v1248 = vld.sshfl [vmem:[#allocation1 + $0x8] sm:$0xff pattern:$0x75316420]
      %v1249 = vld.sshfl [vmem:[#allocation1 + $0x10] sm:$0xff pattern:$0x75316420]
      %v1253 = vpack.c.bf16 %v1248, %v1247
      %v1254 = vpack.c.bf16 %v1249, %v1249
      %1257 = vrot.lane.b32.xlu0 %v1253, 17
      %v1258 = vpop.permute.xlu0 %1257
      %1259 = vrot.lane.b32.xlu0 %v1254, 17
      %v1260 = vpop.permute.xlu0 %1259
      %v1261 = vrot.slane %v1258, 4
      %v1262 = vrot.slane %v1260, 4
      %v1263 = vsel %vm619, %v1261, %v1262
      %v1264 = vsel %vm621, %v1258, %v1263
      %1266 = vst [vmem:[#allocation3] sm:$0x33] %v1264
      %1267 = vst [vmem:[#allocation3] sm:$0xcc] 0
      %1268 = vst [vmem:[#allocation3 + $0x8] sm:$0xff] 0
      %v1269 = vld [vmem:[#allocation2] sm:$0x3f]
      %1271 = vst [vmem:[#allocation1] ss:$2 sm:$0xff] %v1269
      %v1272 = vld.sshfl [vmem:[#allocation1] sm:$0xff pattern:$0x75643120]
      %v1274 = vld.sshfl [vmem:[#allocation1 + $0x8] sm:$0xff pattern:$0x75643120]
      %1276 = vrot.lane.b32.xlu0 %v1272, 16
      %v1277 = vpop.permute.xlu0 %1276
      %1278 = vrot.lane.b32.xlu0 %v1274, 16
      %v1279 = vpop.permute.xlu0 %1278
      %v1280 = vrot.slane %v1277, 4
      %v1281 = vrot.slane %v1279, 4
      %v1282 = vsel %vm619, %v1280, %v1281
      %v1283 = vsel %vm641, %v1277, %v1282
      %1285 = vst [vmem:[#allocation3 + $0x10] sm:$0x33] %v1283
      %1286 = vst [vmem:[#allocation3 + $0x10] sm:$0xcc] 0
      %1287 = vst [vmem:[#allocation3 + $0x18] sm:$0xff] 0
      %v1288 = vld [vmem:[#allocation2] sm:$0x3f]
      %v1289 = vunpack.c.l.bf16 %v1288
      %v1290 = vunpack.c.h.bf16 %v1288
      %v1291 = vmul.f32 %v1289, %v671
      %v1292 = vmul.f32 %v1290, %v669
      %1295 = vst [vmem:[#allocation1] ss:$2 sm:$0xff] %v1291
      %s1296 = scalar_lea.vmem [#allocation1], 16
      %1297 = vst [vmem:[%s1296] ss:$2 sm:$0xff] %v1292
      %v1298 = vld.sshfl [vmem:[#allocation1] sm:$0xff pattern:$0x75316420]
      %v1299 = vld.sshfl [vmem:[#allocation1 + $0x8] sm:$0xff pattern:$0x75316420]
      %v1300 = vld.sshfl [vmem:[#allocation1 + $0x10] sm:$0xff pattern:$0x75316420]
      %v1304 = vpack.c.bf16 %v1299, %v1298
      %v1305 = vpack.c.bf16 %v1300, %v1300
      %1308 = vrot.lane.b32.xlu0 %v1304, 15
      %v1309 = vpop.permute.xlu0 %1308
      %1310 = vrot.lane.b32.xlu0 %v1305, 15
      %v1311 = vpop.permute.xlu0 %1310
      %v1312 = vrot.slane %v1309, 4
      %v1313 = vrot.slane %v1311, 4
      %v1314 = vsel %vm619, %v1312, %v1313
      %v1315 = vsel %vm698, %v1309, %v1314
      %1317 = vst [vmem:[#allocation3 + $0x20] sm:$0x33] %v1315
      %1318 = vst [vmem:[#allocation3 + $0x20] sm:$0xcc] 0
      %1319 = vst [vmem:[#allocation3 + $0x28] sm:$0xff] 0
      %v1320 = vld [vmem:[#allocation2] sm:$0x3f]
      %v1321 = vunpack.c.l.bf16 %v1320
      %v1322 = vunpack.c.h.bf16 %v1320
      %v1323 = vmul.f32 %v1321, %v711
      %v1324 = vmul.f32 %v1322, %v709
      %1327 = vst [vmem:[#allocation1] ss:$2 sm:$0xff] %v1323
      %s1328 = scalar_lea.vmem [#allocation1], 16
      %1329 = vst [vmem:[%s1328] ss:$2 sm:$0xff] %v1324
      %v1330 = vld.sshfl [vmem:[#allocation1] sm:$0xff pattern:$0x75316420]
      %v1331 = vld.sshfl [vmem:[#allocation1 + $0x8] sm:$0xff pattern:$0x75316420]
      %v1332 = vld.sshfl [vmem:[#allocation1 + $0x10] sm:$0xff pattern:$0x75316420]
      %v1336 = vpack.c.bf16 %v1331, %v1330
      %v1337 = vpack.c.bf16 %v1332, %v1332
      %1340 = vrot.lane.b32.xlu0 %v1336, 1
      %v1341 = vpop.permute.xlu0 %1340
      %1342 = vrot.lane.b32.xlu0 %v1337, 1
      %v1343 = vpop.permute.xlu0 %1342
      %v1344 = vrot.slane %v1341, 4
      %v1345 = vrot.slane %v1343, 4
      %v1346 = vsel %vm619, %v1344, %v1345
      %v1347 = vsel %vm738, %v1341, %v1346
      %1349 = vst [vmem:[#allocation3 + $0x30] sm:$0x33] %v1347
      %1350 = vst [vmem:[#allocation3 + $0x30] sm:$0xcc] 0
      %1351 = vst [vmem:[#allocation3 + $0x38] sm:$0xff] 0
      %v1352 = vld [vmem:[#allocation2 + $0x2] sm:$0xf]
      %1354 = vst [vmem:[#allocation1] ss:$2 sm:$0xff] %v1352
      %v1355 = vld.sshfl [vmem:[#allocation1] sm:$0xff pattern:$0x75643120]
      %1357 = vst [vmem:[#allocation3 + $0x40] sm:$0x33] %v1355
      %1358 = vst [vmem:[#allocation3 + $0x40] sm:$0xcc] 0
      %1359 = vst [vmem:[#allocation3 + $0x48] sm:$0xff] 0
      %v1360 = vld [vmem:[#allocation2 + $0x2] sm:$0x3f]
      %v1361 = vunpack.c.l.bf16 %v1360
      %v1362 = vunpack.c.h.bf16 %v1360
      %v1363 = vmul.f32 %v1361, %v759
      %v1364 = vmul.f32 %v1362, %v757
      %1367 = vst [vmem:[#allocation1] ss:$2 sm:$0xff] %v1363
      %s1368 = scalar_lea.vmem [#allocation1], 16
      %1369 = vst [vmem:[%s1368] ss:$2 sm:$0xff] %v1364
      %v1370 = vld.sshfl [vmem:[#allocation1] sm:$0xff pattern:$0x75316420]
      %v1371 = vld.sshfl [vmem:[#allocation1 + $0x8] sm:$0xff pattern:$0x75316420]
      %v1372 = vld.sshfl [vmem:[#allocation1 + $0x10] sm:$0xff pattern:$0x75316420]
      %v1376 = vpack.c.bf16 %v1371, %v1370
      %v1377 = vpack.c.bf16 %v1372, %v1372
      %1380 = vrot.lane.b32.xlu0 %v1376, 127
      %v1381 = vpop.permute.xlu0 %1380
      %1382 = vrot.lane.b32.xlu0 %v1377, 127
      %v1383 = vpop.permute.xlu0 %1382
      %v1384 = vrot.slane %v1381, 4
      %v1385 = vrot.slane %v1383, 4
      %v1386 = vsel %vm619, %v1384, %v1385
      %v1387 = vsel %vm786, %v1381, %v1386
      %1389 = vst [vmem:[#allocation3 + $0x50] sm:$0x33] %v1387
      %1390 = vst [vmem:[#allocation3 + $0x50] sm:$0xcc] 0
      %1391 = vst [vmem:[#allocation3 + $0x58] sm:$0xff] 0
      %v1392 = vld [vmem:[#allocation2 + $0x2] sm:$0x3f]
      %v1393 = vunpack.c.l.bf16 %v1392
      %v1394 = vunpack.c.h.bf16 %v1392
      %v1395 = vmul.f32 %v1393, %v799
      %v1396 = vmul.f32 %v1394, %v797
      %1399 = vst [vmem:[#allocation1] ss:$2 sm:$0xff] %v1395
      %s1400 = scalar_lea.vmem [#allocation1], 16
      %1401 = vst [vmem:[%s1400] ss:$2 sm:$0xff] %v1396
      %v1402 = vld.sshfl [vmem:[#allocation1] sm:$0xff pattern:$0x75316420]
      %v1403 = vld.sshfl [vmem:[#allocation1 + $0x8] sm:$0xff pattern:$0x75316420]
      %v1404 = vld.sshfl [vmem:[#allocation1 + $0x10] sm:$0xff pattern:$0x75316420]
      %v1408 = vpack.c.bf16 %v1403, %v1402
      %v1409 = vpack.c.bf16 %v1404, %v1404
      %1412 = vrot.lane.b32.xlu0 %v1408, 113
      %v1413 = vpop.permute.xlu0 %1412
      %1414 = vrot.lane.b32.xlu0 %v1409, 113
      %v1415 = vpop.permute.xlu0 %1414
      %v1416 = vrot.slane %v1413, 4
      %v1417 = vrot.slane %v1415, 4
      %v1418 = vsel %vm619, %v1416, %v1417
      %v1419 = vsel %vm826, %v1413, %v1418
      %1421 = vst [vmem:[#allocation3 + $0x60] sm:$0x33] %v1419
      %1422 = vst [vmem:[#allocation3 + $0x60] sm:$0xcc] 0
      %1423 = vst [vmem:[#allocation3 + $0x68] sm:$0xff] 0
      %v1424 = vld [vmem:[#allocation2 + $0x2] sm:$0x3f]
      %1426 = vst [vmem:[#allocation1] ss:$2 sm:$0xff] %v1424
      %v1427 = vld.sshfl [vmem:[#allocation1] sm:$0xff pattern:$0x75643120]
      %v1429 = vld.sshfl [vmem:[#allocation1 + $0x8] sm:$0xff pattern:$0x75643120]
      %1431 = vrot.lane.b32.xlu0 %v1427, 112
      %v1432 = vpop.permute.xlu0 %1431
      %1433 = vrot.lane.b32.xlu0 %v1429, 112
      %v1434 = vpop.permute.xlu0 %1433
      %v1435 = vrot.slane %v1432, 4
      %v1436 = vrot.slane %v1434, 4
      %v1437 = vsel %vm619, %v1435, %v1436
      %v1438 = vsel %vm846, %v1432, %v1437
      %1440 = vst [vmem:[#allocation3 + $0x70] sm:$0x33] %v1438
      %1441 = vst [vmem:[#allocation3 + $0x70] sm:$0xcc] 0
      %1442 = vst [vmem:[#allocation3 + $0x78] sm:$0xff] 0
      %v1443 = vld [vmem:[#allocation2 + $0x2] sm:$0x3f]
      %v1444 = vunpack.c.l.bf16 %v1443
      %v1445 = vunpack.c.h.bf16 %v1443
      %v1446 = vmul.f32 %v1444, %v859
      %v1447 = vmul.f32 %v1445, %v857
      %1450 = vst [vmem:[#allocation1] ss:$2 sm:$0xff] %v1446
      %s1451 = scalar_lea.vmem [#allocation1], 16
      %1452 = vst [vmem:[%s1451] ss:$2 sm:$0xff] %v1447
      %v1453 = vld.sshfl [vmem:[#allocation1] sm:$0xff pattern:$0x75316420]
      %v1454 = vld.sshfl [vmem:[#allocation1 + $0x8] sm:$0xff pattern:$0x75316420]
      %v1455 = vld.sshfl [vmem:[#allocation1 + $0x10] sm:$0xff pattern:$0x75316420]
      %v1459 = vpack.c.bf16 %v1454, %v1453
      %v1460 = vpack.c.bf16 %v1455, %v1455
      %1463 = vrot.lane.b32.xlu0 %v1459, 111
      %v1464 = vpop.permute.xlu0 %1463
      %1465 = vrot.lane.b32.xlu0 %v1460, 111
      %v1466 = vpop.permute.xlu0 %1465
      %v1467 = vrot.slane %v1464, 4
      %v1468 = vrot.slane %v1466, 4
      %v1469 = vsel %vm619, %v1467, %v1468
      %v1470 = vsel %vm886, %v1464, %v1469
      %1472 = vst [vmem:[#allocation3 + $0x80] sm:$0x33] %v1470
      %1473 = vst [vmem:[#allocation3 + $0x80] sm:$0xcc] 0
      %1474 = vst [vmem:[#allocation3 + $0x88] sm:$0xff] 0
      %v1475 = vld [vmem:[%s6] sm:$0xf]
      %v1476 = vld [vmem:[#allocation3] sm:$0xff]
      %v1477 = vld [vmem:[#allocation3 + $0x8] sm:$0xff]
      %v1478 = vld [vmem:[#allocation3 + $0x10] sm:$0xff]
      %v1479 = vld [vmem:[#allocation3 + $0x18] sm:$0xff]
      %v1480 = vld [vmem:[#allocation3 + $0x20] sm:$0xff]
      %v1481 = vld [vmem:[#allocation3 + $0x28] sm:$0xff]
      %v1482 = vld [vmem:[#allocation3 + $0x30] sm:$0xff]
      %v1483 = vld [vmem:[#allocation3 + $0x38] sm:$0xff]
      %v1484 = vld [vmem:[#allocation3 + $0x40] sm:$0xff]
      %v1485 = vld [vmem:[#allocation3 + $0x48] sm:$0xff]
      %v1486 = vld [vmem:[#allocation3 + $0x50] sm:$0xff]
      %v1487 = vld [vmem:[#allocation3 + $0x58] sm:$0xff]
      %v1488 = vld [vmem:[#allocation3 + $0x60] sm:$0xff]
      %v1489 = vld [vmem:[#allocation3 + $0x68] sm:$0xff]
      %v1490 = vld [vmem:[#allocation3 + $0x70] sm:$0xff]
      %v1491 = vld [vmem:[#allocation3 + $0x78] sm:$0xff]
      %v1492 = vld [vmem:[#allocation3 + $0x80] sm:$0xff]
      %v1493 = vld [vmem:[#allocation3 + $0x88] sm:$0xff]
      %1495 = vst [vmem:[#allocation1] ss:$4 sm:$0xff] %v1475
      %v1496 = vld.sshfl [vmem:[#allocation1] sm:$0xff pattern:$0x73625140]
      %v1497 = vld.sshfl [vmem:[#allocation1 + $0x8] sm:$0xff pattern:$0x73625140]
      %v1517 = vunpack.c.l.b16 %v1476
      %v1518 = vunpack.c.h.b16 %v1476
      %v1519 = vunpack.c.l.b16 %v1477
      %v1520 = vunpack.c.h.b16 %v1477
      %v1521 = vunpack.c.l.b16 %v1478
      %v1522 = vunpack.c.h.b16 %v1478
      %v1523 = vunpack.c.l.b16 %v1479
      %v1524 = vunpack.c.h.b16 %v1479
      %v1525 = vunpack.c.l.b16 %v1480
      %v1526 = vunpack.c.h.b16 %v1480
      %v1527 = vunpack.c.l.b16 %v1481
      %v1528 = vunpack.c.h.b16 %v1481
      %v1529 = vunpack.c.l.b16 %v1482
      %v1530 = vunpack.c.h.b16 %v1482
      %v1531 = vunpack.c.l.b16 %v1483
      %v1532 = vunpack.c.h.b16 %v1483
      %v1533 = vunpack.c.l.b16 %v1484
      %v1534 = vunpack.c.h.b16 %v1484
      %v1535 = vunpack.c.l.b16 %v1485
      %v1536 = vunpack.c.h.b16 %v1485
      %v1537 = vunpack.c.l.b16 %v1486
      %v1538 = vunpack.c.h.b16 %v1486
      %v1539 = vunpack.c.l.b16 %v1487
      %v1540 = vunpack.c.h.b16 %v1487
      %v1541 = vunpack.c.l.b16 %v1488
      %v1542 = vunpack.c.h.b16 %v1488
      %v1543 = vunpack.c.l.b16 %v1489
      %v1544 = vunpack.c.h.b16 %v1489
      %v1545 = vunpack.c.l.b16 %v1490
      %v1546 = vunpack.c.h.b16 %v1490
      %v1547 = vunpack.c.l.b16 %v1491
      %v1548 = vunpack.c.h.b16 %v1491
      %v1549 = vunpack.c.l.b16 %v1492
      %v1550 = vunpack.c.h.b16 %v1492
      %v1551 = vunpack.c.l.b16 %v1493
      %v1552 = vunpack.c.h.b16 %v1493
      %v1553 = vpack.c.b16 %v1519, %v1517
      %v1554 = vpack.c.b16 %v1520, %v1518
      %v1555 = vpack.c.b16 %v1523, %v1521
      %v1556 = vpack.c.b16 %v1524, %v1522
      %v1557 = vpack.c.b16 %v1527, %v1525
      %v1558 = vpack.c.b16 %v1528, %v1526
      %v1559 = vpack.c.b16 %v1531, %v1529
      %v1560 = vpack.c.b16 %v1532, %v1530
      %v1561 = vpack.c.b16 %v1535, %v1533
      %v1562 = vpack.c.b16 %v1536, %v1534
      %v1563 = vpack.c.b16 %v1539, %v1537
      %v1564 = vpack.c.b16 %v1540, %v1538
      %v1565 = vpack.c.b16 %v1543, %v1541
      %v1566 = vpack.c.b16 %v1544, %v1542
      %v1567 = vpack.c.b16 %v1547, %v1545
      %v1568 = vpack.c.b16 %v1548, %v1546
      %v1569 = vpack.c.b16 %v1551, %v1549
      %v1570 = vpack.c.b16 %v1552, %v1550
      %v1589 = vsel %vm1006, %v1497, 0
      %1591 = vmatpush.bf16.msra.mxu0 %v1567
      %1592 = vmatpush.bf16.msra.mxu0 %v1565
      %1593 = vmatpush.bf16.msra.mxu0 %v1563
      %1594 = vmatpush.bf16.msra.mxu0 %v1561
      %1595 = vmatpush.bf16.msra.mxu0 %v1559
      %1596 = vmatpush.bf16.msra.mxu0 %v1557
      %1597 = vmatpush.bf16.msra.mxu0 %v1555
      %1598 = vmatpush.bf16.msra.mxu0 %v1553
      %1599 = vmatmul.bf16.gmra.mxu0 %v1496
      %v1600 = vpop.f32.mrf.mxu0
      %v1601 = vadd.f32 0.0, %v1600
      %v1602 = vpop.f32.mrf.mxu0
      %1603 = vdwg.mxu0
      %1604 = vmatpush.bf16.msra.mxu0 0
      %1605 = vmatpush.bf16.msra.mxu0 0
      %1606 = vmatpush.bf16.msra.mxu0 0
      %1607 = vmatpush.bf16.msra.mxu0 0
      %1608 = vmatpush.bf16.msra.mxu0 0
      %1609 = vmatpush.bf16.msra.mxu0 0
      %1610 = vmatpush.bf16.msra.mxu0 0
      %1611 = vmatpush.bf16.msra.mxu0 %v1569
      %1612 = vmatmul.bf16.gmra.mxu0 %v1589
      %v1613 = vpop.f32.mrf.mxu0
      %v1614 = vadd.f32 %v1601, %v1613
      %v1615 = vpop.f32.mrf.mxu0
      %1616 = vdwg.mxu0
      %1617 = vmatpush.bf16.msra.mxu0 %v1568
      %1618 = vmatpush.bf16.msra.mxu0 %v1566
      %1619 = vmatpush.bf16.msra.mxu0 %v1564
      %1620 = vmatpush.bf16.msra.mxu0 %v1562
      %1621 = vmatpush.bf16.msra.mxu0 %v1560
      %1622 = vmatpush.bf16.msra.mxu0 %v1558
      %1623 = vmatpush.bf16.msra.mxu0 %v1556
      %1624 = vmatpush.bf16.msra.mxu0 %v1554
      %1625 = vmatmul.bf16.gmra.mxu0 %v1496
      %v1626 = vpop.f32.mrf.mxu0
      %v1627 = vadd.f32 0.0, %v1626
      %v1628 = vpop.f32.mrf.mxu0
      %1629 = vdwg.mxu0
      %1630 = vmatpush.bf16.msra.mxu0 0
      %1631 = vmatpush.bf16.msra.mxu0 0
      %1632 = vmatpush.bf16.msra.mxu0 0
      %1633 = vmatpush.bf16.msra.mxu0 0
      %1634 = vmatpush.bf16.msra.mxu0 0
      %1635 = vmatpush.bf16.msra.mxu0 0
      %1636 = vmatpush.bf16.msra.mxu0 0
      %1637 = vmatpush.bf16.msra.mxu0 %v1570
      %1638 = vmatmul.bf16.gmra.mxu0 %v1589
      %v1639 = vpop.f32.mrf.mxu0
      %v1640 = vadd.f32 %v1627, %v1639
      %v1641 = vpop.f32.mrf.mxu0
      %1642 = vdwg.mxu0
      %v1643 = vsel %vm587, %v1614, 0.0
      %v1644 = vsel %vm587, %v1640, 0.0
      %v1645 = vadd.f32 %v1643, %v1644
      %1646 = vadd.xlane.f32.xlu0 %v1645
      %v1647 = vpop.xlane.xlu0 %1646
      %v1648 = vrot.slane %v1647, 4
      %v1649 = vadd.f32 %v1647, %v1648
      %v1650 = vrot.slane %v1649, 2
      %v1651 = vadd.f32 %v1649, %v1650
      %v1652 = vrot.slane %v1651, 1
      %v1653 = vadd.f32 %v1651, %v1652
      %s1654 = vtos %v1653
      %v1655 = vrcp.pop 1024.0
      %v1656 = vmul.f32 1024.0, %v1655
      %v1657 = vsub.f32 1.0, %v1656
      %v1658 = vmul.f32 %v1655, %v1657
      %v1659 = vadd.f32 %v1655, %v1658
      %vm1660 = vweird.f32 %v1655
      %v1661 = vsel %vm1660, %v1655, %v1659
      %s1662 = vtos %v1661
      %s1663 = smul.f32 %s1654, %s1662
      %v1664 = vstv %s1663
      %v1665 = vsub.f32 %v1614, %v1664
      %v1666 = vsub.f32 %v1640, %v1664
      %v1667 = vmul.f32 %v1665, %v1665
      %v1668 = vmul.f32 %v1666, %v1666
      %v1669 = vsel %vm587, %v1667, 0.0
      %v1670 = vsel %vm587, %v1668, 0.0
      %v1671 = vadd.f32 %v1669, %v1670
      %1672 = vadd.xlane.f32.xlu0 %v1671
      %v1673 = vpop.xlane.xlu0 %1672
      %v1674 = vrot.slane %v1673, 4
      %v1675 = vadd.f32 %v1673, %v1674
      %v1676 = vrot.slane %v1675, 2
      %v1677 = vadd.f32 %v1675, %v1676
      %v1678 = vrot.slane %v1677, 1
      %v1679 = vadd.f32 %v1677, %v1678
      %s1680 = vtos %v1679
      %v1681 = vrcp.pop 1024.0
      %v1682 = vmul.f32 1024.0, %v1681
      %v1683 = vsub.f32 1.0, %v1682
      %v1684 = vmul.f32 %v1681, %v1683
      %v1685 = vadd.f32 %v1681, %v1684
      %vm1686 = vweird.f32 %v1681
      %v1687 = vsel %vm1686, %v1681, %v1685
      %s1688 = vtos %v1687
      %s1689 = smul.f32 %s1680, %s1688
      %s1690 = sadd.f32 %s1689, 1e-05
      %v1691 = vstv %s1690
      %v1692 = vrsqrt.pop %v1691
      %v1693 = vmul.f32 %v1692, %v1691
      %v1694 = vmul.f32 %v1693, %v1692
      %v1695 = vmul.f32 0.5, %v1694
      %v1696 = vsub.f32 1.5, %v1695
      %v1697 = vmul.f32 %v1692, %v1696
      %vm1698 = vweird.f32 %v1691
      %vm1699 = vweird.f32 %v1692
      %vm1700 = vmor %vm1698, %vm1699
      %v1701 = vsel %vm1700, %v1692, %v1697
      %s1702 = vtos %v1701
      %v1703 = vstv %s1702
      %v1704 = vmul.f32 %v1665, %v1703
      %v1705 = vmul.f32 %v1666, %v1703
      %v1706 = vld [vmem:[%s7] sm:$0xf]
      %1708 = vset.pattern.permute.xlu0 0
      %1709 = vperm.xlu0 %1708, %v1706
      %v1710 = vpop.permute.xlu0 %1709
      %v1712 = vmul.f32 %v1704, %v1710
      %v1713 = vmul.f32 %v1705, %v1710
      %v1714 = vld [vmem:[%s8] sm:$0xf]
      %1716 = vset.pattern.permute.xlu0 0
      %1717 = vperm.xlu0 %1716, %v1714
      %v1718 = vpop.permute.xlu0 %1717
      %v1720 = vadd.f32 %v1712, %v1718
      %v1721 = vadd.f32 %v1713, %v1718
      %v1722 = vld [vmem:[%s554] sm:$0xf]
      %v1723 = vunpack.c.l.bf16 %v1722
      %v1726 = vrot.slane %v1721, 4
      %v1727 = vsel %vm587, %v1720, %v1726
      %v1729 = vadd.f32 %v1723, %v1727
      %v1730 = vmul.f32 %v1729, 0.5
      %v1731 = vmul.f32 %v1729, 0.70710677
      %v1732 = vmul.f32 %v1731, %v1731
      %v1733 = vmin.f32 16.0, %v1732
      %v1734 = vmul.f32 %v1733, 2.1237322e-06
      %v1735 = vadd.f32 %v1734, 0.00028619796
      %v1736 = vmul.f32 %v1733, %v1735
      %v1737 = vadd.f32 %v1736, 0.0036580483
      %v1738 = vmul.f32 %v1733, %v1737
      %v1739 = vadd.f32 %v1738, 0.05243302
      %v1740 = vmul.f32 %v1733, %v1739
      %v1741 = vadd.f32 %v1740, 0.18741608
      %v1742 = vmul.f32 %v1733, %v1741
      %v1743 = vadd.f32 %v1742, 1.1283791
      %v1744 = vmul.f32 %v1731, %v1743
      %v1745 = vmul.f32 %v1733, 3.8918573e-05
      %v1746 = vadd.f32 %v1745, 0.001143296
      %v1747 = vmul.f32 %v1733, %v1746
      %v1748 = vadd.f32 %v1747, 0.014752088
      %v1749 = vmul.f32 %v1733, %v1748
      %v1750 = vadd.f32 %v1749, 0.112945676
      %v1751 = vmul.f32 %v1733, %v1750
      %v1752 = vadd.f32 %v1751, 0.4994258
      %v1753 = vmul.f32 %v1733, %v1752
      %v1754 = vadd.f32 %v1753, 1.0
      %v1755 = vrcp.pop %v1754
      %v1756 = vmul.f32 %v1754, %v1755
      %v1757 = vsub.f32 1.0, %v1756
      %v1758 = vmul.f32 %v1755, %v1757
      %v1759 = vadd.f32 %v1755, %v1758
      %vm1760 = vweird.f32 %v1754
      %vm1761 = vweird.f32 %v1755
      %vm1762 = vmor %vm1760, %vm1761
      %v1763 = vsel %vm1762, %v1755, %v1759
      %v1764 = vand.u32 2147483647, %v1754
      %vm1765 = vcmp.eq.f32.partialorder %v1764, 8.507059e+37
      %v1766 = vand.u32 %v1754, 2147483648
      %v1767 = vor.u32 1.1754944e-38, %v1766
      %v1768 = vsel %vm1765, %v1767, %v1763
      %v1769 = vmul.f32 %v1744, %v1768
      %v1770 = vmin.f32 %v1769, 1.0
      %v1771 = vmax.f32 %v1770, -1.0
      %v1772 = vadd.f32 %v1771, 1.0
      %v1773 = vmul.f32 %v1730, %v1772
      %1775 = vst [vmem:[#allocation1] ss:$2 sm:$0xff] %v1773
      %v1776 = vld.sshfl [vmem:[#allocation1] sm:$0xff pattern:$0x75316420]
      %v1777 = vld.sshfl [vmem:[#allocation1 + $0x8] sm:$0xff pattern:$0x75316420]
      %v1780 = vpack.c.bf16 %v1777, %v1776
      %v1782 = vrot.slane %v1780, 2
      %v1785 = vsel %vm1231, %v1780, %v1782
      %1787 = vst [vmem:[#allocation2 + $0x2] sm:$0xf] %v1785
      %v1788 = vld [vmem:[#allocation2] sm:$0x3f]
      %v1789 = vunpack.c.l.bf16 %v1788
      %v1790 = vunpack.c.h.bf16 %v1788
      %v1791 = vmul.f32 %v1789, %v593
      %v1792 = vmul.f32 %v1790, %v591
      %1795 = vst [vmem:[#allocation1] ss:$2 sm:$0xff] %v1791
      %s1796 = scalar_lea.vmem [#allocation1], 16
      %1797 = vst [vmem:[%s1796] ss:$2 sm:$0xff] %v1792
      %v1798 = vld.sshfl [vmem:[#allocation1] sm:$0xff pattern:$0x75316420]
      %v1799 = vld.sshfl [vmem:[#allocation1 + $0x8] sm:$0xff pattern:$0x75316420]
      %v1800 = vld.sshfl [vmem:[#allocation1 + $0x10] sm:$0xff pattern:$0x75316420]
      %v1804 = vpack.c.bf16 %v1799, %v1798
      %v1805 = vpack.c.bf16 %v1800, %v1800
      %1808 = vrot.lane.b32.xlu0 %v1804, 17
      %v1809 = vpop.permute.xlu0 %1808
      %1810 = vrot.lane.b32.xlu0 %v1805, 17
      %v1811 = vpop.permute.xlu0 %1810
      %v1812 = vrot.slane %v1809, 4
      %v1813 = vrot.slane %v1811, 4
      %v1814 = vsel %vm619, %v1812, %v1813
      %v1815 = vsel %vm621, %v1809, %v1814
      %1817 = vst [vmem:[#allocation3] sm:$0x33] %v1815
      %1818 = vst [vmem:[#allocation3] sm:$0xcc] 0
      %1819 = vst [vmem:[#allocation3 + $0x8] sm:$0xff] 0
      %v1820 = vld [vmem:[#allocation2] sm:$0x3f]
      %1822 = vst [vmem:[#allocation1] ss:$2 sm:$0xff] %v1820
      %v1823 = vld.sshfl [vmem:[#allocation1] sm:$0xff pattern:$0x75643120]
      %v1825 = vld.sshfl [vmem:[#allocation1 + $0x8] sm:$0xff pattern:$0x75643120]
      %1827 = vrot.lane.b32.xlu0 %v1823, 16
      %v1828 = vpop.permute.xlu0 %1827
      %1829 = vrot.lane.b32.xlu0 %v1825, 16
      %v1830 = vpop.permute.xlu0 %1829
      %v1831 = vrot.slane %v1828, 4
      %v1832 = vrot.slane %v1830, 4
      %v1833 = vsel %vm619, %v1831, %v1832
      %v1834 = vsel %vm641, %v1828, %v1833
      %1836 = vst [vmem:[#allocation3 + $0x10] sm:$0x33] %v1834
      %1837 = vst [vmem:[#allocation3 + $0x10] sm:$0xcc] 0
      %1838 = vst [vmem:[#allocation3 + $0x18] sm:$0xff] 0
      %v1839 = vld [vmem:[#allocation2] sm:$0x3f]
      %v1840 = vunpack.c.l.bf16 %v1839
      %v1841 = vunpack.c.h.bf16 %v1839
      %v1842 = vmul.f32 %v1840, %v671
      %v1843 = vmul.f32 %v1841, %v669
      %1846 = vst [vmem:[#allocation1] ss:$2 sm:$0xff] %v1842
      %s1847 = scalar_lea.vmem [#allocation1], 16
      %1848 = vst [vmem:[%s1847] ss:$2 sm:$0xff] %v1843
      %v1849 = vld.sshfl [vmem:[#allocation1] sm:$0xff pattern:$0x75316420]
      %v1850 = vld.sshfl [vmem:[#allocation1 + $0x8] sm:$0xff pattern:$0x75316420]
      %v1851 = vld.sshfl [vmem:[#allocation1 + $0x10] sm:$0xff pattern:$0x75316420]
      %v1855 = vpack.c.bf16 %v1850, %v1849
      %v1856 = vpack.c.bf16 %v1851, %v1851
      %1859 = vrot.lane.b32.xlu0 %v1855, 15
      %v1860 = vpop.permute.xlu0 %1859
      %1861 = vrot.lane.b32.xlu0 %v1856, 15
      %v1862 = vpop.permute.xlu0 %1861
      %v1863 = vrot.slane %v1860, 4
      %v1864 = vrot.slane %v1862, 4
      %v1865 = vsel %vm619, %v1863, %v1864
      %v1866 = vsel %vm698, %v1860, %v1865
      %1868 = vst [vmem:[#allocation3 + $0x20] sm:$0x33] %v1866
      %1869 = vst [vmem:[#allocation3 + $0x20] sm:$0xcc] 0
      %1870 = vst [vmem:[#allocation3 + $0x28] sm:$0xff] 0
      %v1871 = vld [vmem:[#allocation2] sm:$0x3f]
      %v1872 = vunpack.c.l.bf16 %v1871
      %v1873 = vunpack.c.h.bf16 %v1871
      %v1874 = vmul.f32 %v1872, %v711
      %v1875 = vmul.f32 %v1873, %v709
      %1878 = vst [vmem:[#allocation1] ss:$2 sm:$0xff] %v1874
      %s1879 = scalar_lea.vmem [#allocation1], 16
      %1880 = vst [vmem:[%s1879] ss:$2 sm:$0xff] %v1875
      %v1881 = vld.sshfl [vmem:[#allocation1] sm:$0xff pattern:$0x75316420]
      %v1882 = vld.sshfl [vmem:[#allocation1 + $0x8] sm:$0xff pattern:$0x75316420]
      %v1883 = vld.sshfl [vmem:[#allocation1 + $0x10] sm:$0xff pattern:$0x75316420]
      %v1887 = vpack.c.bf16 %v1882, %v1881
      %v1888 = vpack.c.bf16 %v1883, %v1883
      %1891 = vrot.lane.b32.xlu0 %v1887, 1
      %v1892 = vpop.permute.xlu0 %1891
      %1893 = vrot.lane.b32.xlu0 %v1888, 1
      %v1894 = vpop.permute.xlu0 %1893
      %v1895 = vrot.slane %v1892, 4
      %v1896 = vrot.slane %v1894, 4
      %v1897 = vsel %vm619, %v1895, %v1896
      %v1898 = vsel %vm738, %v1892, %v1897
      %1900 = vst [vmem:[#allocation3 + $0x30] sm:$0x33] %v1898
      %1901 = vst [vmem:[#allocation3 + $0x30] sm:$0xcc] 0
      %1902 = vst [vmem:[#allocation3 + $0x38] sm:$0xff] 0
      %v1903 = vld [vmem:[#allocation2 + $0x2] sm:$0xf]
      %1905 = vst [vmem:[#allocation1] ss:$2 sm:$0xff] %v1903
      %v1906 = vld.sshfl [vmem:[#allocation1] sm:$0xff pattern:$0x75643120]
      %1908 = vst [vmem:[#allocation3 + $0x40] sm:$0x33] %v1906
      %1909 = vst [vmem:[#allocation3 + $0x40] sm:$0xcc] 0
      %1910 = vst [vmem:[#allocation3 + $0x48] sm:$0xff] 0
      %v1911 = vld [vmem:[#allocation2 + $0x2] sm:$0x3f]
      %v1912 = vunpack.c.l.bf16 %v1911
      %v1913 = vunpack.c.h.bf16 %v1911
      %v1914 = vmul.f32 %v1912, %v759
      %v1915 = vmul.f32 %v1913, %v757
      %1918 = vst [vmem:[#allocation1] ss:$2 sm:$0xff] %v1914
      %s1919 = scalar_lea.vmem [#allocation1], 16
      %1920 = vst [vmem:[%s1919] ss:$2 sm:$0xff] %v1915
      %v1921 = vld.sshfl [vmem:[#allocation1] sm:$0xff pattern:$0x75316420]
      %v1922 = vld.sshfl [vmem:[#allocation1 + $0x8] sm:$0xff pattern:$0x75316420]
      %v1923 = vld.sshfl [vmem:[#allocation1 + $0x10] sm:$0xff pattern:$0x75316420]
      %v1927 = vpack.c.bf16 %v1922, %v1921
      %v1928 = vpack.c.bf16 %v1923, %v1923
      %1931 = vrot.lane.b32.xlu0 %v1927, 127
      %v1932 = vpop.permute.xlu0 %1931
      %1933 = vrot.lane.b32.xlu0 %v1928, 127
      %v1934 = vpop.permute.xlu0 %1933
      %v1935 = vrot.slane %v1932, 4
      %v1936 = vrot.slane %v1934, 4
      %v1937 = vsel %vm619, %v1935, %v1936
      %v1938 = vsel %vm786, %v1932, %v1937
      %1940 = vst [vmem:[#allocation3 + $0x50] sm:$0x33] %v1938
      %1941 = vst [vmem:[#allocation3 + $0x50] sm:$0xcc] 0
      %1942 = vst [vmem:[#allocation3 + $0x58] sm:$0xff] 0
      %v1943 = vld [vmem:[#allocation2 + $0x2] sm:$0x3f]
      %v1944 = vunpack.c.l.bf16 %v1943
      %v1945 = vunpack.c.h.bf16 %v1943
      %v1946 = vmul.f32 %v1944, %v799
      %v1947 = vmul.f32 %v1945, %v797
      %1950 = vst [vmem:[#allocation1] ss:$2 sm:$0xff] %v1946
      %s1951 = scalar_lea.vmem [#allocation1], 16
      %1952 = vst [vmem:[%s1951] ss:$2 sm:$0xff] %v1947
      %v1953 = vld.sshfl [vmem:[#allocation1] sm:$0xff pattern:$0x75316420]
      %v1954 = vld.sshfl [vmem:[#allocation1 + $0x8] sm:$0xff pattern:$0x75316420]
      %v1955 = vld.sshfl [vmem:[#allocation1 + $0x10] sm:$0xff pattern:$0x75316420]
      %v1959 = vpack.c.bf16 %v1954, %v1953
      %v1960 = vpack.c.bf16 %v1955, %v1955
      %1963 = vrot.lane.b32.xlu0 %v1959, 113
      %v1964 = vpop.permute.xlu0 %1963
      %1965 = vrot.lane.b32.xlu0 %v1960, 113
      %v1966 = vpop.permute.xlu0 %1965
      %v1967 = vrot.slane %v1964, 4
      %v1968 = vrot.slane %v1966, 4
      %v1969 = vsel %vm619, %v1967, %v1968
      %v1970 = vsel %vm826, %v1964, %v1969
      %1972 = vst [vmem:[#allocation3 + $0x60] sm:$0x33] %v1970
      %1973 = vst [vmem:[#allocation3 + $0x60] sm:$0xcc] 0
      %1974 = vst [vmem:[#allocation3 + $0x68] sm:$0xff] 0
      %v1975 = vld [vmem:[#allocation2 + $0x2] sm:$0x3f]
      %1977 = vst [vmem:[#allocation1] ss:$2 sm:$0xff] %v1975
      %v1978 = vld.sshfl [vmem:[#allocation1] sm:$0xff pattern:$0x75643120]
      %v1980 = vld.sshfl [vmem:[#allocation1 + $0x8] sm:$0xff pattern:$0x75643120]
      %1982 = vrot.lane.b32.xlu0 %v1978, 112
      %v1983 = vpop.permute.xlu0 %1982
      %1984 = vrot.lane.b32.xlu0 %v1980, 112
      %v1985 = vpop.permute.xlu0 %1984
      %v1986 = vrot.slane %v1983, 4
      %v1987 = vrot.slane %v1985, 4
      %v1988 = vsel %vm619, %v1986, %v1987
      %v1989 = vsel %vm846, %v1983, %v1988
      %1991 = vst [vmem:[#allocation3 + $0x70] sm:$0x33] %v1989
      %1992 = vst [vmem:[#allocation3 + $0x70] sm:$0xcc] 0
      %1993 = vst [vmem:[#allocation3 + $0x78] sm:$0xff] 0
      %v1994 = vld [vmem:[#allocation2 + $0x2] sm:$0x3f]
      %v1995 = vunpack.c.l.bf16 %v1994
      %v1996 = vunpack.c.h.bf16 %v1994
      %v1997 = vmul.f32 %v1995, %v859
      %v1998 = vmul.f32 %v1996, %v857
      %2001 = vst [vmem:[#allocation1] ss:$2 sm:$0xff] %v1997
      %s2002 = scalar_lea.vmem [#allocation1], 16
      %2003 = vst [vmem:[%s2002] ss:$2 sm:$0xff] %v1998
      %v2004 = vld.sshfl [vmem:[#allocation1] sm:$0xff pattern:$0x75316420]
      %v2005 = vld.sshfl [vmem:[#allocation1 + $0x8] sm:$0xff pattern:$0x75316420]
      %v2006 = vld.sshfl [vmem:[#allocation1 + $0x10] sm:$0xff pattern:$0x75316420]
      %v2010 = vpack.c.bf16 %v2005, %v2004
      %v2011 = vpack.c.bf16 %v2006, %v2006
      %2014 = vrot.lane.b32.xlu0 %v2010, 111
      %v2015 = vpop.permute.xlu0 %2014
      %2016 = vrot.lane.b32.xlu0 %v2011, 111
      %v2017 = vpop.permute.xlu0 %2016
      %v2018 = vrot.slane %v2015, 4
      %v2019 = vrot.slane %v2017, 4
      %v2020 = vsel %vm619, %v2018, %v2019
      %v2021 = vsel %vm886, %v2015, %v2020
      %2023 = vst [vmem:[#allocation3 + $0x80] sm:$0x33] %v2021
      %2024 = vst [vmem:[#allocation3 + $0x80] sm:$0xcc] 0
      %2025 = vst [vmem:[#allocation3 + $0x88] sm:$0xff] 0
      %v2026 = vld [vmem:[%s9] sm:$0x3]
      %v2027 = vld [vmem:[#allocation3] sm:$0xff]
      %v2028 = vld [vmem:[#allocation3 + $0x8] sm:$0xff]
      %v2029 = vld [vmem:[#allocation3 + $0x10] sm:$0xff]
      %v2030 = vld [vmem:[#allocation3 + $0x18] sm:$0xff]
      %v2031 = vld [vmem:[#allocation3 + $0x20] sm:$0xff]
      %v2032 = vld [vmem:[#allocation3 + $0x28] sm:$0xff]
      %v2033 = vld [vmem:[#allocation3 + $0x30] sm:$0xff]
      %v2034 = vld [vmem:[#allocation3 + $0x38] sm:$0xff]
      %v2035 = vld [vmem:[#allocation3 + $0x40] sm:$0xff]
      %v2036 = vld [vmem:[#allocation3 + $0x48] sm:$0xff]
      %v2037 = vld [vmem:[#allocation3 + $0x50] sm:$0xff]
      %v2038 = vld [vmem:[#allocation3 + $0x58] sm:$0xff]
      %v2039 = vld [vmem:[#allocation3 + $0x60] sm:$0xff]
      %v2040 = vld [vmem:[#allocation3 + $0x68] sm:$0xff]
      %v2041 = vld [vmem:[#allocation3 + $0x70] sm:$0xff]
      %v2042 = vld [vmem:[#allocation3 + $0x78] sm:$0xff]
      %v2043 = vld [vmem:[#allocation3 + $0x80] sm:$0xff]
      %v2044 = vld [vmem:[#allocation3 + $0x88] sm:$0xff]
      %2046 = vst [vmem:[#allocation1] ss:$9 sm:$0xff] %v2026
      %v2047 = vld [vmem:[#allocation1] sm:$0xff]
      %v2048 = vld [vmem:[#allocation1 + $0x9] sm:$0xff]
      %v2068 = vunpack.c.l.b16 %v2027
      %v2069 = vunpack.c.h.b16 %v2027
      %v2070 = vunpack.c.l.b16 %v2028
      %v2071 = vunpack.c.h.b16 %v2028
      %v2072 = vunpack.c.l.b16 %v2029
      %v2073 = vunpack.c.h.b16 %v2029
      %v2074 = vunpack.c.l.b16 %v2030
      %v2075 = vunpack.c.h.b16 %v2030
      %v2076 = vunpack.c.l.b16 %v2031
      %v2077 = vunpack.c.h.b16 %v2031
      %v2078 = vunpack.c.l.b16 %v2032
      %v2079 = vunpack.c.h.b16 %v2032
      %v2080 = vunpack.c.l.b16 %v2033
      %v2081 = vunpack.c.h.b16 %v2033
      %v2082 = vunpack.c.l.b16 %v2034
      %v2083 = vunpack.c.h.b16 %v2034
      %v2084 = vunpack.c.l.b16 %v2035
      %v2085 = vunpack.c.h.b16 %v2035
      %v2086 = vunpack.c.l.b16 %v2036
      %v2087 = vunpack.c.h.b16 %v2036
      %v2088 = vunpack.c.l.b16 %v2037
      %v2089 = vunpack.c.h.b16 %v2037
      %v2090 = vunpack.c.l.b16 %v2038
      %v2091 = vunpack.c.h.b16 %v2038
      %v2092 = vunpack.c.l.b16 %v2039
      %v2093 = vunpack.c.h.b16 %v2039
      %v2094 = vunpack.c.l.b16 %v2040
      %v2095 = vunpack.c.h.b16 %v2040
      %v2096 = vunpack.c.l.b16 %v2041
      %v2097 = vunpack.c.h.b16 %v2041
      %v2098 = vunpack.c.l.b16 %v2042
      %v2099 = vunpack.c.h.b16 %v2042
      %v2100 = vunpack.c.l.b16 %v2043
      %v2101 = vunpack.c.h.b16 %v2043
      %v2102 = vunpack.c.l.b16 %v2044
      %v2103 = vunpack.c.h.b16 %v2044
      %v2104 = vpack.c.b16 %v2070, %v2068
      %v2105 = vpack.c.b16 %v2071, %v2069
      %v2106 = vpack.c.b16 %v2074, %v2072
      %v2107 = vpack.c.b16 %v2075, %v2073
      %v2108 = vpack.c.b16 %v2078, %v2076
      %v2109 = vpack.c.b16 %v2079, %v2077
      %v2110 = vpack.c.b16 %v2082, %v2080
      %v2111 = vpack.c.b16 %v2083, %v2081
      %v2112 = vpack.c.b16 %v2086, %v2084
      %v2113 = vpack.c.b16 %v2087, %v2085
      %v2114 = vpack.c.b16 %v2090, %v2088
      %v2115 = vpack.c.b16 %v2091, %v2089
      %v2116 = vpack.c.b16 %v2094, %v2092
      %v2117 = vpack.c.b16 %v2095, %v2093
      %v2118 = vpack.c.b16 %v2098, %v2096
      %v2119 = vpack.c.b16 %v2099, %v2097
      %v2120 = vpack.c.b16 %v2102, %v2100
      %v2121 = vpack.c.b16 %v2103, %v2101
      %v2140 = vsel %vm1006, %v2048, 0
      %2142 = vmatpush.bf16.msra.mxu0 %v2118
      %2143 = vmatpush.bf16.msra.mxu0 %v2116
      %2144 = vmatpush.bf16.msra.mxu0 %v2114
      %2145 = vmatpush.bf16.msra.mxu0 %v2112
      %2146 = vmatpush.bf16.msra.mxu0 %v2110
      %2147 = vmatpush.bf16.msra.mxu0 %v2108
      %2148 = vmatpush.bf16.msra.mxu0 %v2106
      %2149 = vmatpush.bf16.msra.mxu0 %v2104
      %2150 = vmatmul.bf16.gmra.mxu0 %v2047
      %v2151 = vpop.f32.mrf.mxu0
      %v2152 = vadd.f32 0.0, %v2151
      %v2153 = vpop.f32.mrf.mxu0
      %2154 = vdwg.mxu0
      %2155 = vmatpush.bf16.msra.mxu0 0
      %2156 = vmatpush.bf16.msra.mxu0 0
      %2157 = vmatpush.bf16.msra.mxu0 0
      %2158 = vmatpush.bf16.msra.mxu0 0
      %2159 = vmatpush.bf16.msra.mxu0 0
      %2160 = vmatpush.bf16.msra.mxu0 0
      %2161 = vmatpush.bf16.msra.mxu0 0
      %2162 = vmatpush.bf16.msra.mxu0 %v2120
      %2163 = vmatmul.bf16.gmra.mxu0 %v2140
      %v2164 = vpop.f32.mrf.mxu0
      %v2165 = vadd.f32 %v2152, %v2164
      %v2166 = vpop.f32.mrf.mxu0
      %2167 = vdwg.mxu0
      %2168 = vmatpush.bf16.msra.mxu0 %v2119
      %2169 = vmatpush.bf16.msra.mxu0 %v2117
      %2170 = vmatpush.bf16.msra.mxu0 %v2115
      %2171 = vmatpush.bf16.msra.mxu0 %v2113
      %2172 = vmatpush.bf16.msra.mxu0 %v2111
      %2173 = vmatpush.bf16.msra.mxu0 %v2109
      %2174 = vmatpush.bf16.msra.mxu0 %v2107
      %2175 = vmatpush.bf16.msra.mxu0 %v2105
      %2176 = vmatmul.bf16.gmra.mxu0 %v2047
      %v2177 = vpop.f32.mrf.mxu0
      %v2178 = vadd.f32 0.0, %v2177
      %v2179 = vpop.f32.mrf.mxu0
      %2180 = vdwg.mxu0
      %2181 = vmatpush.bf16.msra.mxu0 0
      %2182 = vmatpush.bf16.msra.mxu0 0
      %2183 = vmatpush.bf16.msra.mxu0 0
      %2184 = vmatpush.bf16.msra.mxu0 0
      %2185 = vmatpush.bf16.msra.mxu0 0
      %2186 = vmatpush.bf16.msra.mxu0 0
      %2187 = vmatpush.bf16.msra.mxu0 0
      %2188 = vmatpush.bf16.msra.mxu0 %v2121
      %2189 = vmatmul.bf16.gmra.mxu0 %v2140
      %v2190 = vpop.f32.mrf.mxu0
      %v2191 = vadd.f32 %v2178, %v2190
      %v2192 = vpop.f32.mrf.mxu0
      %2193 = vdwg.mxu0
      %v2194 = vsel %vm1231, %v2165, 0.0
      %v2195 = vsel %vm1231, %v2191, 0.0
      %v2196 = vadd.f32 %v2194, %v2195
      %2197 = vadd.xlane.f32.xlu0 %v2196
      %v2198 = vpop.xlane.xlu0 %2197
      %v2199 = vrot.slane %v2198, 4
      %v2200 = vadd.f32 %v2198, %v2199
      %v2201 = vrot.slane %v2200, 2
      %v2202 = vadd.f32 %v2200, %v2201
      %v2203 = vrot.slane %v2202, 1
      %v2204 = vadd.f32 %v2202, %v2203
      %s2205 = vtos %v2204
      %v2206 = vrcp.pop 512.0
      %v2207 = vmul.f32 512.0, %v2206
      %v2208 = vsub.f32 1.0, %v2207
      %v2209 = vmul.f32 %v2206, %v2208
      %v2210 = vadd.f32 %v2206, %v2209
      %vm2211 = vweird.f32 %v2206
      %v2212 = vsel %vm2211, %v2206, %v2210
      %s2213 = vtos %v2212
      %s2214 = smul.f32 %s2205, %s2213
      %v2215 = vstv %s2214
      %v2216 = vsub.f32 %v2165, %v2215
      %v2217 = vsub.f32 %v2191, %v2215
      %v2218 = vmul.f32 %v2216, %v2216
      %v2219 = vmul.f32 %v2217, %v2217
      %v2220 = vsel %vm1231, %v2218, 0.0
      %v2221 = vsel %vm1231, %v2219, 0.0
      %v2222 = vadd.f32 %v2220, %v2221
      %2223 = vadd.xlane.f32.xlu0 %v2222
      %v2224 = vpop.xlane.xlu0 %2223
      %v2225 = vrot.slane %v2224, 4
      %v2226 = vadd.f32 %v2224, %v2225
      %v2227 = vrot.slane %v2226, 2
      %v2228 = vadd.f32 %v2226, %v2227
      %v2229 = vrot.slane %v2228, 1
      %v2230 = vadd.f32 %v2228, %v2229
      %s2231 = vtos %v2230
      %v2232 = vrcp.pop 512.0
      %v2233 = vmul.f32 512.0, %v2232
      %v2234 = vsub.f32 1.0, %v2233
      %v2235 = vmul.f32 %v2232, %v2234
      %v2236 = vadd.f32 %v2232, %v2235
      %vm2237 = vweird.f32 %v2232
      %v2238 = vsel %vm2237, %v2232, %v2236
      %s2239 = vtos %v2238
      %s2240 = smul.f32 %s2231, %s2239
      %s2241 = sadd.f32 %s2240, 1e-05
      %v2242 = vstv %s2241
      %v2243 = vrsqrt.pop %v2242
      %v2244 = vmul.f32 %v2243, %v2242
      %v2245 = vmul.f32 %v2244, %v2243
      %v2246 = vmul.f32 0.5, %v2245
      %v2247 = vsub.f32 1.5, %v2246
      %v2248 = vmul.f32 %v2243, %v2247
      %vm2249 = vweird.f32 %v2242
      %vm2250 = vweird.f32 %v2243
      %vm2251 = vmor %vm2249, %vm2250
      %v2252 = vsel %vm2251, %v2243, %v2248
      %s2253 = vtos %v2252
      %v2254 = vstv %s2253
      %v2255 = vmul.f32 %v2216, %v2254
      %v2256 = vmul.f32 %v2217, %v2254
      %v2257 = vld [vmem:[%s10] sm:$0x3]
      %2259 = vset.pattern.permute.xlu0 0
      %2260 = vperm.xlu0 %2259, %v2257
      %v2261 = vpop.permute.xlu0 %2260
      %v2263 = vmul.f32 %v2255, %v2261
      %v2264 = vmul.f32 %v2256, %v2261
      %v2265 = vld [vmem:[%s11] sm:$0x3]
      %2267 = vset.pattern.permute.xlu0 0
      %2268 = vperm.xlu0 %2267, %v2265
      %v2269 = vpop.permute.xlu0 %2268
      %v2271 = vadd.f32 %v2263, %v2269
      %v2272 = vadd.f32 %v2264, %v2269
      %v2273 = vmul.f32 %v2271, 0.5
      %v2274 = vmul.f32 %v2272, 0.5
      %v2275 = vmul.f32 %v2271, 0.70710677
      %v2276 = vmul.f32 %v2272, 0.70710677
      %v2277 = vmul.f32 %v2275, %v2275
      %v2278 = vmin.f32 16.0, %v2277
      %v2279 = vmul.f32 %v2278, 2.1237322e-06
      %v2280 = vadd.f32 %v2279, 0.00028619796
      %v2281 = vmul.f32 %v2278, %v2280
      %v2282 = vadd.f32 %v2281, 0.0036580483
      %v2283 = vmul.f32 %v2278, %v2282
      %v2284 = vadd.f32 %v2283, 0.05243302
      %v2285 = vmul.f32 %v2278, %v2284
      %v2286 = vadd.f32 %v2285, 0.18741608
      %v2287 = vmul.f32 %v2278, %v2286
      %v2288 = vadd.f32 %v2287, 1.1283791
      %v2289 = vmul.f32 %v2275, %v2288
      %v2290 = vmul.f32 %v2278, 3.8918573e-05
      %v2291 = vadd.f32 %v2290, 0.001143296
      %v2292 = vmul.f32 %v2278, %v2291
      %v2293 = vadd.f32 %v2292, 0.014752088
      %v2294 = vmul.f32 %v2278, %v2293
      %v2295 = vadd.f32 %v2294, 0.112945676
      %v2296 = vmul.f32 %v2278, %v2295
      %v2297 = vadd.f32 %v2296, 0.4994258
      %v2298 = vmul.f32 %v2278, %v2297
      %v2299 = vadd.f32 %v2298, 1.0
      %v2300 = vrcp.pop %v2299
      %v2301 = vmul.f32 %v2299, %v2300
      %v2302 = vsub.f32 1.0, %v2301
      %v2303 = vmul.f32 %v2300, %v2302
      %v2304 = vadd.f32 %v2300, %v2303
      %vm2305 = vweird.f32 %v2299
      %vm2306 = vweird.f32 %v2300
      %vm2307 = vmor %vm2305, %vm2306
      %v2308 = vsel %vm2307, %v2300, %v2304
      %v2309 = vand.u32 2147483647, %v2299
      %vm2310 = vcmp.eq.f32.partialorder %v2309, 8.507059e+37
      %v2311 = vand.u32 %v2299, 2147483648
      %v2312 = vor.u32 1.1754944e-38, %v2311
      %v2313 = vsel %vm2310, %v2312, %v2308
      %v2314 = vmul.f32 %v2289, %v2313
      %v2315 = vmin.f32 %v2314, 1.0
      %v2316 = vmax.f32 %v2315, -1.0
      %v2317 = vmul.f32 %v2276, %v2276
      %v2318 = vmin.f32 16.0, %v2317
      %v2319 = vmul.f32 %v2318, 2.1237322e-06
      %v2320 = vadd.f32 %v2319, 0.00028619796
      %v2321 = vmul.f32 %v2318, %v2320
      %v2322 = vadd.f32 %v2321, 0.0036580483
      %v2323 = vmul.f32 %v2318, %v2322
      %v2324 = vadd.f32 %v2323, 0.05243302
      %v2325 = vmul.f32 %v2318, %v2324
      %v2326 = vadd.f32 %v2325, 0.18741608
      %v2327 = vmul.f32 %v2318, %v2326
      %v2328 = vadd.f32 %v2327, 1.1283791
      %v2329 = vmul.f32 %v2276, %v2328
      %v2330 = vmul.f32 %v2318, 3.8918573e-05
      %v2331 = vadd.f32 %v2330, 0.001143296
      %v2332 = vmul.f32 %v2318, %v2331
      %v2333 = vadd.f32 %v2332, 0.014752088
      %v2334 = vmul.f32 %v2318, %v2333
      %v2335 = vadd.f32 %v2334, 0.112945676
      %v2336 = vmul.f32 %v2318, %v2335
      %v2337 = vadd.f32 %v2336, 0.4994258
      %v2338 = vmul.f32 %v2318, %v2337
      %v2339 = vadd.f32 %v2338, 1.0
      %v2340 = vrcp.pop %v2339
      %v2341 = vmul.f32 %v2339, %v2340
      %v2342 = vsub.f32 1.0, %v2341
      %v2343 = vmul.f32 %v2340, %v2342
      %v2344 = vadd.f32 %v2340, %v2343
      %vm2345 = vweird.f32 %v2339
      %vm2346 = vweird.f32 %v2340
      %vm2347 = vmor %vm2345, %vm2346
      %v2348 = vsel %vm2347, %v2340, %v2344
      %v2349 = vand.u32 2147483647, %v2339
      %vm2350 = vcmp.eq.f32.partialorder %v2349, 8.507059e+37
      %v2351 = vand.u32 %v2339, 2147483648
      %v2352 = vor.u32 1.1754944e-38, %v2351
      %v2353 = vsel %vm2350, %v2352, %v2348
      %v2354 = vmul.f32 %v2329, %v2353
      %v2355 = vmin.f32 %v2354, 1.0
      %v2356 = vmax.f32 %v2355, -1.0
      %v2357 = vadd.f32 %v2316, 1.0
      %v2358 = vadd.f32 %v2356, 1.0
      %v2359 = vmul.f32 %v2273, %v2357
      %v2360 = vmul.f32 %v2274, %v2358
      %v2361 = vpack.c.bf16 %v2360, %v2359
      %v2363 = vrot.slane %v2361, 2
      %v2366 = vsel %vm1231, %v2361, %v2363
      %2368 = vst [vmem:[#allocation2 + $0x2] sm:$0x5] %v2366
      %v2369 = vld [vmem:[#allocation2] sm:$0x15]
      %2370 = vst [vmem:[#allocation1] ss:$9 sm:$0xff] %v566
      %v2371 = vld [vmem:[#allocation1] sm:$0xff]
      %v2372 = vld [vmem:[#allocation1 + $0x9] sm:$0xff]
      %v2373 = vpack.i.b16 %v2371, %v2371
      %v2375 = vperm.slane %v2373, 0
      %v2376 = vpack.i.b16 %v2372, %v2372
      %v2378 = vperm.slane %v2376, 0
      %v2379 = vunpack.c.l.bf16 %v2369
      %v2380 = vunpack.c.h.bf16 %v2369
      %v2381 = vunpack.c.l.bf16 %v2375
      %v2382 = vunpack.c.l.bf16 %v2378
      %v2385 = vrot.slane %v2382, 4
      %v2386 = vsel %vm587, %v2381, %v2385
      %2387 = vrot.lane.b32.xlu0 %v2386, 111
      %v2388 = vpop.permute.xlu0 %2387
      %v2389 = vrot.slane %v2388, 4
      %v2390 = vsel %vm592, %v2389, %v2388
      %v2393 = vmul.f32 %v2379, %v2390
      %v2394 = vmul.f32 %v2380, %v2389
      %2397 = vst [vmem:[#allocation1] ss:$2 sm:$0xff] %v2393
      %s2398 = scalar_lea.vmem [#allocation1], 16
      %2399 = vst [vmem:[%s2398] ss:$2 sm:$0xff] %v2394
      %v2400 = vld.sshfl [vmem:[#allocation1] sm:$0xff pattern:$0x75316420]
      %v2401 = vld.sshfl [vmem:[#allocation1 + $0x8] sm:$0xff pattern:$0x75316420]
      %v2402 = vld.sshfl [vmem:[#allocation1 + $0x10] sm:$0xff pattern:$0x75316420]
      %v2406 = vpack.c.bf16 %v2401, %v2400
      %v2407 = vpack.c.bf16 %v2402, %v2402
      %2410 = vrot.lane.b32.xlu0 %v2406, 17
      %v2411 = vpop.permute.xlu0 %2410
      %2412 = vrot.lane.b32.xlu0 %v2407, 17
      %v2413 = vpop.permute.xlu0 %2412
      %v2414 = vrot.slane %v2411, 4
      %v2415 = vrot.slane %v2413, 4
      %v2416 = vsel %vm619, %v2414, %v2415
      %v2417 = vsel %vm621, %v2411, %v2416
      %2419 = vst [vmem:[#allocation3] sm:$0x11] %v2417
      %2420 = vst [vmem:[#allocation3] sm:$0xee] 0
      %2421 = vst [vmem:[#allocation3 + $0x8] sm:$0xff] 0
      %v2422 = vld [vmem:[#allocation2] sm:$0x15]
      %2424 = vst [vmem:[#allocation1] ss:$2 sm:$0xff] %v2422
      %v2425 = vld.sshfl [vmem:[#allocation1] sm:$0xff pattern:$0x75643120]
      %v2427 = vld.sshfl [vmem:[#allocation1 + $0x8] sm:$0xff pattern:$0x75643120]
      %2429 = vrot.lane.b32.xlu0 %v2425, 16
      %v2430 = vpop.permute.xlu0 %2429
      %2431 = vrot.lane.b32.xlu0 %v2427, 16
      %v2432 = vpop.permute.xlu0 %2431
      %v2433 = vrot.slane %v2430, 4
      %v2434 = vrot.slane %v2432, 4
      %v2435 = vsel %vm619, %v2433, %v2434
      %v2436 = vsel %vm641, %v2430, %v2435
      %2438 = vst [vmem:[#allocation3 + $0x10] sm:$0x11] %v2436
      %2439 = vst [vmem:[#allocation3 + $0x10] sm:$0xee] 0
      %2440 = vst [vmem:[#allocation3 + $0x18] sm:$0xff] 0
      %v2441 = vld [vmem:[#allocation2] sm:$0x15]
      %2442 = vst [vmem:[#allocation1] ss:$9 sm:$0xff] %v566
      %v2443 = vld [vmem:[#allocation1] sm:$0xff]
      %v2444 = vld [vmem:[#allocation1 + $0x9] sm:$0xff]
      %v2445 = vshrl.u32 %v2443, 16
      %v2446 = vpack.i.b16 %v2445, %v2445
      %v2448 = vperm.slane %v2446, 0
      %v2449 = vshrl.u32 %v2444, 16
      %v2450 = vpack.i.b16 %v2449, %v2449
      %v2452 = vperm.slane %v2450, 0
      %v2453 = vunpack.c.l.bf16 %v2441
      %v2454 = vunpack.c.h.bf16 %v2441
      %v2455 = vunpack.c.l.bf16 %v2448
      %v2456 = vunpack.c.l.bf16 %v2452
      %v2459 = vrot.slane %v2456, 4
      %v2460 = vsel %vm587, %v2455, %v2459
      %2461 = vrot.lane.b32.xlu0 %v2460, 113
      %v2462 = vpop.permute.xlu0 %2461
      %v2463 = vrot.slane %v2462, 4
      %v2464 = vsel %vm670, %v2463, %v2462
      %v2467 = vmul.f32 %v2453, %v2464
      %v2468 = vmul.f32 %v2454, %v2463
      %2471 = vst [vmem:[#allocation1] ss:$2 sm:$0xff] %v2467
      %s2472 = scalar_lea.vmem [#allocation1], 16
      %2473 = vst [vmem:[%s2472] ss:$2 sm:$0xff] %v2468
      %v2474 = vld.sshfl [vmem:[#allocation1] sm:$0xff pattern:$0x75316420]
      %v2475 = vld.sshfl [vmem:[#allocation1 + $0x8] sm:$0xff pattern:$0x75316420]
      %v2476 = vld.sshfl [vmem:[#allocation1 + $0x10] sm:$0xff pattern:$0x75316420]
      %v2480 = vpack.c.bf16 %v2475, %v2474
      %v2481 = vpack.c.bf16 %v2476, %v2476
      %2484 = vrot.lane.b32.xlu0 %v2480, 15
      %v2485 = vpop.permute.xlu0 %2484
      %2486 = vrot.lane.b32.xlu0 %v2481, 15
      %v2487 = vpop.permute.xlu0 %2486
      %v2488 = vrot.slane %v2485, 4
      %v2489 = vrot.slane %v2487, 4
      %v2490 = vsel %vm619, %v2488, %v2489
      %v2491 = vsel %vm698, %v2485, %v2490
      %2493 = vst [vmem:[#allocation3 + $0x20] sm:$0x11] %v2491
      %2494 = vst [vmem:[#allocation3 + $0x20] sm:$0xee] 0
      %2495 = vst [vmem:[#allocation3 + $0x28] sm:$0xff] 0
      %v2496 = vld [vmem:[#allocation2] sm:$0x15]
      %v2497 = vunpack.c.l.bf16 %v2496
      %v2498 = vunpack.c.h.bf16 %v2496
      %2499 = vrot.lane.b32.xlu0 %v2386, 127
      %v2500 = vpop.permute.xlu0 %2499
      %v2501 = vrot.slane %v2500, 4
      %v2502 = vsel %vm710, %v2501, %v2500
      %v2505 = vmul.f32 %v2497, %v2502
      %v2506 = vmul.f32 %v2498, %v2501
      %2509 = vst [vmem:[#allocation1] ss:$2 sm:$0xff] %v2505
      %s2510 = scalar_lea.vmem [#allocation1], 16
      %2511 = vst [vmem:[%s2510] ss:$2 sm:$0xff] %v2506
      %v2512 = vld.sshfl [vmem:[#allocation1] sm:$0xff pattern:$0x75316420]
      %v2513 = vld.sshfl [vmem:[#allocation1 + $0x8] sm:$0xff pattern:$0x75316420]
      %v2514 = vld.sshfl [vmem:[#allocation1 + $0x10] sm:$0xff pattern:$0x75316420]
      %v2518 = vpack.c.bf16 %v2513, %v2512
      %v2519 = vpack.c.bf16 %v2514, %v2514
      %2522 = vrot.lane.b32.xlu0 %v2518, 1
      %v2523 = vpop.permute.xlu0 %2522
      %2524 = vrot.lane.b32.xlu0 %v2519, 1
      %v2525 = vpop.permute.xlu0 %2524
      %v2526 = vrot.slane %v2523, 4
      %v2527 = vrot.slane %v2525, 4
      %v2528 = vsel %vm619, %v2526, %v2527
      %v2529 = vsel %vm738, %v2523, %v2528
      %2531 = vst [vmem:[#allocation3 + $0x30] sm:$0x11] %v2529
      %2532 = vst [vmem:[#allocation3 + $0x30] sm:$0xee] 0
      %2533 = vst [vmem:[#allocation3 + $0x38] sm:$0xff] 0
      %v2534 = vld [vmem:[#allocation2 + $0x2] sm:$0x5]
      %2536 = vst [vmem:[#allocation1] ss:$2 sm:$0xff] %v2534
      %v2537 = vld.sshfl [vmem:[#allocation1] sm:$0xff pattern:$0x75643120]
      %2539 = vst [vmem:[#allocation3 + $0x40] sm:$0x11] %v2537
      %2540 = vst [vmem:[#allocation3 + $0x40] sm:$0xee] 0
      %2541 = vst [vmem:[#allocation3 + $0x48] sm:$0xff] 0
      %v2542 = vld [vmem:[#allocation2 + $0x2] sm:$0x15]
      %v2543 = vunpack.c.l.bf16 %v2542
      %v2544 = vunpack.c.h.bf16 %v2542
      %2545 = vrot.lane.b32.xlu0 %v2460, 1
      %v2546 = vpop.permute.xlu0 %2545
      %v2547 = vrot.slane %v2546, 4
      %v2548 = vsel %vm758, %v2547, %v2546
      %v2551 = vmul.f32 %v2543, %v2548
      %v2552 = vmul.f32 %v2544, %v2547
      %2555 = vst [vmem:[#allocation1] ss:$2 sm:$0xff] %v2551
      %s2556 = scalar_lea.vmem [#allocation1], 16
      %2557 = vst [vmem:[%s2556] ss:$2 sm:$0xff] %v2552
      %v2558 = vld.sshfl [vmem:[#allocation1] sm:$0xff pattern:$0x75316420]
      %v2559 = vld.sshfl [vmem:[#allocation1 + $0x8] sm:$0xff pattern:$0x75316420]
      %v2560 = vld.sshfl [vmem:[#allocation1 + $0x10] sm:$0xff pattern:$0x75316420]
      %v2564 = vpack.c.bf16 %v2559, %v2558
      %v2565 = vpack.c.bf16 %v2560, %v2560
      %2568 = vrot.lane.b32.xlu0 %v2564, 127
      %v2569 = vpop.permute.xlu0 %2568
      %2570 = vrot.lane.b32.xlu0 %v2565, 127
      %v2571 = vpop.permute.xlu0 %2570
      %v2572 = vrot.slane %v2569, 4
      %v2573 = vrot.slane %v2571, 4
      %v2574 = vsel %vm619, %v2572, %v2573
      %v2575 = vsel %vm786, %v2569, %v2574
      %2577 = vst [vmem:[#allocation3 + $0x50] sm:$0x11] %v2575
      %2578 = vst [vmem:[#allocation3 + $0x50] sm:$0xee] 0
      %2579 = vst [vmem:[#allocation3 + $0x58] sm:$0xff] 0
      %v2580 = vld [vmem:[#allocation2 + $0x2] sm:$0x15]
      %v2581 = vunpack.c.l.bf16 %v2580
      %v2582 = vunpack.c.h.bf16 %v2580
      %2583 = vrot.lane.b32.xlu0 %v2386, 15
      %v2584 = vpop.permute.xlu0 %2583
      %v2585 = vrot.slane %v2584, 4
      %v2586 = vsel %vm798, %v2585, %v2584
      %v2589 = vmul.f32 %v2581, %v2586
      %v2590 = vmul.f32 %v2582, %v2585
      %2593 = vst [vmem:[#allocation1] ss:$2 sm:$0xff] %v2589
      %s2594 = scalar_lea.vmem [#allocation1], 16
      %2595 = vst [vmem:[%s2594] ss:$2 sm:$0xff] %v2590
      %v2596 = vld.sshfl [vmem:[#allocation1] sm:$0xff pattern:$0x75316420]
      %v2597 = vld.sshfl [vmem:[#allocation1 + $0x8] sm:$0xff pattern:$0x75316420]
      %v2598 = vld.sshfl [vmem:[#allocation1 + $0x10] sm:$0xff pattern:$0x75316420]
      %v2602 = vpack.c.bf16 %v2597, %v2596
      %v2603 = vpack.c.bf16 %v2598, %v2598
      %2606 = vrot.lane.b32.xlu0 %v2602, 113
      %v2607 = vpop.permute.xlu0 %2606
      %2608 = vrot.lane.b32.xlu0 %v2603, 113
      %v2609 = vpop.permute.xlu0 %2608
      %v2610 = vrot.slane %v2607, 4
      %v2611 = vrot.slane %v2609, 4
      %v2612 = vsel %vm619, %v2610, %v2611
      %v2613 = vsel %vm826, %v2607, %v2612
      %2615 = vst [vmem:[#allocation3 + $0x60] sm:$0x11] %v2613
      %2616 = vst [vmem:[#allocation3 + $0x60] sm:$0xee] 0
      %2617 = vst [vmem:[#allocation3 + $0x68] sm:$0xff] 0
      %v2618 = vld [vmem:[#allocation2 + $0x2] sm:$0x15]
      %2620 = vst [vmem:[#allocation1] ss:$2 sm:$0xff] %v2618
      %v2621 = vld.sshfl [vmem:[#allocation1] sm:$0xff pattern:$0x75643120]
      %v2623 = vld.sshfl [vmem:[#allocation1 + $0x8] sm:$0xff pattern:$0x75643120]
      %2625 = vrot.lane.b32.xlu0 %v2621, 112
      %v2626 = vpop.permute.xlu0 %2625
      %2627 = vrot.lane.b32.xlu0 %v2623, 112
      %v2628 = vpop.permute.xlu0 %2627
      %v2629 = vrot.slane %v2626, 4
      %v2630 = vrot.slane %v2628, 4
      %v2631 = vsel %vm619, %v2629, %v2630
      %v2632 = vsel %vm846, %v2626, %v2631
      %2634 = vst [vmem:[#allocation3 + $0x70] sm:$0x11] %v2632
      %2635 = vst [vmem:[#allocation3 + $0x70] sm:$0xee] 0
      %2636 = vst [vmem:[#allocation3 + $0x78] sm:$0xff] 0
      %v2637 = vld [vmem:[#allocation2 + $0x2] sm:$0x15]
      %v2638 = vunpack.c.l.bf16 %v2637
      %v2639 = vunpack.c.h.bf16 %v2637
      %2640 = vrot.lane.b32.xlu0 %v2460, 17
      %v2641 = vpop.permute.xlu0 %2640
      %v2642 = vrot.slane %v2641, 4
      %v2643 = vsel %vm858, %v2642, %v2641
      %v2646 = vmul.f32 %v2638, %v2643
      %v2647 = vmul.f32 %v2639, %v2642
      %2650 = vst [vmem:[#allocation1] ss:$2 sm:$0xff] %v2646
      %s2651 = scalar_lea.vmem [#allocation1], 16
      %2652 = vst [vmem:[%s2651] ss:$2 sm:$0xff] %v2647
      %v2653 = vld.sshfl [vmem:[#allocation1] sm:$0xff pattern:$0x75316420]
      %v2654 = vld.sshfl [vmem:[#allocation1 + $0x8] sm:$0xff pattern:$0x75316420]
      %v2655 = vld.sshfl [vmem:[#allocation1 + $0x10] sm:$0xff pattern:$0x75316420]
      %v2659 = vpack.c.bf16 %v2654, %v2653
      %v2660 = vpack.c.bf16 %v2655, %v2655
      %2663 = vrot.lane.b32.xlu0 %v2659, 111
      %v2664 = vpop.permute.xlu0 %2663
      %2665 = vrot.lane.b32.xlu0 %v2660, 111
      %v2666 = vpop.permute.xlu0 %2665
      %v2667 = vrot.slane %v2664, 4
      %v2668 = vrot.slane %v2666, 4
      %v2669 = vsel %vm619, %v2667, %v2668
      %v2670 = vsel %vm886, %v2664, %v2669
      %2672 = vst [vmem:[#allocation3 + $0x80] sm:$0x11] %v2670
      %2673 = vst [vmem:[#allocation3 + $0x80] sm:$0xee] 0
      %2674 = vst [vmem:[#allocation3 + $0x88] sm:$0xff] 0
      %v2675 = vld [vmem:[%s12] sm:$0xf]
      %v2676 = vld [vmem:[#allocation3] sm:$0xff]
      %v2677 = vld [vmem:[#allocation3 + $0x8] sm:$0xff]
      %v2678 = vld [vmem:[#allocation3 + $0x10] sm:$0xff]
      %v2679 = vld [vmem:[#allocation3 + $0x18] sm:$0xff]
      %v2680 = vld [vmem:[#allocation3 + $0x20] sm:$0xff]
      %v2681 = vld [vmem:[#allocation3 + $0x28] sm:$0xff]
      %v2682 = vld [vmem:[#allocation3 + $0x30] sm:$0xff]
      %v2683 = vld [vmem:[#allocation3 + $0x38] sm:$0xff]
      %v2684 = vld [vmem:[#allocation3 + $0x40] sm:$0xff]
      %v2685 = vld [vmem:[#allocation3 + $0x48] sm:$0xff]
      %v2686 = vld [vmem:[#allocation3 + $0x50] sm:$0xff]
      %v2687 = vld [vmem:[#allocation3 + $0x58] sm:$0xff]
      %v2688 = vld [vmem:[#allocation3 + $0x60] sm:$0xff]
      %v2689 = vld [vmem:[#allocation3 + $0x68] sm:$0xff]
      %v2690 = vld [vmem:[#allocation3 + $0x70] sm:$0xff]
      %v2691 = vld [vmem:[#allocation3 + $0x78] sm:$0xff]
      %v2692 = vld [vmem:[#allocation3 + $0x80] sm:$0xff]
      %v2693 = vld [vmem:[#allocation3 + $0x88] sm:$0xff]
      %2695 = vst [vmem:[#allocation1] ss:$4 sm:$0xff] %v2675
      %v2696 = vld.sshfl [vmem:[#allocation1] sm:$0xff pattern:$0x73625140]
      %v2697 = vld.sshfl [vmem:[#allocation1 + $0x8] sm:$0xff pattern:$0x73625140]
      %v2717 = vunpack.c.l.b16 %v2676
      %v2718 = vunpack.c.h.b16 %v2676
      %v2719 = vunpack.c.l.b16 %v2677
      %v2720 = vunpack.c.h.b16 %v2677
      %v2721 = vunpack.c.l.b16 %v2678
      %v2722 = vunpack.c.h.b16 %v2678
      %v2723 = vunpack.c.l.b16 %v2679
      %v2724 = vunpack.c.h.b16 %v2679
      %v2725 = vunpack.c.l.b16 %v2680
      %v2726 = vunpack.c.h.b16 %v2680
      %v2727 = vunpack.c.l.b16 %v2681
      %v2728 = vunpack.c.h.b16 %v2681
      %v2729 = vunpack.c.l.b16 %v2682
      %v2730 = vunpack.c.h.b16 %v2682
      %v2731 = vunpack.c.l.b16 %v2683
      %v2732 = vunpack.c.h.b16 %v2683
      %v2733 = vunpack.c.l.b16 %v2684
      %v2734 = vunpack.c.h.b16 %v2684
      %v2735 = vunpack.c.l.b16 %v2685
      %v2736 = vunpack.c.h.b16 %v2685
      %v2737 = vunpack.c.l.b16 %v2686
      %v2738 = vunpack.c.h.b16 %v2686
      %v2739 = vunpack.c.l.b16 %v2687
      %v2740 = vunpack.c.h.b16 %v2687
      %v2741 = vunpack.c.l.b16 %v2688
      %v2742 = vunpack.c.h.b16 %v2688
      %v2743 = vunpack.c.l.b16 %v2689
      %v2744 = vunpack.c.h.b16 %v2689
      %v2745 = vunpack.c.l.b16 %v2690
      %v2746 = vunpack.c.h.b16 %v2690
      %v2747 = vunpack.c.l.b16 %v2691
      %v2748 = vunpack.c.h.b16 %v2691
      %v2749 = vunpack.c.l.b16 %v2692
      %v2750 = vunpack.c.h.b16 %v2692
      %v2751 = vunpack.c.l.b16 %v2693
      %v2752 = vunpack.c.h.b16 %v2693
      %v2753 = vpack.c.b16 %v2719, %v2717
      %v2754 = vpack.c.b16 %v2720, %v2718
      %v2755 = vpack.c.b16 %v2723, %v2721
      %v2756 = vpack.c.b16 %v2724, %v2722
      %v2757 = vpack.c.b16 %v2727, %v2725
      %v2758 = vpack.c.b16 %v2728, %v2726
      %v2759 = vpack.c.b16 %v2731, %v2729
      %v2760 = vpack.c.b16 %v2732, %v2730
      %v2761 = vpack.c.b16 %v2735, %v2733
      %v2762 = vpack.c.b16 %v2736, %v2734
      %v2763 = vpack.c.b16 %v2739, %v2737
      %v2764 = vpack.c.b16 %v2740, %v2738
      %v2765 = vpack.c.b16 %v2743, %v2741
      %v2766 = vpack.c.b16 %v2744, %v2742
      %v2767 = vpack.c.b16 %v2747, %v2745
      %v2768 = vpack.c.b16 %v2748, %v2746
      %v2769 = vpack.c.b16 %v2751, %v2749
      %v2770 = vpack.c.b16 %v2752, %v2750
      %v2789 = vsel %vm1006, %v2697, 0
      %2791 = vmatpush.bf16.msra.mxu0 %v2767
      %2792 = vmatpush.bf16.msra.mxu0 %v2765
      %2793 = vmatpush.bf16.msra.mxu0 %v2763
      %2794 = vmatpush.bf16.msra.mxu0 %v2761
      %2795 = vmatpush.bf16.msra.mxu0 %v2759
      %2796 = vmatpush.bf16.msra.mxu0 %v2757
      %2797 = vmatpush.bf16.msra.mxu0 %v2755
      %2798 = vmatpush.bf16.msra.mxu0 %v2753
      %2799 = vmatmul.bf16.gmra.mxu0 %v2696
      %v2800 = vpop.f32.mrf.mxu0
      %v2801 = vadd.f32 0.0, %v2800
      %v2802 = vpop.f32.mrf.mxu0
      %2803 = vdwg.mxu0
      %2804 = vmatpush.bf16.msra.mxu0 0
      %2805 = vmatpush.bf16.msra.mxu0 0
      %2806 = vmatpush.bf16.msra.mxu0 0
      %2807 = vmatpush.bf16.msra.mxu0 0
      %2808 = vmatpush.bf16.msra.mxu0 0
      %2809 = vmatpush.bf16.msra.mxu0 0
      %2810 = vmatpush.bf16.msra.mxu0 0
      %2811 = vmatpush.bf16.msra.mxu0 %v2769
      %2812 = vmatmul.bf16.gmra.mxu0 %v2789
      %v2813 = vpop.f32.mrf.mxu0
      %v2814 = vadd.f32 %v2801, %v2813
      %v2815 = vpop.f32.mrf.mxu0
      %2816 = vdwg.mxu0
      %2817 = vmatpush.bf16.msra.mxu0 %v2768
      %2818 = vmatpush.bf16.msra.mxu0 %v2766
      %2819 = vmatpush.bf16.msra.mxu0 %v2764
      %2820 = vmatpush.bf16.msra.mxu0 %v2762
      %2821 = vmatpush.bf16.msra.mxu0 %v2760
      %2822 = vmatpush.bf16.msra.mxu0 %v2758
      %2823 = vmatpush.bf16.msra.mxu0 %v2756
      %2824 = vmatpush.bf16.msra.mxu0 %v2754
      %2825 = vmatmul.bf16.gmra.mxu0 %v2696
      %v2826 = vpop.f32.mrf.mxu0
      %v2827 = vadd.f32 0.0, %v2826
      %v2828 = vpop.f32.mrf.mxu0
      %2829 = vdwg.mxu0
      %2830 = vmatpush.bf16.msra.mxu0 0
      %2831 = vmatpush.bf16.msra.mxu0 0
      %2832 = vmatpush.bf16.msra.mxu0 0
      %2833 = vmatpush.bf16.msra.mxu0 0
      %2834 = vmatpush.bf16.msra.mxu0 0
      %2835 = vmatpush.bf16.msra.mxu0 0
      %2836 = vmatpush.bf16.msra.mxu0 0
      %2837 = vmatpush.bf16.msra.mxu0 %v2770
      %2838 = vmatmul.bf16.gmra.mxu0 %v2789
      %v2839 = vpop.f32.mrf.mxu0
      %v2840 = vadd.f32 %v2827, %v2839
      %v2841 = vpop.f32.mrf.mxu0
      %2842 = vdwg.mxu0
      %v2843 = vsel %vm587, %v2814, 0.0
      %v2844 = vsel %vm587, %v2840, 0.0
      %v2845 = vadd.f32 %v2843, %v2844
      %2846 = vadd.xlane.f32.xlu0 %v2845
      %v2847 = vpop.xlane.xlu0 %2846
      %v2848 = vrot.slane %v2847, 4
      %v2849 = vadd.f32 %v2847, %v2848
      %v2850 = vrot.slane %v2849, 2
      %v2851 = vadd.f32 %v2849, %v2850
      %v2852 = vrot.slane %v2851, 1
      %v2853 = vadd.f32 %v2851, %v2852
      %s2854 = vtos %v2853
      %v2855 = vrcp.pop 1024.0
      %v2856 = vmul.f32 1024.0, %v2855
      %v2857 = vsub.f32 1.0, %v2856
      %v2858 = vmul.f32 %v2855, %v2857
      %v2859 = vadd.f32 %v2855, %v2858
      %vm2860 = vweird.f32 %v2855
      %v2861 = vsel %vm2860, %v2855, %v2859
      %s2862 = vtos %v2861
      %s2863 = smul.f32 %s2854, %s2862
      %v2864 = vstv %s2863
      %v2865 = vsub.f32 %v2814, %v2864
      %v2866 = vsub.f32 %v2840, %v2864
      %v2867 = vmul.f32 %v2865, %v2865
      %v2868 = vmul.f32 %v2866, %v2866
      %v2869 = vsel %vm587, %v2867, 0.0
      %v2870 = vsel %vm587, %v2868, 0.0
      %v2871 = vadd.f32 %v2869, %v2870
      %2872 = vadd.xlane.f32.xlu0 %v2871
      %v2873 = vpop.xlane.xlu0 %2872
      %v2874 = vrot.slane %v2873, 4
      %v2875 = vadd.f32 %v2873, %v2874
      %v2876 = vrot.slane %v2875, 2
      %v2877 = vadd.f32 %v2875, %v2876
      %v2878 = vrot.slane %v2877, 1
      %v2879 = vadd.f32 %v2877, %v2878
      %s2880 = vtos %v2879
      %v2881 = vrcp.pop 1024.0
      %v2882 = vmul.f32 1024.0, %v2881
      %v2883 = vsub.f32 1.0, %v2882
      %v2884 = vmul.f32 %v2881, %v2883
      %v2885 = vadd.f32 %v2881, %v2884
      %vm2886 = vweird.f32 %v2881
      %v2887 = vsel %vm2886, %v2881, %v2885
      %s2888 = vtos %v2887
      %s2889 = smul.f32 %s2880, %s2888
      %s2890 = sadd.f32 %s2889, 1e-05
      %v2891 = vstv %s2890
      %v2892 = vrsqrt.pop %v2891
      %v2893 = vmul.f32 %v2892, %v2891
      %v2894 = vmul.f32 %v2893, %v2892
      %v2895 = vmul.f32 0.5, %v2894
      %v2896 = vsub.f32 1.5, %v2895
      %v2897 = vmul.f32 %v2892, %v2896
      %vm2898 = vweird.f32 %v2891
      %vm2899 = vweird.f32 %v2892
      %vm2900 = vmor %vm2898, %vm2899
      %v2901 = vsel %vm2900, %v2892, %v2897
      %s2902 = vtos %v2901
      %v2903 = vstv %s2902
      %v2904 = vmul.f32 %v2865, %v2903
      %v2905 = vmul.f32 %v2866, %v2903
      %v2906 = vld [vmem:[%s13] sm:$0xf]
      %2908 = vset.pattern.permute.xlu0 0
      %2909 = vperm.xlu0 %2908, %v2906
      %v2910 = vpop.permute.xlu0 %2909
      %v2912 = vmul.f32 %v2904, %v2910
      %v2913 = vmul.f32 %v2905, %v2910
      %v2914 = vld [vmem:[%s14] sm:$0xf]
      %2916 = vset.pattern.permute.xlu0 0
      %2917 = vperm.xlu0 %2916, %v2914
      %v2918 = vpop.permute.xlu0 %2917
      %v2920 = vadd.f32 %v2912, %v2918
      %v2921 = vadd.f32 %v2913, %v2918
      %v2922 = vld [vmem:[%s557] sm:$0x1]
      %v2923 = vxor.u32 %v2922, 2147483648
      %v2924 = vmul.f32 %v2923, 1.442695
      %v2925 = vpow.pop %v2924
      %v2926 = vadd.f32 %v2925, 1.0
      %v2927 = vrcp.pop %v2926
      %v2928 = vmul.f32 %v2926, %v2927
      %v2929 = vsub.f32 1.0, %v2928
      %v2930 = vmul.f32 %v2927, %v2929
      %v2931 = vadd.f32 %v2927, %v2930
      %vm2932 = vweird.f32 %v2926
      %vm2933 = vweird.f32 %v2927
      %vm2934 = vmor %vm2932, %vm2933
      %v2935 = vsel %vm2934, %v2927, %v2931
      %v2936 = vand.u32 2147483647, %v2926
      %vm2937 = vcmp.eq.f32.partialorder %v2936, 8.507059e+37
      %v2938 = vand.u32 %v2926, 2147483648
      %v2939 = vor.u32 1.1754944e-38, %v2938
      %v2940 = vsel %vm2937, %v2939, %v2935
      %v2941 = vmul.f32 1.0, %v2940
      %v2942 = vmul.f32 %v2922, %v2941
      %v2943 = vld [vmem:[%s15] sm:$0xf]
      %v2945 = vperm.slane %v2942, 0
      %v2947 = vmul.f32 %v2943, %v2945
      %vm2948 = vcmask 257024
      %v2949 = vsel %vm2948, %v2947, 0.0
      %2950 = vadd.xlane.f32.xlu0 %v2949
      %v2951 = vpop.xlane.xlu0 %2950
      %v2952 = vld [vmem:[%s16] sm:$0xf]
      %v2953 = vadd.f32 %v2951, %v2952
      %2955 = vset.pattern.permute.xlu0 0
      %2956 = vperm.xlu0 %2955, %v2953
      %v2957 = vpop.permute.xlu0 %2956
      %v2959 = vadd.f32 %v2920, %v2957
      %v2960 = vadd.f32 %v2921, %v2957
      %v2963 = vrot.slane %v2960, 4
      %v2964 = vsel %vm587, %v2959, %v2963
      %2966 = vst [vmem:[%s562] sm:$0xff] %v2964
      %p2967 = scmp.lt.s32.totalorder %s28, 1
      %s2968 = scalar_select %p2967, %s28, 1
      %s2969 = smul.addr %s2968, 2
      %s2970 = smul.addr %s2969, 4
      %s2971 = scalar_lea.vmem %s17, %s2970
      // Predicated region
      $region89: #{up_forward_pallas.1} parent=87 // pred_check
        %p2972 = pneg %p413
      $region90: #{up_forward_pallas.1} parent=87 // pred_check_branch
        %2974 = sbr.rel (%p2972) target = $region92
      $region91: #{up_forward_pallas.1} parent=87 // pred_region
        _
      $region92: #{up_forward_pallas.1} parent=87 // pred_fallthru
        _
    $region88: #{up_forward_pallas.1} parent=5 // pred_fallthru
      _
    %p2975 = scmp.le.s32.totalorder 2, %s23
    // Predicated region
    $region93: #{up_forward_pallas.1} parent=5 // pred_check
      %p2976 = pneg %p2975
    $region94: #{up_forward_pallas.1} parent=5 // pred_check_branch
      %2978 = sbr.rel (%p2976) target = $region96
    $region95: #{up_forward_pallas.1} parent=5 // pred_region
      %s2979 = ssub.s32 %s23, 2
      // Predicated region
      $region97: #{up_forward_pallas.1} parent=95 // pred_check
        %p2980 = pneg %p419
      $region98: #{up_forward_pallas.1} parent=95 // pred_check_branch
        %2982 = sbr.rel (%p2980) target = $region100
      $region99: #{up_forward_pallas.1} parent=95 // pred_region
        %p2983 = scmp.lt.s32.totalorder %s29, 1
        %s2984 = scalar_select %p2983, %s29, 1
        %s2985 = smul.addr %s2984, 2
        %s2986 = smul.addr %s2985, 4
        %s2987 = scalar_lea.vmem %s17, %s2986
      $region100: #{up_forward_pallas.1} parent=95 // pred_fallthru
        _
    $region96: #{up_forward_pallas.1} parent=5 // pred_fallthru
      _
  $region6: #{up_forward_pallas.1} parent=0 // loop_footer
    %s27 = sadd.s32 1, %s23
  $region7: #{up_forward_pallas.1} parent=0 // loop_footer_branch
    %22 = sbr.rel target = $region3
  $region8: #{up_forward_pallas.1} parent=0 // loop_exit
    _

</llo_original>
